<compile_context>
chip_gen: v5e
topology: v5e:2x2
jax: 0.10.0
libtpu: 0.0.40
codegen_flags: <defaults>
</compile_context>

<pallas_src>
import jax
import jax.numpy as jnp
import numpy as np
from jax import lax
from jax.experimental import pallas as pl
from jax.experimental.pallas import tpu as pltpu

BN_EPS = 1e-6  # matches nn.BatchNorm1d(..., eps=1e-06)


def _bn_slices(h, gamma, beta):
    """BatchNorm1d (training mode, biased variance) applied independently to each
    leading time slice of h:(T, B, W); gamma/beta:(1, W).  Centered-variance form
    (E[(h-mean)^2]) to avoid catastrophic cancellation; applied as one FMA pass."""
    mean = jnp.mean(h, axis=1, keepdims=True)                 # (T, 1, W)
    d = h - mean
    var = jnp.mean(d * d, axis=1, keepdims=True)              # (T, 1, W)
    return d * (gamma * lax.rsqrt(var + BN_EPS)) + beta


def _make_kernel(Tm, B, D, n_lin, delta_t, lam):
    inv_dim = 1.0 / D
    dt_lam = delta_t * lam

    def kernel(x_ref, dw0_ref, dwt_ref, y0_ref, z0_ref, *rest):
        p = rest[:-1]     # shared subnet parameters (full VMEM blocks)
        y_ref = rest[-1]  # (1, B) lane-dense output row, written once

        # ---- batched subnet over all Tm = N-1 time slices --------------------
        h = x_ref[...]                                               # (Tm, B, D) f32
        h = _bn_slices(h, p[0][...], p[1][...])                      # bn_initial
        for i in range(n_lin):
            w = p[2 + 3 * i][...]                                    # (in, out) bf16
            g = p[3 + 3 * i][...]
            b = p[4 + 3 * i][...]
            hw = jnp.dot(h.reshape(Tm * B, h.shape[-1]).astype(jnp.bfloat16), w,
                         preferred_element_type=jnp.float32)         # one big MXU pass
            h = hw.reshape(Tm, B, w.shape[-1])
            h = jnp.maximum(_bn_slices(h, g, b), 0.0)                # bn{i} -> relu{i}
        # bn_last, with the 1/dim of `z = subnet(x)/dim` folded into gamma/beta
        z_tail = _bn_slices(h, p[-2][...] * inv_dim, p[-1][...] * inv_dim)  # (Tm, B, D)

        # ---- fused, collapsed Euler reduction ---------------------------------
        z0 = z0_ref[...]                                             # (1, D)
        # batch-independent scalar: delta_t*lam*||z0||^2
        c0 = dt_lam * jnp.sum(z0 * z0, axis=-1, keepdims=True)       # (1, 1)
        # fused increment: z * (dt*lam*z + dw); reduce time axis first (cheap VPU
        # adds, no relayout), then ONE lane-reduce per batch row.
        contrib = z_tail * (dt_lam * z_tail + dwt_ref[...])          # (Tm, B, D)
        s = z0 * dw0_ref[...] + jnp.sum(contrib, axis=0)             # (B, D)
        r = jnp.sum(s, axis=-1)                                      # (B,)  lanes
        y_ref[...] = (y0_ref[0, 0] + c0) + r.reshape(1, B)           # (1, B)

    return kernel


def nonshared_forward(dw, x, y_init, z_init, flat_params, *, delta_t, lam, layer_struct):
    """dw: (B, D, N), x: (B, D, N+1) in the PyTorch layout; returns y: (B, 1)."""
    B, D, N = dw.shape
    assert N >= 2, "need at least two time intervals"
    n_lin = len(layer_struct) - 1
    Tm = N - 1

    # time-major slabs: batch on sublanes, feature dim on lanes
    # (in a training loop these should be produced time-major upstream so the
    #  transposes disappear; they dominate wall time at this tiny size)
    dw_tm = jnp.transpose(dw, (2, 0, 1)).astype(jnp.float32)                 # (N,   B, D)
    dw0 = dw_tm[0]                                                           # (B, D)
    dw_tail = dw_tm[1:]                                                      # (N-1, B, D)
    x_tail = jnp.transpose(x[:, :, 1:N], (2, 0, 1)).astype(jnp.float32)      # (N-1, B, D)

    # pre-cast linear weights to bf16 (MXU operands); BN params stay f32
    params = list(flat_params)
    for i in range(n_lin):
        params[2 + 3 * i] = params[2 + 3 * i].astype(jnp.bfloat16)

    kernel = _make_kernel(Tm, B, D, n_lin, float(delta_t), float(lam))
    vmem = pl.BlockSpec(memory_space=pltpu.MemorySpace.VMEM)
    smem = pl.BlockSpec(memory_space=pltpu.MemorySpace.SMEM)
    in_specs = [vmem, vmem, vmem, smem, vmem] + [vmem] * len(params)

    flops = 2 * Tm * B * sum(layer_struct[i] * layer_struct[i + 1] for i in range(n_lin))
    transcendentals = Tm * (layer_struct[0] + sum(layer_struct[1:]) + layer_struct[-1])
    bytes_accessed = int(
        4 * (x_tail.size + dw_tm.size + y_init.size + z_init.size + B)
        + sum(int(p.size) * p.dtype.itemsize for p in params))

    y_row = pl.pallas_call(
        kernel,
        out_shape=jax.ShapeDtypeStruct((1, B), jnp.float32),
        in_specs=in_specs,
        out_specs=vmem,
        cost_estimate=pl.CostEstimate(flops=flops,
                                      transcendentals=transcendentals,
                                      bytes_accessed=bytes_accessed),
    )(x_tail, dw0, dw_tail, y_init.astype(jnp.float32), z_init.astype(jnp.float32), *params)
    return y_row.reshape(B, 1)


def init_params(key, layer_struct, y_init_range=(0.0, 1.0)):
    """Deterministic synthetic parameters mirroring the module's shapes/init."""
    n_lin = len(layer_struct) - 1
    keys = iter(jax.random.split(key, 6 + 3 * n_lin))
    f32 = jnp.float32

    lo, hi = y_init_range
    y0 = jax.random.uniform(next(keys), (1, 1), f32, lo, hi)                   # y_init
    z0 = jax.random.uniform(next(keys), (1, layer_struct[0]), f32, -0.1, 0.1)  # z_init

    def bn(width):  # weights_init: gamma ~ U(0.1, 0.5), beta ~ N(0, 0.1)
        g = jax.random.uniform(next(keys), (1, width), f32, 0.1, 0.5)
        b = 0.1 * jax.random.normal(next(keys), (1, width), f32)
        return g, b

    flat = []
    flat += list(bn(layer_struct[0]))                          # bn_initial
    for i in range(n_lin):
        fan_in, fan_out = layer_struct[i], layer_struct[i + 1]
        bound = 1.0 / float(np.sqrt(fan_in))
        # stored pre-transposed as (in, out) so the kernel computes h @ W
        w = jax.random.uniform(next(keys), (fan_in, fan_out), f32, -bound, bound)
        g, b = bn(fan_out)
        flat += [w, g, b]
    flat += list(bn(layer_struct[-1]))                         # bn_last
    return y0, z0, flat


def _bn_train_ref(h, gamma, beta):
    mean = jnp.mean(h, axis=0, keepdims=True)
    var = jnp.mean((h - mean) ** 2, axis=0, keepdims=True)
    return gamma * (h - mean) * lax.rsqrt(var + BN_EPS) + beta


def reference_forward(dw, x, y0, z0, flat, *, delta_t, lam, layer_struct):
    """Pure-JAX (f32) reference reproducing the PyTorch forward recursion step by step."""
    B, D, N = dw.shape
    n_lin = len(layer_struct) - 1

    def subnet(h):
        h = _bn_train_ref(h, flat[0], flat[1])
        for i in range(n_lin):
            w, g, b = flat[2 + 3 * i], flat[3 + 3 * i], flat[4 + 3 * i]
            h = jnp.dot(h, w, preferred_element_type=jnp.float32)
            h = jnp.maximum(_bn_train_ref(h, g, b), 0.0)
        return _bn_train_ref(h, flat[-2], flat[-1])

    y = jnp.ones((B, 1), jnp.float32) * y0[0, 0]
    z = jnp.broadcast_to(z0, (B, D))
    for t in range(N - 1):
        f_val = -lam * jnp.sum(z * z, axis=1, keepdims=True)
        y = y - delta_t * f_val + jnp.sum(z * dw[:, :, t], axis=1, keepdims=True)
        z = subnet(x[:, :, t + 1]) / D
    f_val = -lam * jnp.sum(z * z, axis=1, keepdims=True)
    y = y - delta_t * f_val + jnp.sum(z * dw[:, :, -1], axis=1, keepdims=True)
    return y


if __name__ == "__main__":
    B, D, H, N = 64, 16, 32, 8          # batch, eqn dim, hidden, num_time_interval
    layer_struct = (D, H, H, D)         # config.net_config.layer_struct
    delta_t = 0.1                       # bsde.delta_t
    lam = 1.0                           # HJB-LQ generator coefficient

    key = jax.random.PRNGKey(0)
    k_dw, k_x, k_p = jax.random.split(key, 3)
    dw = jnp.sqrt(delta_t) * jax.random.normal(k_dw, (B, D, N), jnp.float32)
    x = jax.random.normal(k_x, (B, D, N + 1), jnp.float32)
    y0, z0, flat = init_params(k_p, layer_struct)

    y = nonshared_forward(dw, x, y0, z0, flat,
                          delta_t=delta_t, lam=lam, layer_struct=layer_struct)
    y = jax.block_until_ready(y)

    y_ref = reference_forward(dw, x, y0, z0, flat,
                              delta_t=delta_t, lam=lam, layer_struct=layer_struct)
    # bf16 MXU operands (vs the f32 reference) introduce ~1e-3-level deviations;
    # 1e-2 tolerance keeps a comfortable margin while still catching real bugs.
    np.testing.assert_allclose(np.asarray(y), np.asarray(y_ref), rtol=1e-2, atol=1e-2)
    print("KERNEL_OK")
</pallas_src>

<mosaic_0001>
module attributes {stable_mosaic.version = 11 : i64} {
  func.func @kernel(%arg0: memref<7x64x16xf32, #tpu.memory_space<vmem>>, %arg1: memref<64x16xf32, #tpu.memory_space<vmem>>, %arg2: memref<7x64x16xf32, #tpu.memory_space<vmem>>, %arg3: memref<1x1xf32, #tpu.memory_space<smem>>, %arg4: memref<1x16xf32, #tpu.memory_space<vmem>>, %arg5: memref<1x16xf32, #tpu.memory_space<vmem>>, %arg6: memref<1x16xf32, #tpu.memory_space<vmem>>, %arg7: memref<16x32xbf16, #tpu.memory_space<vmem>>, %arg8: memref<1x32xf32, #tpu.memory_space<vmem>>, %arg9: memref<1x32xf32, #tpu.memory_space<vmem>>, %arg10: memref<32x32xbf16, #tpu.memory_space<vmem>>, %arg11: memref<1x32xf32, #tpu.memory_space<vmem>>, %arg12: memref<1x32xf32, #tpu.memory_space<vmem>>, %arg13: memref<32x16xbf16, #tpu.memory_space<vmem>>, %arg14: memref<1x16xf32, #tpu.memory_space<vmem>>, %arg15: memref<1x16xf32, #tpu.memory_space<vmem>>, %arg16: memref<1x16xf32, #tpu.memory_space<vmem>>, %arg17: memref<1x16xf32, #tpu.memory_space<vmem>>, %arg18: memref<1x64xf32, #tpu.memory_space<vmem>>) attributes {dimension_semantics = [], scalar_prefetch = 0 : i64, scratch_operands = 0 : i64, tpu.core_type = #tpu.core_type<tc>} {
    %c0 = arith.constant 0 : index
    %c0_0 = arith.constant 0 : index
    %c0_1 = arith.constant 0 : index
    %0 = vector.load %arg0[%c0, %c0_0, %c0_1] : memref<7x64x16xf32, #tpu.memory_space<vmem>>, vector<7x64x16xf32>
    %c0_2 = arith.constant 0 : index
    %c0_3 = arith.constant 0 : index
    %1 = vector.load %arg5[%c0_2, %c0_3] : memref<1x16xf32, #tpu.memory_space<vmem>>, vector<1x16xf32>
    %c0_4 = arith.constant 0 : index
    %c0_5 = arith.constant 0 : index
    %2 = vector.load %arg6[%c0_4, %c0_5] : memref<1x16xf32, #tpu.memory_space<vmem>>, vector<1x16xf32>
    %cst = arith.constant dense<0.000000e+00> : vector<7x16xf32>
    %3 = vector.multi_reduction <add>, %0, %cst [1] : vector<7x64x16xf32> to vector<7x16xf32>
    %4 = vector.shape_cast %3 : vector<7x16xf32> to vector<7x1x16xf32>
    %cst_6 = arith.constant 6.400000e+01 : f32
    %5 = vector.broadcast %cst_6 : f32 to vector<7x1x16xf32>
    %6 = arith.divf %4, %5 : vector<7x1x16xf32>
    %7 = vector.broadcast %6 : vector<7x1x16xf32> to vector<7x64x16xf32>
    %8 = arith.subf %0, %7 : vector<7x64x16xf32>
    %9 = arith.mulf %8, %8 : vector<7x64x16xf32>
    %cst_7 = arith.constant dense<0.000000e+00> : vector<7x16xf32>
    %10 = vector.multi_reduction <add>, %9, %cst_7 [1] : vector<7x64x16xf32> to vector<7x16xf32>
    %11 = vector.shape_cast %10 : vector<7x16xf32> to vector<7x1x16xf32>
    %cst_8 = arith.constant 6.400000e+01 : f32
    %12 = vector.broadcast %cst_8 : f32 to vector<7x1x16xf32>
    %13 = arith.divf %11, %12 : vector<7x1x16xf32>
    %cst_9 = arith.constant 9.99999997E-7 : f32
    %14 = vector.broadcast %cst_9 : f32 to vector<7x1x16xf32>
    %15 = arith.addf %13, %14 : vector<7x1x16xf32>
    %16 = math.rsqrt %15 : vector<7x1x16xf32>
    %17 = vector.shape_cast %1 : vector<1x16xf32> to vector<1x1x16xf32>
    %18 = vector.broadcast %17 : vector<1x1x16xf32> to vector<7x1x16xf32>
    %19 = arith.mulf %18, %16 : vector<7x1x16xf32>
    %20 = vector.broadcast %19 : vector<7x1x16xf32> to vector<7x64x16xf32>
    %21 = arith.mulf %8, %20 : vector<7x64x16xf32>
    %22 = vector.shape_cast %2 : vector<1x16xf32> to vector<1x1x16xf32>
    %23 = vector.broadcast %22 : vector<1x1x16xf32> to vector<7x64x16xf32>
    %24 = arith.addf %21, %23 : vector<7x64x16xf32>
    %c0_10 = arith.constant 0 : index
    %c0_11 = arith.constant 0 : index
    %25 = vector.load %arg7[%c0_10, %c0_11] : memref<16x32xbf16, #tpu.memory_space<vmem>>, vector<16x32xbf16>
    %c0_12 = arith.constant 0 : index
    %c0_13 = arith.constant 0 : index
    %26 = vector.load %arg8[%c0_12, %c0_13] : memref<1x32xf32, #tpu.memory_space<vmem>>, vector<1x32xf32>
    %c0_14 = arith.constant 0 : index
    %c0_15 = arith.constant 0 : index
    %27 = vector.load %arg9[%c0_14, %c0_15] : memref<1x32xf32, #tpu.memory_space<vmem>>, vector<1x32xf32>
    %28 = vector.shape_cast %24 : vector<7x64x16xf32> to vector<448x16xf32>
    %29 = arith.truncf %28 : vector<448x16xf32> to vector<448x16xbf16>
    %cst_16 = arith.constant dense<0.000000e+00> : vector<448x32xf32>
    %30 = tpu.matmul %29, %25, %cst_16 {dimension_numbers = #tpu.dot_dimension_numbers<[1], [0], [0], [1], [0, 0, 1, 1], [], []>} : vector<448x16xbf16>, vector<16x32xbf16>, vector<448x32xf32> -> vector<448x32xf32>
    %31 = vector.shape_cast %30 : vector<448x32xf32> to vector<7x64x32xf32>
    %cst_17 = arith.constant dense<0.000000e+00> : vector<7x32xf32>
    %32 = vector.multi_reduction <add>, %31, %cst_17 [1] : vector<7x64x32xf32> to vector<7x32xf32>
    %33 = vector.shape_cast %32 : vector<7x32xf32> to vector<7x1x32xf32>
    %cst_18 = arith.constant 6.400000e+01 : f32
    %34 = vector.broadcast %cst_18 : f32 to vector<7x1x32xf32>
    %35 = arith.divf %33, %34 : vector<7x1x32xf32>
    %36 = vector.broadcast %35 : vector<7x1x32xf32> to vector<7x64x32xf32>
    %37 = arith.subf %31, %36 : vector<7x64x32xf32>
    %38 = arith.mulf %37, %37 : vector<7x64x32xf32>
    %cst_19 = arith.constant dense<0.000000e+00> : vector<7x32xf32>
    %39 = vector.multi_reduction <add>, %38, %cst_19 [1] : vector<7x64x32xf32> to vector<7x32xf32>
    %40 = vector.shape_cast %39 : vector<7x32xf32> to vector<7x1x32xf32>
    %cst_20 = arith.constant 6.400000e+01 : f32
    %41 = vector.broadcast %cst_20 : f32 to vector<7x1x32xf32>
    %42 = arith.divf %40, %41 : vector<7x1x32xf32>
    %cst_21 = arith.constant 9.99999997E-7 : f32
    %43 = vector.broadcast %cst_21 : f32 to vector<7x1x32xf32>
    %44 = arith.addf %42, %43 : vector<7x1x32xf32>
    %45 = math.rsqrt %44 : vector<7x1x32xf32>
    %46 = vector.shape_cast %26 : vector<1x32xf32> to vector<1x1x32xf32>
    %47 = vector.broadcast %46 : vector<1x1x32xf32> to vector<7x1x32xf32>
    %48 = arith.mulf %47, %45 : vector<7x1x32xf32>
    %49 = vector.broadcast %48 : vector<7x1x32xf32> to vector<7x64x32xf32>
    %50 = arith.mulf %37, %49 : vector<7x64x32xf32>
    %51 = vector.shape_cast %27 : vector<1x32xf32> to vector<1x1x32xf32>
    %52 = vector.broadcast %51 : vector<1x1x32xf32> to vector<7x64x32xf32>
    %53 = arith.addf %50, %52 : vector<7x64x32xf32>
    %cst_22 = arith.constant 0.000000e+00 : f32
    %54 = vector.broadcast %cst_22 : f32 to vector<7x64x32xf32>
    %55 = arith.maximumf %53, %54 : vector<7x64x32xf32>
    %c0_23 = arith.constant 0 : index
    %c0_24 = arith.constant 0 : index
    %56 = vector.load %arg10[%c0_23, %c0_24] : memref<32x32xbf16, #tpu.memory_space<vmem>>, vector<32x32xbf16>
    %c0_25 = arith.constant 0 : index
    %c0_26 = arith.constant 0 : index
    %57 = vector.load %arg11[%c0_25, %c0_26] : memref<1x32xf32, #tpu.memory_space<vmem>>, vector<1x32xf32>
    %c0_27 = arith.constant 0 : index
    %c0_28 = arith.constant 0 : index
    %58 = vector.load %arg12[%c0_27, %c0_28] : memref<1x32xf32, #tpu.memory_space<vmem>>, vector<1x32xf32>
    %59 = vector.shape_cast %55 : vector<7x64x32xf32> to vector<448x32xf32>
    %60 = arith.truncf %59 : vector<448x32xf32> to vector<448x32xbf16>
    %cst_29 = arith.constant dense<0.000000e+00> : vector<448x32xf32>
    %61 = tpu.matmul %60, %56, %cst_29 {dimension_numbers = #tpu.dot_dimension_numbers<[1], [0], [0], [1], [0, 0, 1, 1], [], []>} : vector<448x32xbf16>, vector<32x32xbf16>, vector<448x32xf32> -> vector<448x32xf32>
    %62 = vector.shape_cast %61 : vector<448x32xf32> to vector<7x64x32xf32>
    %cst_30 = arith.constant dense<0.000000e+00> : vector<7x32xf32>
    %63 = vector.multi_reduction <add>, %62, %cst_30 [1] : vector<7x64x32xf32> to vector<7x32xf32>
    %64 = vector.shape_cast %63 : vector<7x32xf32> to vector<7x1x32xf32>
    %cst_31 = arith.constant 6.400000e+01 : f32
    %65 = vector.broadcast %cst_31 : f32 to vector<7x1x32xf32>
    %66 = arith.divf %64, %65 : vector<7x1x32xf32>
    %67 = vector.broadcast %66 : vector<7x1x32xf32> to vector<7x64x32xf32>
    %68 = arith.subf %62, %67 : vector<7x64x32xf32>
    %69 = arith.mulf %68, %68 : vector<7x64x32xf32>
    %cst_32 = arith.constant dense<0.000000e+00> : vector<7x32xf32>
    %70 = vector.multi_reduction <add>, %69, %cst_32 [1] : vector<7x64x32xf32> to vector<7x32xf32>
    %71 = vector.shape_cast %70 : vector<7x32xf32> to vector<7x1x32xf32>
    %cst_33 = arith.constant 6.400000e+01 : f32
    %72 = vector.broadcast %cst_33 : f32 to vector<7x1x32xf32>
    %73 = arith.divf %71, %72 : vector<7x1x32xf32>
    %cst_34 = arith.constant 9.99999997E-7 : f32
    %74 = vector.broadcast %cst_34 : f32 to vector<7x1x32xf32>
    %75 = arith.addf %73, %74 : vector<7x1x32xf32>
    %76 = math.rsqrt %75 : vector<7x1x32xf32>
    %77 = vector.shape_cast %57 : vector<1x32xf32> to vector<1x1x32xf32>
    %78 = vector.broadcast %77 : vector<1x1x32xf32> to vector<7x1x32xf32>
    %79 = arith.mulf %78, %76 : vector<7x1x32xf32>
    %80 = vector.broadcast %79 : vector<7x1x32xf32> to vector<7x64x32xf32>
    %81 = arith.mulf %68, %80 : vector<7x64x32xf32>
    %82 = vector.shape_cast %58 : vector<1x32xf32> to vector<1x1x32xf32>
    %83 = vector.broadcast %82 : vector<1x1x32xf32> to vector<7x64x32xf32>
    %84 = arith.addf %81, %83 : vector<7x64x32xf32>
    %cst_35 = arith.constant 0.000000e+00 : f32
    %85 = vector.broadcast %cst_35 : f32 to vector<7x64x32xf32>
    %86 = arith.maximumf %84, %85 : vector<7x64x32xf32>
    %c0_36 = arith.constant 0 : index
    %c0_37 = arith.constant 0 : index
    %87 = vector.load %arg13[%c0_36, %c0_37] : memref<32x16xbf16, #tpu.memory_space<vmem>>, vector<32x16xbf16>
    %c0_38 = arith.constant 0 : index
    %c0_39 = arith.constant 0 : index
    %88 = vector.load %arg14[%c0_38, %c0_39] : memref<1x16xf32, #tpu.memory_space<vmem>>, vector<1x16xf32>
    %c0_40 = arith.constant 0 : index
    %c0_41 = arith.constant 0 : index
    %89 = vector.load %arg15[%c0_40, %c0_41] : memref<1x16xf32, #tpu.memory_space<vmem>>, vector<1x16xf32>
    %90 = vector.shape_cast %86 : vector<7x64x32xf32> to vector<448x32xf32>
    %91 = arith.truncf %90 : vector<448x32xf32> to vector<448x32xbf16>
    %cst_42 = arith.constant dense<0.000000e+00> : vector<448x16xf32>
    %92 = tpu.matmul %91, %87, %cst_42 {dimension_numbers = #tpu.dot_dimension_numbers<[1], [0], [0], [1], [0, 0, 1, 1], [], []>} : vector<448x32xbf16>, vector<32x16xbf16>, vector<448x16xf32> -> vector<448x16xf32>
    %93 = vector.shape_cast %92 : vector<448x16xf32> to vector<7x64x16xf32>
    %cst_43 = arith.constant dense<0.000000e+00> : vector<7x16xf32>
    %94 = vector.multi_reduction <add>, %93, %cst_43 [1] : vector<7x64x16xf32> to vector<7x16xf32>
    %95 = vector.shape_cast %94 : vector<7x16xf32> to vector<7x1x16xf32>
    %cst_44 = arith.constant 6.400000e+01 : f32
    %96 = vector.broadcast %cst_44 : f32 to vector<7x1x16xf32>
    %97 = arith.divf %95, %96 : vector<7x1x16xf32>
    %98 = vector.broadcast %97 : vector<7x1x16xf32> to vector<7x64x16xf32>
    %99 = arith.subf %93, %98 : vector<7x64x16xf32>
    %100 = arith.mulf %99, %99 : vector<7x64x16xf32>
    %cst_45 = arith.constant dense<0.000000e+00> : vector<7x16xf32>
    %101 = vector.multi_reduction <add>, %100, %cst_45 [1] : vector<7x64x16xf32> to vector<7x16xf32>
    %102 = vector.shape_cast %101 : vector<7x16xf32> to vector<7x1x16xf32>
    %cst_46 = arith.constant 6.400000e+01 : f32
    %103 = vector.broadcast %cst_46 : f32 to vector<7x1x16xf32>
    %104 = arith.divf %102, %103 : vector<7x1x16xf32>
    %cst_47 = arith.constant 9.99999997E-7 : f32
    %105 = vector.broadcast %cst_47 : f32 to vector<7x1x16xf32>
    %106 = arith.addf %104, %105 : vector<7x1x16xf32>
    %107 = math.rsqrt %106 : vector<7x1x16xf32>
    %108 = vector.shape_cast %88 : vector<1x16xf32> to vector<1x1x16xf32>
    %109 = vector.broadcast %108 : vector<1x1x16xf32> to vector<7x1x16xf32>
    %110 = arith.mulf %109, %107 : vector<7x1x16xf32>
    %111 = vector.broadcast %110 : vector<7x1x16xf32> to vector<7x64x16xf32>
    %112 = arith.mulf %99, %111 : vector<7x64x16xf32>
    %113 = vector.shape_cast %89 : vector<1x16xf32> to vector<1x1x16xf32>
    %114 = vector.broadcast %113 : vector<1x1x16xf32> to vector<7x64x16xf32>
    %115 = arith.addf %112, %114 : vector<7x64x16xf32>
    %cst_48 = arith.constant 0.000000e+00 : f32
    %116 = vector.broadcast %cst_48 : f32 to vector<7x64x16xf32>
    %117 = arith.maximumf %115, %116 : vector<7x64x16xf32>
    %c0_49 = arith.constant 0 : index
    %c0_50 = arith.constant 0 : index
    %118 = vector.load %arg16[%c0_49, %c0_50] : memref<1x16xf32, #tpu.memory_space<vmem>>, vector<1x16xf32>
    %cst_51 = arith.constant 6.250000e-02 : f32
    %119 = vector.broadcast %cst_51 : f32 to vector<1x16xf32>
    %120 = arith.mulf %118, %119 : vector<1x16xf32>
    %c0_52 = arith.constant 0 : index
    %c0_53 = arith.constant 0 : index
    %121 = vector.load %arg17[%c0_52, %c0_53] : memref<1x16xf32, #tpu.memory_space<vmem>>, vector<1x16xf32>
    %cst_54 = arith.constant 6.250000e-02 : f32
    %122 = vector.broadcast %cst_54 : f32 to vector<1x16xf32>
    %123 = arith.mulf %121, %122 : vector<1x16xf32>
    %cst_55 = arith.constant dense<0.000000e+00> : vector<7x16xf32>
    %124 = vector.multi_reduction <add>, %117, %cst_55 [1] : vector<7x64x16xf32> to vector<7x16xf32>
    %125 = vector.shape_cast %124 : vector<7x16xf32> to vector<7x1x16xf32>
    %cst_56 = arith.constant 6.400000e+01 : f32
    %126 = vector.broadcast %cst_56 : f32 to vector<7x1x16xf32>
    %127 = arith.divf %125, %126 : vector<7x1x16xf32>
    %128 = vector.broadcast %127 : vector<7x1x16xf32> to vector<7x64x16xf32>
    %129 = arith.subf %117, %128 : vector<7x64x16xf32>
    %130 = arith.mulf %129, %129 : vector<7x64x16xf32>
    %cst_57 = arith.constant dense<0.000000e+00> : vector<7x16xf32>
    %131 = vector.multi_reduction <add>, %130, %cst_57 [1] : vector<7x64x16xf32> to vector<7x16xf32>
    %132 = vector.shape_cast %131 : vector<7x16xf32> to vector<7x1x16xf32>
    %cst_58 = arith.constant 6.400000e+01 : f32
    %133 = vector.broadcast %cst_58 : f32 to vector<7x1x16xf32>
    %134 = arith.divf %132, %133 : vector<7x1x16xf32>
    %cst_59 = arith.constant 9.99999997E-7 : f32
    %135 = vector.broadcast %cst_59 : f32 to vector<7x1x16xf32>
    %136 = arith.addf %134, %135 : vector<7x1x16xf32>
    %137 = math.rsqrt %136 : vector<7x1x16xf32>
    %138 = vector.shape_cast %120 : vector<1x16xf32> to vector<1x1x16xf32>
    %139 = vector.broadcast %138 : vector<1x1x16xf32> to vector<7x1x16xf32>
    %140 = arith.mulf %139, %137 : vector<7x1x16xf32>
    %141 = vector.broadcast %140 : vector<7x1x16xf32> to vector<7x64x16xf32>
    %142 = arith.mulf %129, %141 : vector<7x64x16xf32>
    %143 = vector.shape_cast %123 : vector<1x16xf32> to vector<1x1x16xf32>
    %144 = vector.broadcast %143 : vector<1x1x16xf32> to vector<7x64x16xf32>
    %145 = arith.addf %142, %144 : vector<7x64x16xf32>
    %c0_60 = arith.constant 0 : index
    %c0_61 = arith.constant 0 : index
    %146 = vector.load %arg4[%c0_60, %c0_61] : memref<1x16xf32, #tpu.memory_space<vmem>>, vector<1x16xf32>
    %147 = arith.mulf %146, %146 : vector<1x16xf32>
    %cst_62 = arith.constant dense<0.000000e+00> : vector<1xf32>
    %148 = vector.multi_reduction <add>, %147, %cst_62 [1] : vector<1x16xf32> to vector<1xf32>
    %149 = vector.shape_cast %148 : vector<1xf32> to vector<1x1xf32>
    %cst_63 = arith.constant 1.000000e-01 : f32
    %150 = vector.broadcast %cst_63 : f32 to vector<1x1xf32>
    %151 = arith.mulf %150, %149 : vector<1x1xf32>
    %cst_64 = arith.constant 1.000000e-01 : f32
    %152 = vector.broadcast %cst_64 : f32 to vector<7x64x16xf32>
    %153 = arith.mulf %152, %145 : vector<7x64x16xf32>
    %c0_65 = arith.constant 0 : index
    %c0_66 = arith.constant 0 : index
    %c0_67 = arith.constant 0 : index
    %154 = vector.load %arg2[%c0_65, %c0_66, %c0_67] : memref<7x64x16xf32, #tpu.memory_space<vmem>>, vector<7x64x16xf32>
    %155 = arith.addf %153, %154 : vector<7x64x16xf32>
    %156 = arith.mulf %145, %155 : vector<7x64x16xf32>
    %c0_68 = arith.constant 0 : index
    %c0_69 = arith.constant 0 : index
    %157 = vector.load %arg1[%c0_68, %c0_69] : memref<64x16xf32, #tpu.memory_space<vmem>>, vector<64x16xf32>
    %158 = vector.broadcast %146 : vector<1x16xf32> to vector<64x16xf32>
    %159 = arith.mulf %158, %157 : vector<64x16xf32>
    %cst_70 = arith.constant dense<0.000000e+00> : vector<64x16xf32>
    %160 = vector.multi_reduction <add>, %156, %cst_70 [0] : vector<7x64x16xf32> to vector<64x16xf32>
    %161 = arith.addf %159, %160 : vector<64x16xf32>
    %cst_71 = arith.constant dense<0.000000e+00> : vector<64xf32>
    %162 = vector.multi_reduction <add>, %161, %cst_71 [1] : vector<64x16xf32> to vector<64xf32>
    %c0_72 = arith.constant 0 : index
    %c0_73 = arith.constant 0 : index
    %163 = memref.load %arg3[%c0_72, %c0_73] : memref<1x1xf32, #tpu.memory_space<smem>>
    %164 = vector.broadcast %163 : f32 to vector<1x1xf32>
    %165 = arith.addf %164, %151 : vector<1x1xf32>
    %166 = vector.shape_cast %162 : vector<64xf32> to vector<1x64xf32>
    %167 = vector.broadcast %165 : vector<1x1xf32> to vector<1x64xf32>
    %168 = arith.addf %167, %166 : vector<1x64xf32>
    %c0_74 = arith.constant 0 : index
    %c0_75 = arith.constant 0 : index
    %169 = vector.load %arg18[%c0_74, %c0_75] : memref<1x64xf32, #tpu.memory_space<vmem>>, vector<1x64xf32>
    tpu.vector_store %arg18[%c0_74, %c0_75], %168 {strides = array<i32>} : memref<1x64xf32, #tpu.memory_space<vmem>>, vector<1x64xf32>,
    return
  }
}

</mosaic_0001>

<llo_original>
// kernel: tpu_custom_call.1
$region0: #{tpu_custom_call.1}
  #allocation0 [shape = 'u32[]', space=smem, size = 0x4, offset = 0x4, fixed_abs, tag = 'smem constant byte address 0x4 - core index']
  #allocation1 [shape = 'u32[72,128]{1,0:T(1,128)}', space=vmem, size = 0x9000, scoped, tag = 'internal scratch']
  #allocation2 [shape = 'f32[1,1]{1,0:T(1,128)S(6)}', space=smem, size = 0x200, scoped, tag = 'scoped memory for tpu_custom_call.1']
  %s0 = inlined_call_operand.vmem [shape: f32[7,64,16], index: 0, kind: input, shape index: {}]
  %s1 = inlined_call_operand.vmem [shape: f32[64,16], index: 1, kind: input, shape index: {}]
  %s2 = inlined_call_operand.vmem [shape: f32[7,64,16], index: 2, kind: input, shape index: {}]
  %s3 = inlined_call_operand.<no memory space> [shape: f32[1,1], index: 3, kind: input, shape index: {}]
  %s4 = inlined_call_operand.vmem [shape: f32[1,16], index: 4, kind: input, shape index: {}]
  %s5 = inlined_call_operand.vmem [shape: f32[1,16], index: 5, kind: input, shape index: {}]
  %s6 = inlined_call_operand.vmem [shape: f32[1,16], index: 6, kind: input, shape index: {}]
  %s7 = inlined_call_operand.vmem [shape: bf16[16,32], index: 7, kind: input, shape index: {}]
  %s8 = inlined_call_operand.vmem [shape: f32[1,32], index: 8, kind: input, shape index: {}]
  %s9 = inlined_call_operand.vmem [shape: f32[1,32], index: 9, kind: input, shape index: {}]
  %s10 = inlined_call_operand.vmem [shape: bf16[32,32], index: 10, kind: input, shape index: {}]
  %s11 = inlined_call_operand.vmem [shape: f32[1,32], index: 11, kind: input, shape index: {}]
  %s12 = inlined_call_operand.vmem [shape: f32[1,32], index: 12, kind: input, shape index: {}]
  %s13 = inlined_call_operand.vmem [shape: bf16[32,16], index: 13, kind: input, shape index: {}]
  %s14 = inlined_call_operand.vmem [shape: f32[1,16], index: 14, kind: input, shape index: {}]
  %s15 = inlined_call_operand.vmem [shape: f32[1,16], index: 15, kind: input, shape index: {}]
  %s16 = inlined_call_operand.vmem [shape: f32[1,16], index: 16, kind: input, shape index: {}]
  %s17 = inlined_call_operand.vmem [shape: f32[1,16], index: 17, kind: input, shape index: {}]
  %s18 = inlined_call_operand.hbm [shape: f32[1,64], index: 18, kind: output, shape index: {}]
  %s19 = sld [smem:[#allocation0]]
  $region82: #{tpu_custom_call.1} parent=0
    _
  %s21 = ssub.s32 1, %s19
  %s22 = scalar_select 0, %s21, %s19
  %23 = sst [smem:[#allocation2]] %s3
  $region1: #{tpu_custom_call.1} parent=0
    #allocation3 [shape = 'u8[512]{0}', space=vmem, size = 0x400, scoped, tag = 'output window, operand 0, single buffered']
    #allocation4 [shape = 's32[1]{0}', space=sflag, size = 0x4, scoped, tag = 'scoped memory for tpu_custom_call.1']
    %24 = vsyncpa [#allocation4], 0
    // Predicated region
    $region2: #{tpu_custom_call.1} parent=1 // pred_check
      _
    $region3: #{tpu_custom_call.1} parent=1 // pred_check_branch
      %26 = sbr.rel (0) target = $region5
    $region4: #{tpu_custom_call.1} parent=1 // pred_region
      _
    $region5: #{tpu_custom_call.1} parent=1 // pred_fallthru
      _
    // Predicated region
    $region6: #{tpu_custom_call.1} parent=1 // pred_check
      _
    $region7: #{tpu_custom_call.1} parent=1 // pred_check_branch
      %28 = sbr.rel (0) target = $region9
    $region8: #{tpu_custom_call.1} parent=1 // pred_region
      _
    $region9: #{tpu_custom_call.1} parent=1 // pred_fallthru
      _
    // Predicated region
    $region10: #{tpu_custom_call.1} parent=1 // pred_check
      _
    $region11: #{tpu_custom_call.1} parent=1 // pred_check_branch
      %30 = sbr.rel (0) target = $region13
    $region12: #{tpu_custom_call.1} parent=1 // pred_region
      _
    $region13: #{tpu_custom_call.1} parent=1 // pred_fallthru
      _
    // Predicated region
    $region14: #{tpu_custom_call.1} parent=1 // pred_check
      _
    $region15: #{tpu_custom_call.1} parent=1 // pred_check_branch
      %32 = sbr.rel (0) target = $region17
    $region16: #{tpu_custom_call.1} parent=1 // pred_region
      _
    $region17: #{tpu_custom_call.1} parent=1 // pred_fallthru
      _
    // Predicated region
    $region18: #{tpu_custom_call.1} parent=1 // pred_check
      _
    $region19: #{tpu_custom_call.1} parent=1 // pred_check_branch
      %34 = sbr.rel (0) target = $region21
    $region20: #{tpu_custom_call.1} parent=1 // pred_region
      _
    $region21: #{tpu_custom_call.1} parent=1 // pred_fallthru
      _
    // Predicated region
    $region22: #{tpu_custom_call.1} parent=1 // pred_check
      _
    $region23: #{tpu_custom_call.1} parent=1 // pred_check_branch
      %36 = sbr.rel (0) target = $region25
    $region24: #{tpu_custom_call.1} parent=1 // pred_region
      _
    $region25: #{tpu_custom_call.1} parent=1 // pred_fallthru
      _
    // Predicated region
    $region26: #{tpu_custom_call.1} parent=1 // pred_check
      _
    $region27: #{tpu_custom_call.1} parent=1 // pred_check_branch
      %38 = sbr.rel (0) target = $region29
    $region28: #{tpu_custom_call.1} parent=1 // pred_region
      _
    $region29: #{tpu_custom_call.1} parent=1 // pred_fallthru
      _
    // Predicated region
    $region30: #{tpu_custom_call.1} parent=1 // pred_check
      _
    $region31: #{tpu_custom_call.1} parent=1 // pred_check_branch
      %40 = sbr.rel (0) target = $region33
    $region32: #{tpu_custom_call.1} parent=1 // pred_region
      _
    $region33: #{tpu_custom_call.1} parent=1 // pred_fallthru
      _
    // Predicated region
    $region34: #{tpu_custom_call.1} parent=1 // pred_check
      _
    $region35: #{tpu_custom_call.1} parent=1 // pred_check_branch
      %42 = sbr.rel (0) target = $region37
    $region36: #{tpu_custom_call.1} parent=1 // pred_region
      _
    $region37: #{tpu_custom_call.1} parent=1 // pred_fallthru
      _
    // Predicated region
    $region38: #{tpu_custom_call.1} parent=1 // pred_check
      _
    $region39: #{tpu_custom_call.1} parent=1 // pred_check_branch
      %44 = sbr.rel (0) target = $region41
    $region40: #{tpu_custom_call.1} parent=1 // pred_region
      _
    $region41: #{tpu_custom_call.1} parent=1 // pred_fallthru
      _
    // Predicated region
    $region42: #{tpu_custom_call.1} parent=1 // pred_check
      _
    $region43: #{tpu_custom_call.1} parent=1 // pred_check_branch
      %46 = sbr.rel (0) target = $region45
    $region44: #{tpu_custom_call.1} parent=1 // pred_region
      _
    $region45: #{tpu_custom_call.1} parent=1 // pred_fallthru
      _
    // Predicated region
    $region46: #{tpu_custom_call.1} parent=1 // pred_check
      _
    $region47: #{tpu_custom_call.1} parent=1 // pred_check_branch
      %48 = sbr.rel (0) target = $region49
    $region48: #{tpu_custom_call.1} parent=1 // pred_region
      _
    $region49: #{tpu_custom_call.1} parent=1 // pred_fallthru
      _
    // Predicated region
    $region50: #{tpu_custom_call.1} parent=1 // pred_check
      _
    $region51: #{tpu_custom_call.1} parent=1 // pred_check_branch
      %50 = sbr.rel (0) target = $region53
    $region52: #{tpu_custom_call.1} parent=1 // pred_region
      _
    $region53: #{tpu_custom_call.1} parent=1 // pred_fallthru
      _
    // Predicated region
    $region54: #{tpu_custom_call.1} parent=1 // pred_check
      _
    $region55: #{tpu_custom_call.1} parent=1 // pred_check_branch
      %52 = sbr.rel (0) target = $region57
    $region56: #{tpu_custom_call.1} parent=1 // pred_region
      _
    $region57: #{tpu_custom_call.1} parent=1 // pred_fallthru
      _
    // Predicated region
    $region58: #{tpu_custom_call.1} parent=1 // pred_check
      _
    $region59: #{tpu_custom_call.1} parent=1 // pred_check_branch
      %54 = sbr.rel (0) target = $region61
    $region60: #{tpu_custom_call.1} parent=1 // pred_region
      _
    $region61: #{tpu_custom_call.1} parent=1 // pred_fallthru
      _
    // Predicated region
    $region62: #{tpu_custom_call.1} parent=1 // pred_check
      _
    $region63: #{tpu_custom_call.1} parent=1 // pred_check_branch
      %56 = sbr.rel (0) target = $region65
    $region64: #{tpu_custom_call.1} parent=1 // pred_region
      _
    $region65: #{tpu_custom_call.1} parent=1 // pred_fallthru
      _
    // Predicated region
    $region66: #{tpu_custom_call.1} parent=1 // pred_check
      _
    $region67: #{tpu_custom_call.1} parent=1 // pred_check_branch
      %58 = sbr.rel (0) target = $region69
    $region68: #{tpu_custom_call.1} parent=1 // pred_region
      _
    $region69: #{tpu_custom_call.1} parent=1 // pred_fallthru
      _
    // Predicated region
    $region70: #{tpu_custom_call.1} parent=1 // pred_check
      _
    $region71: #{tpu_custom_call.1} parent=1 // pred_check_branch
      %60 = sbr.rel (0) target = $region73
    $region72: #{tpu_custom_call.1} parent=1 // pred_region
      _
    $region73: #{tpu_custom_call.1} parent=1 // pred_fallthru
      _
    %v62 = vld [vmem:[%s0] sm:$0xff]
    %v63 = vld [vmem:[%s0 + $0x8] sm:$0xff]
    %v64 = vld [vmem:[%s0 + $0x10] sm:$0xff]
    %v65 = vld [vmem:[%s0 + $0x18] sm:$0xff]
    %v66 = vld [vmem:[%s0 + $0x20] sm:$0xff]
    %v67 = vld [vmem:[%s0 + $0x28] sm:$0xff]
    %v68 = vld [vmem:[%s0 + $0x30] sm:$0xff]
    %v69 = vld [vmem:[%s0 + $0x38] sm:$0xff]
    %v70 = vld [vmem:[%s0 + $0x40] sm:$0xff]
    %v71 = vld [vmem:[%s0 + $0x48] sm:$0xff]
    %v72 = vld [vmem:[%s0 + $0x50] sm:$0xff]
    %v73 = vld [vmem:[%s0 + $0x58] sm:$0xff]
    %v74 = vld [vmem:[%s0 + $0x60] sm:$0xff]
    %v75 = vld [vmem:[%s0 + $0x68] sm:$0xff]
    %v76 = vld [vmem:[%s0 + $0x70] sm:$0xff]
    %v77 = vld [vmem:[%s0 + $0x78] sm:$0xff]
    %v78 = vld [vmem:[%s0 + $0x80] sm:$0xff]
    %v79 = vld [vmem:[%s0 + $0x88] sm:$0xff]
    %v80 = vld [vmem:[%s0 + $0x90] sm:$0xff]
    %v81 = vld [vmem:[%s0 + $0x98] sm:$0xff]
    %v82 = vld [vmem:[%s0 + $0xa0] sm:$0xff]
    %v83 = vld [vmem:[%s0 + $0xa8] sm:$0xff]
    %v84 = vld [vmem:[%s0 + $0xb0] sm:$0xff]
    %v85 = vld [vmem:[%s0 + $0xb8] sm:$0xff]
    %v86 = vld [vmem:[%s0 + $0xc0] sm:$0xff]
    %v87 = vld [vmem:[%s0 + $0xc8] sm:$0xff]
    %v88 = vld [vmem:[%s0 + $0xd0] sm:$0xff]
    %v89 = vld [vmem:[%s0 + $0xd8] sm:$0xff]
    %v90 = vld [vmem:[%s0 + $0xe0] sm:$0xff]
    %v91 = vld [vmem:[%s0 + $0xe8] sm:$0xff]
    %v92 = vld [vmem:[%s0 + $0xf0] sm:$0xff]
    %v93 = vld [vmem:[%s0 + $0xf8] sm:$0xff]
    %v94 = vld [vmem:[%s0 + $0x100] sm:$0xff]
    %v95 = vld [vmem:[%s0 + $0x108] sm:$0xff]
    %v96 = vld [vmem:[%s0 + $0x110] sm:$0xff]
    %v97 = vld [vmem:[%s0 + $0x118] sm:$0xff]
    %v98 = vld [vmem:[%s0 + $0x120] sm:$0xff]
    %v99 = vld [vmem:[%s0 + $0x128] sm:$0xff]
    %v100 = vld [vmem:[%s0 + $0x130] sm:$0xff]
    %v101 = vld [vmem:[%s0 + $0x138] sm:$0xff]
    %v102 = vld [vmem:[%s0 + $0x140] sm:$0xff]
    %v103 = vld [vmem:[%s0 + $0x148] sm:$0xff]
    %v104 = vld [vmem:[%s0 + $0x150] sm:$0xff]
    %v105 = vld [vmem:[%s0 + $0x158] sm:$0xff]
    %v106 = vld [vmem:[%s0 + $0x160] sm:$0xff]
    %v107 = vld [vmem:[%s0 + $0x168] sm:$0xff]
    %v108 = vld [vmem:[%s0 + $0x170] sm:$0xff]
    %v109 = vld [vmem:[%s0 + $0x178] sm:$0xff]
    %v110 = vld [vmem:[%s0 + $0x180] sm:$0xff]
    %v111 = vld [vmem:[%s0 + $0x188] sm:$0xff]
    %v112 = vld [vmem:[%s0 + $0x190] sm:$0xff]
    %v113 = vld [vmem:[%s0 + $0x198] sm:$0xff]
    %v114 = vld [vmem:[%s0 + $0x1a0] sm:$0xff]
    %v115 = vld [vmem:[%s0 + $0x1a8] sm:$0xff]
    %v116 = vld [vmem:[%s0 + $0x1b0] sm:$0xff]
    %v117 = vld [vmem:[%s0 + $0x1b8] sm:$0xff]
    %v118 = vld [vmem:[%s5] sm:$0x1]
    %v119 = vld [vmem:[%s6] sm:$0x1]
    %vm120 = vcmask 130048
    %v121 = vsel %vm120, %v62, 0.0
    %v122 = vsel %vm120, %v63, 0.0
    %v123 = vadd.f32 %v121, %v122
    %v124 = vsel %vm120, %v64, 0.0
    %v125 = vadd.f32 %v123, %v124
    %v126 = vsel %vm120, %v65, 0.0
    %v127 = vadd.f32 %v125, %v126
    %v128 = vsel %vm120, %v66, 0.0
    %v129 = vadd.f32 %v127, %v128
    %v130 = vsel %vm120, %v67, 0.0
    %v131 = vadd.f32 %v129, %v130
    %v132 = vsel %vm120, %v68, 0.0
    %v133 = vadd.f32 %v131, %v132
    %v134 = vsel %vm120, %v69, 0.0
    %v135 = vadd.f32 %v133, %v134
    %v136 = vrot.slane %v135, 4
    %v137 = vadd.f32 %v135, %v136
    %v138 = vrot.slane %v137, 2
    %v139 = vadd.f32 %v137, %v138
    %v140 = vrot.slane %v139, 1
    %v141 = vadd.f32 %v139, %v140
    %v142 = vsel %vm120, %v70, 0.0
    %v143 = vsel %vm120, %v71, 0.0
    %v144 = vadd.f32 %v142, %v143
    %v145 = vsel %vm120, %v72, 0.0
    %v146 = vadd.f32 %v144, %v145
    %v147 = vsel %vm120, %v73, 0.0
    %v148 = vadd.f32 %v146, %v147
    %v149 = vsel %vm120, %v74, 0.0
    %v150 = vadd.f32 %v148, %v149
    %v151 = vsel %vm120, %v75, 0.0
    %v152 = vadd.f32 %v150, %v151
    %v153 = vsel %vm120, %v76, 0.0
    %v154 = vadd.f32 %v152, %v153
    %v155 = vsel %vm120, %v77, 0.0
    %v156 = vadd.f32 %v154, %v155
    %v157 = vrot.slane %v156, 4
    %v158 = vadd.f32 %v156, %v157
    %v159 = vrot.slane %v158, 2
    %v160 = vadd.f32 %v158, %v159
    %v161 = vrot.slane %v160, 1
    %v162 = vadd.f32 %v160, %v161
    %v163 = vsel %vm120, %v78, 0.0
    %v164 = vsel %vm120, %v79, 0.0
    %v165 = vadd.f32 %v163, %v164
    %v166 = vsel %vm120, %v80, 0.0
    %v167 = vadd.f32 %v165, %v166
    %v168 = vsel %vm120, %v81, 0.0
    %v169 = vadd.f32 %v167, %v168
    %v170 = vsel %vm120, %v82, 0.0
    %v171 = vadd.f32 %v169, %v170
    %v172 = vsel %vm120, %v83, 0.0
    %v173 = vadd.f32 %v171, %v172
    %v174 = vsel %vm120, %v84, 0.0
    %v175 = vadd.f32 %v173, %v174
    %v176 = vsel %vm120, %v85, 0.0
    %v177 = vadd.f32 %v175, %v176
    %v178 = vrot.slane %v177, 4
    %v179 = vadd.f32 %v177, %v178
    %v180 = vrot.slane %v179, 2
    %v181 = vadd.f32 %v179, %v180
    %v182 = vrot.slane %v181, 1
    %v183 = vadd.f32 %v181, %v182
    %v184 = vsel %vm120, %v86, 0.0
    %v185 = vsel %vm120, %v87, 0.0
    %v186 = vadd.f32 %v184, %v185
    %v187 = vsel %vm120, %v88, 0.0
    %v188 = vadd.f32 %v186, %v187
    %v189 = vsel %vm120, %v89, 0.0
    %v190 = vadd.f32 %v188, %v189
    %v191 = vsel %vm120, %v90, 0.0
    %v192 = vadd.f32 %v190, %v191
    %v193 = vsel %vm120, %v91, 0.0
    %v194 = vadd.f32 %v192, %v193
    %v195 = vsel %vm120, %v92, 0.0
    %v196 = vadd.f32 %v194, %v195
    %v197 = vsel %vm120, %v93, 0.0
    %v198 = vadd.f32 %v196, %v197
    %v199 = vrot.slane %v198, 4
    %v200 = vadd.f32 %v198, %v199
    %v201 = vrot.slane %v200, 2
    %v202 = vadd.f32 %v200, %v201
    %v203 = vrot.slane %v202, 1
    %v204 = vadd.f32 %v202, %v203
    %v205 = vsel %vm120, %v94, 0.0
    %v206 = vsel %vm120, %v95, 0.0
    %v207 = vadd.f32 %v205, %v206
    %v208 = vsel %vm120, %v96, 0.0
    %v209 = vadd.f32 %v207, %v208
    %v210 = vsel %vm120, %v97, 0.0
    %v211 = vadd.f32 %v209, %v210
    %v212 = vsel %vm120, %v98, 0.0
    %v213 = vadd.f32 %v211, %v212
    %v214 = vsel %vm120, %v99, 0.0
    %v215 = vadd.f32 %v213, %v214
    %v216 = vsel %vm120, %v100, 0.0
    %v217 = vadd.f32 %v215, %v216
    %v218 = vsel %vm120, %v101, 0.0
    %v219 = vadd.f32 %v217, %v218
    %v220 = vrot.slane %v219, 4
    %v221 = vadd.f32 %v219, %v220
    %v222 = vrot.slane %v221, 2
    %v223 = vadd.f32 %v221, %v222
    %v224 = vrot.slane %v223, 1
    %v225 = vadd.f32 %v223, %v224
    %v226 = vsel %vm120, %v102, 0.0
    %v227 = vsel %vm120, %v103, 0.0
    %v228 = vadd.f32 %v226, %v227
    %v229 = vsel %vm120, %v104, 0.0
    %v230 = vadd.f32 %v228, %v229
    %v231 = vsel %vm120, %v105, 0.0
    %v232 = vadd.f32 %v230, %v231
    %v233 = vsel %vm120, %v106, 0.0
    %v234 = vadd.f32 %v232, %v233
    %v235 = vsel %vm120, %v107, 0.0
    %v236 = vadd.f32 %v234, %v235
    %v237 = vsel %vm120, %v108, 0.0
    %v238 = vadd.f32 %v236, %v237
    %v239 = vsel %vm120, %v109, 0.0
    %v240 = vadd.f32 %v238, %v239
    %v241 = vrot.slane %v240, 4
    %v242 = vadd.f32 %v240, %v241
    %v243 = vrot.slane %v242, 2
    %v244 = vadd.f32 %v242, %v243
    %v245 = vrot.slane %v244, 1
    %v246 = vadd.f32 %v244, %v245
    %v247 = vsel %vm120, %v110, 0.0
    %v248 = vsel %vm120, %v111, 0.0
    %v249 = vadd.f32 %v247, %v248
    %v250 = vsel %vm120, %v112, 0.0
    %v251 = vadd.f32 %v249, %v250
    %v252 = vsel %vm120, %v113, 0.0
    %v253 = vadd.f32 %v251, %v252
    %v254 = vsel %vm120, %v114, 0.0
    %v255 = vadd.f32 %v253, %v254
    %v256 = vsel %vm120, %v115, 0.0
    %v257 = vadd.f32 %v255, %v256
    %v258 = vsel %vm120, %v116, 0.0
    %v259 = vadd.f32 %v257, %v258
    %v260 = vsel %vm120, %v117, 0.0
    %v261 = vadd.f32 %v259, %v260
    %v262 = vrot.slane %v261, 4
    %v263 = vadd.f32 %v261, %v262
    %v264 = vrot.slane %v263, 2
    %v265 = vadd.f32 %v263, %v264
    %v266 = vrot.slane %v265, 1
    %v267 = vadd.f32 %v265, %v266
    %v268 = vrcp.pop 64.0
    %v269 = vmul.f32 64.0, %v268
    %v270 = vsub.f32 1.0, %v269
    %v271 = vmul.f32 %v268, %v270
    %v272 = vadd.f32 %v268, %v271
    %vm273 = vweird.f32 %v268
    %v274 = vsel %vm273, %v268, %v272
    %v275 = vmul.f32 %v141, %v274
    %v276 = vmul.f32 %v162, %v274
    %v277 = vmul.f32 %v183, %v274
    %v278 = vmul.f32 %v204, %v274
    %v279 = vmul.f32 %v225, %v274
    %v280 = vmul.f32 %v246, %v274
    %v281 = vmul.f32 %v267, %v274
    %v282 = vsub.f32 %v62, %v275
    %v283 = vsub.f32 %v63, %v275
    %v284 = vsub.f32 %v64, %v275
    %v285 = vsub.f32 %v65, %v275
    %v286 = vsub.f32 %v66, %v275
    %v287 = vsub.f32 %v67, %v275
    %v288 = vsub.f32 %v68, %v275
    %v289 = vsub.f32 %v69, %v275
    %v290 = vsub.f32 %v70, %v276
    %v291 = vsub.f32 %v71, %v276
    %v292 = vsub.f32 %v72, %v276
    %v293 = vsub.f32 %v73, %v276
    %v294 = vsub.f32 %v74, %v276
    %v295 = vsub.f32 %v75, %v276
    %v296 = vsub.f32 %v76, %v276
    %v297 = vsub.f32 %v77, %v276
    %v298 = vsub.f32 %v78, %v277
    %v299 = vsub.f32 %v79, %v277
    %v300 = vsub.f32 %v80, %v277
    %v301 = vsub.f32 %v81, %v277
    %v302 = vsub.f32 %v82, %v277
    %v303 = vsub.f32 %v83, %v277
    %v304 = vsub.f32 %v84, %v277
    %v305 = vsub.f32 %v85, %v277
    %v306 = vsub.f32 %v86, %v278
    %v307 = vsub.f32 %v87, %v278
    %v308 = vsub.f32 %v88, %v278
    %v309 = vsub.f32 %v89, %v278
    %v310 = vsub.f32 %v90, %v278
    %v311 = vsub.f32 %v91, %v278
    %v312 = vsub.f32 %v92, %v278
    %v313 = vsub.f32 %v93, %v278
    %v314 = vsub.f32 %v94, %v279
    %v315 = vsub.f32 %v95, %v279
    %v316 = vsub.f32 %v96, %v279
    %v317 = vsub.f32 %v97, %v279
    %v318 = vsub.f32 %v98, %v279
    %v319 = vsub.f32 %v99, %v279
    %v320 = vsub.f32 %v100, %v279
    %v321 = vsub.f32 %v101, %v279
    %v322 = vsub.f32 %v102, %v280
    %v323 = vsub.f32 %v103, %v280
    %v324 = vsub.f32 %v104, %v280
    %v325 = vsub.f32 %v105, %v280
    %v326 = vsub.f32 %v106, %v280
    %v327 = vsub.f32 %v107, %v280
    %v328 = vsub.f32 %v108, %v280
    %v329 = vsub.f32 %v109, %v280
    %v330 = vsub.f32 %v110, %v281
    %v331 = vsub.f32 %v111, %v281
    %v332 = vsub.f32 %v112, %v281
    %v333 = vsub.f32 %v113, %v281
    %v334 = vsub.f32 %v114, %v281
    %v335 = vsub.f32 %v115, %v281
    %v336 = vsub.f32 %v116, %v281
    %v337 = vsub.f32 %v117, %v281
    %v338 = vmul.f32 %v282, %v282
    %v339 = vmul.f32 %v283, %v283
    %v340 = vmul.f32 %v284, %v284
    %v341 = vmul.f32 %v285, %v285
    %v342 = vmul.f32 %v286, %v286
    %v343 = vmul.f32 %v287, %v287
    %v344 = vmul.f32 %v288, %v288
    %v345 = vmul.f32 %v289, %v289
    %v346 = vmul.f32 %v290, %v290
    %v347 = vmul.f32 %v291, %v291
    %v348 = vmul.f32 %v292, %v292
    %v349 = vmul.f32 %v293, %v293
    %v350 = vmul.f32 %v294, %v294
    %v351 = vmul.f32 %v295, %v295
    %v352 = vmul.f32 %v296, %v296
    %v353 = vmul.f32 %v297, %v297
    %v354 = vmul.f32 %v298, %v298
    %v355 = vmul.f32 %v299, %v299
    %v356 = vmul.f32 %v300, %v300
    %v357 = vmul.f32 %v301, %v301
    %v358 = vmul.f32 %v302, %v302
    %v359 = vmul.f32 %v303, %v303
    %v360 = vmul.f32 %v304, %v304
    %v361 = vmul.f32 %v305, %v305
    %v362 = vmul.f32 %v306, %v306
    %v363 = vmul.f32 %v307, %v307
    %v364 = vmul.f32 %v308, %v308
    %v365 = vmul.f32 %v309, %v309
    %v366 = vmul.f32 %v310, %v310
    %v367 = vmul.f32 %v311, %v311
    %v368 = vmul.f32 %v312, %v312
    %v369 = vmul.f32 %v313, %v313
    %v370 = vmul.f32 %v314, %v314
    %v371 = vmul.f32 %v315, %v315
    %v372 = vmul.f32 %v316, %v316
    %v373 = vmul.f32 %v317, %v317
    %v374 = vmul.f32 %v318, %v318
    %v375 = vmul.f32 %v319, %v319
    %v376 = vmul.f32 %v320, %v320
    %v377 = vmul.f32 %v321, %v321
    %v378 = vmul.f32 %v322, %v322
    %v379 = vmul.f32 %v323, %v323
    %v380 = vmul.f32 %v324, %v324
    %v381 = vmul.f32 %v325, %v325
    %v382 = vmul.f32 %v326, %v326
    %v383 = vmul.f32 %v327, %v327
    %v384 = vmul.f32 %v328, %v328
    %v385 = vmul.f32 %v329, %v329
    %v386 = vmul.f32 %v330, %v330
    %v387 = vmul.f32 %v331, %v331
    %v388 = vmul.f32 %v332, %v332
    %v389 = vmul.f32 %v333, %v333
    %v390 = vmul.f32 %v334, %v334
    %v391 = vmul.f32 %v335, %v335
    %v392 = vmul.f32 %v336, %v336
    %v393 = vmul.f32 %v337, %v337
    %v394 = vsel %vm120, %v338, 0.0
    %v395 = vsel %vm120, %v339, 0.0
    %v396 = vadd.f32 %v394, %v395
    %v397 = vsel %vm120, %v340, 0.0
    %v398 = vadd.f32 %v396, %v397
    %v399 = vsel %vm120, %v341, 0.0
    %v400 = vadd.f32 %v398, %v399
    %v401 = vsel %vm120, %v342, 0.0
    %v402 = vadd.f32 %v400, %v401
    %v403 = vsel %vm120, %v343, 0.0
    %v404 = vadd.f32 %v402, %v403
    %v405 = vsel %vm120, %v344, 0.0
    %v406 = vadd.f32 %v404, %v405
    %v407 = vsel %vm120, %v345, 0.0
    %v408 = vadd.f32 %v406, %v407
    %v409 = vrot.slane %v408, 4
    %v410 = vadd.f32 %v408, %v409
    %v411 = vrot.slane %v410, 2
    %v412 = vadd.f32 %v410, %v411
    %v413 = vrot.slane %v412, 1
    %v414 = vadd.f32 %v412, %v413
    %v415 = vsel %vm120, %v346, 0.0
    %v416 = vsel %vm120, %v347, 0.0
    %v417 = vadd.f32 %v415, %v416
    %v418 = vsel %vm120, %v348, 0.0
    %v419 = vadd.f32 %v417, %v418
    %v420 = vsel %vm120, %v349, 0.0
    %v421 = vadd.f32 %v419, %v420
    %v422 = vsel %vm120, %v350, 0.0
    %v423 = vadd.f32 %v421, %v422
    %v424 = vsel %vm120, %v351, 0.0
    %v425 = vadd.f32 %v423, %v424
    %v426 = vsel %vm120, %v352, 0.0
    %v427 = vadd.f32 %v425, %v426
    %v428 = vsel %vm120, %v353, 0.0
    %v429 = vadd.f32 %v427, %v428
    %v430 = vrot.slane %v429, 4
    %v431 = vadd.f32 %v429, %v430
    %v432 = vrot.slane %v431, 2
    %v433 = vadd.f32 %v431, %v432
    %v434 = vrot.slane %v433, 1
    %v435 = vadd.f32 %v433, %v434
    %v436 = vsel %vm120, %v354, 0.0
    %v437 = vsel %vm120, %v355, 0.0
    %v438 = vadd.f32 %v436, %v437
    %v439 = vsel %vm120, %v356, 0.0
    %v440 = vadd.f32 %v438, %v439
    %v441 = vsel %vm120, %v357, 0.0
    %v442 = vadd.f32 %v440, %v441
    %v443 = vsel %vm120, %v358, 0.0
    %v444 = vadd.f32 %v442, %v443
    %v445 = vsel %vm120, %v359, 0.0
    %v446 = vadd.f32 %v444, %v445
    %v447 = vsel %vm120, %v360, 0.0
    %v448 = vadd.f32 %v446, %v447
    %v449 = vsel %vm120, %v361, 0.0
    %v450 = vadd.f32 %v448, %v449
    %v451 = vrot.slane %v450, 4
    %v452 = vadd.f32 %v450, %v451
    %v453 = vrot.slane %v452, 2
    %v454 = vadd.f32 %v452, %v453
    %v455 = vrot.slane %v454, 1
    %v456 = vadd.f32 %v454, %v455
    %v457 = vsel %vm120, %v362, 0.0
    %v458 = vsel %vm120, %v363, 0.0
    %v459 = vadd.f32 %v457, %v458
    %v460 = vsel %vm120, %v364, 0.0
    %v461 = vadd.f32 %v459, %v460
    %v462 = vsel %vm120, %v365, 0.0
    %v463 = vadd.f32 %v461, %v462
    %v464 = vsel %vm120, %v366, 0.0
    %v465 = vadd.f32 %v463, %v464
    %v466 = vsel %vm120, %v367, 0.0
    %v467 = vadd.f32 %v465, %v466
    %v468 = vsel %vm120, %v368, 0.0
    %v469 = vadd.f32 %v467, %v468
    %v470 = vsel %vm120, %v369, 0.0
    %v471 = vadd.f32 %v469, %v470
    %v472 = vrot.slane %v471, 4
    %v473 = vadd.f32 %v471, %v472
    %v474 = vrot.slane %v473, 2
    %v475 = vadd.f32 %v473, %v474
    %v476 = vrot.slane %v475, 1
    %v477 = vadd.f32 %v475, %v476
    %v478 = vsel %vm120, %v370, 0.0
    %v479 = vsel %vm120, %v371, 0.0
    %v480 = vadd.f32 %v478, %v479
    %v481 = vsel %vm120, %v372, 0.0
    %v482 = vadd.f32 %v480, %v481
    %v483 = vsel %vm120, %v373, 0.0
    %v484 = vadd.f32 %v482, %v483
    %v485 = vsel %vm120, %v374, 0.0
    %v486 = vadd.f32 %v484, %v485
    %v487 = vsel %vm120, %v375, 0.0
    %v488 = vadd.f32 %v486, %v487
    %v489 = vsel %vm120, %v376, 0.0
    %v490 = vadd.f32 %v488, %v489
    %v491 = vsel %vm120, %v377, 0.0
    %v492 = vadd.f32 %v490, %v491
    %v493 = vrot.slane %v492, 4
    %v494 = vadd.f32 %v492, %v493
    %v495 = vrot.slane %v494, 2
    %v496 = vadd.f32 %v494, %v495
    %v497 = vrot.slane %v496, 1
    %v498 = vadd.f32 %v496, %v497
    %v499 = vsel %vm120, %v378, 0.0
    %v500 = vsel %vm120, %v379, 0.0
    %v501 = vadd.f32 %v499, %v500
    %v502 = vsel %vm120, %v380, 0.0
    %v503 = vadd.f32 %v501, %v502
    %v504 = vsel %vm120, %v381, 0.0
    %v505 = vadd.f32 %v503, %v504
    %v506 = vsel %vm120, %v382, 0.0
    %v507 = vadd.f32 %v505, %v506
    %v508 = vsel %vm120, %v383, 0.0
    %v509 = vadd.f32 %v507, %v508
    %v510 = vsel %vm120, %v384, 0.0
    %v511 = vadd.f32 %v509, %v510
    %v512 = vsel %vm120, %v385, 0.0
    %v513 = vadd.f32 %v511, %v512
    %v514 = vrot.slane %v513, 4
    %v515 = vadd.f32 %v513, %v514
    %v516 = vrot.slane %v515, 2
    %v517 = vadd.f32 %v515, %v516
    %v518 = vrot.slane %v517, 1
    %v519 = vadd.f32 %v517, %v518
    %v520 = vsel %vm120, %v386, 0.0
    %v521 = vsel %vm120, %v387, 0.0
    %v522 = vadd.f32 %v520, %v521
    %v523 = vsel %vm120, %v388, 0.0
    %v524 = vadd.f32 %v522, %v523
    %v525 = vsel %vm120, %v389, 0.0
    %v526 = vadd.f32 %v524, %v525
    %v527 = vsel %vm120, %v390, 0.0
    %v528 = vadd.f32 %v526, %v527
    %v529 = vsel %vm120, %v391, 0.0
    %v530 = vadd.f32 %v528, %v529
    %v531 = vsel %vm120, %v392, 0.0
    %v532 = vadd.f32 %v530, %v531
    %v533 = vsel %vm120, %v393, 0.0
    %v534 = vadd.f32 %v532, %v533
    %v535 = vrot.slane %v534, 4
    %v536 = vadd.f32 %v534, %v535
    %v537 = vrot.slane %v536, 2
    %v538 = vadd.f32 %v536, %v537
    %v539 = vrot.slane %v538, 1
    %v540 = vadd.f32 %v538, %v539
    %v541 = vmul.f32 %v414, %v274
    %v542 = vmul.f32 %v435, %v274
    %v543 = vmul.f32 %v456, %v274
    %v544 = vmul.f32 %v477, %v274
    %v545 = vmul.f32 %v498, %v274
    %v546 = vmul.f32 %v519, %v274
    %v547 = vmul.f32 %v540, %v274
    %v548 = vadd.f32 %v541, 1e-06
    %v549 = vadd.f32 %v542, 1e-06
    %v550 = vadd.f32 %v543, 1e-06
    %v551 = vadd.f32 %v544, 1e-06
    %v552 = vadd.f32 %v545, 1e-06
    %v553 = vadd.f32 %v546, 1e-06
    %v554 = vadd.f32 %v547, 1e-06
    %v555 = vrsqrt.pop %v548
    %v556 = vmul.f32 %v555, %v548
    %v557 = vmul.f32 %v556, %v555
    %v558 = vmul.f32 0.5, %v557
    %v559 = vsub.f32 1.5, %v558
    %v560 = vmul.f32 %v555, %v559
    %vm561 = vweird.f32 %v548
    %vm562 = vweird.f32 %v555
    %vm563 = vmor %vm561, %vm562
    %v564 = vsel %vm563, %v555, %v560
    %v565 = vrsqrt.pop %v549
    %v566 = vmul.f32 %v565, %v549
    %v567 = vmul.f32 %v566, %v565
    %v568 = vmul.f32 0.5, %v567
    %v569 = vsub.f32 1.5, %v568
    %v570 = vmul.f32 %v565, %v569
    %vm571 = vweird.f32 %v549
    %vm572 = vweird.f32 %v565
    %vm573 = vmor %vm571, %vm572
    %v574 = vsel %vm573, %v565, %v570
    %v575 = vrsqrt.pop %v550
    %v576 = vmul.f32 %v575, %v550
    %v577 = vmul.f32 %v576, %v575
    %v578 = vmul.f32 0.5, %v577
    %v579 = vsub.f32 1.5, %v578
    %v580 = vmul.f32 %v575, %v579
    %vm581 = vweird.f32 %v550
    %vm582 = vweird.f32 %v575
    %vm583 = vmor %vm581, %vm582
    %v584 = vsel %vm583, %v575, %v580
    %v585 = vrsqrt.pop %v551
    %v586 = vmul.f32 %v585, %v551
    %v587 = vmul.f32 %v586, %v585
    %v588 = vmul.f32 0.5, %v587
    %v589 = vsub.f32 1.5, %v588
    %v590 = vmul.f32 %v585, %v589
    %vm591 = vweird.f32 %v551
    %vm592 = vweird.f32 %v585
    %vm593 = vmor %vm591, %vm592
    %v594 = vsel %vm593, %v585, %v590
    %v595 = vrsqrt.pop %v552
    %v596 = vmul.f32 %v595, %v552
    %v597 = vmul.f32 %v596, %v595
    %v598 = vmul.f32 0.5, %v597
    %v599 = vsub.f32 1.5, %v598
    %v600 = vmul.f32 %v595, %v599
    %vm601 = vweird.f32 %v552
    %vm602 = vweird.f32 %v595
    %vm603 = vmor %vm601, %vm602
    %v604 = vsel %vm603, %v595, %v600
    %v605 = vrsqrt.pop %v553
    %v606 = vmul.f32 %v605, %v553
    %v607 = vmul.f32 %v606, %v605
    %v608 = vmul.f32 0.5, %v607
    %v609 = vsub.f32 1.5, %v608
    %v610 = vmul.f32 %v605, %v609
    %vm611 = vweird.f32 %v553
    %vm612 = vweird.f32 %v605
    %vm613 = vmor %vm611, %vm612
    %v614 = vsel %vm613, %v605, %v610
    %v615 = vrsqrt.pop %v554
    %v616 = vmul.f32 %v615, %v554
    %v617 = vmul.f32 %v616, %v615
    %v618 = vmul.f32 0.5, %v617
    %v619 = vsub.f32 1.5, %v618
    %v620 = vmul.f32 %v615, %v619
    %vm621 = vweird.f32 %v554
    %vm622 = vweird.f32 %v615
    %vm623 = vmor %vm621, %vm622
    %v624 = vsel %vm623, %v615, %v620
    %v625 = vmul.f32 %v118, %v564
    %v626 = vmul.f32 %v118, %v574
    %v627 = vmul.f32 %v118, %v584
    %v628 = vmul.f32 %v118, %v594
    %v629 = vmul.f32 %v118, %v604
    %v630 = vmul.f32 %v118, %v614
    %v631 = vmul.f32 %v118, %v624
    %v639 = vperm.slane %v625, 0
    %v640 = vperm.slane %v626, 0
    %v641 = vperm.slane %v627, 0
    %v642 = vperm.slane %v628, 0
    %v643 = vperm.slane %v629, 0
    %v644 = vperm.slane %v630, 0
    %v645 = vperm.slane %v631, 0
    %v653 = vmul.f32 %v282, %v639
    %v654 = vmul.f32 %v283, %v639
    %v655 = vmul.f32 %v284, %v639
    %v656 = vmul.f32 %v285, %v639
    %v657 = vmul.f32 %v286, %v639
    %v658 = vmul.f32 %v287, %v639
    %v659 = vmul.f32 %v288, %v639
    %v660 = vmul.f32 %v289, %v639
    %v661 = vmul.f32 %v290, %v640
    %v662 = vmul.f32 %v291, %v640
    %v663 = vmul.f32 %v292, %v640
    %v664 = vmul.f32 %v293, %v640
    %v665 = vmul.f32 %v294, %v640
    %v666 = vmul.f32 %v295, %v640
    %v667 = vmul.f32 %v296, %v640
    %v668 = vmul.f32 %v297, %v640
    %v669 = vmul.f32 %v298, %v641
    %v670 = vmul.f32 %v299, %v641
    %v671 = vmul.f32 %v300, %v641
    %v672 = vmul.f32 %v301, %v641
    %v673 = vmul.f32 %v302, %v641
    %v674 = vmul.f32 %v303, %v641
    %v675 = vmul.f32 %v304, %v641
    %v676 = vmul.f32 %v305, %v641
    %v677 = vmul.f32 %v306, %v642
    %v678 = vmul.f32 %v307, %v642
    %v679 = vmul.f32 %v308, %v642
    %v680 = vmul.f32 %v309, %v642
    %v681 = vmul.f32 %v310, %v642
    %v682 = vmul.f32 %v311, %v642
    %v683 = vmul.f32 %v312, %v642
    %v684 = vmul.f32 %v313, %v642
    %v685 = vmul.f32 %v314, %v643
    %v686 = vmul.f32 %v315, %v643
    %v687 = vmul.f32 %v316, %v643
    %v688 = vmul.f32 %v317, %v643
    %v689 = vmul.f32 %v318, %v643
    %v690 = vmul.f32 %v319, %v643
    %v691 = vmul.f32 %v320, %v643
    %v692 = vmul.f32 %v321, %v643
    %v693 = vmul.f32 %v322, %v644
    %v694 = vmul.f32 %v323, %v644
    %v695 = vmul.f32 %v324, %v644
    %v696 = vmul.f32 %v325, %v644
    %v697 = vmul.f32 %v326, %v644
    %v698 = vmul.f32 %v327, %v644
    %v699 = vmul.f32 %v328, %v644
    %v700 = vmul.f32 %v329, %v644
    %v701 = vmul.f32 %v330, %v645
    %v702 = vmul.f32 %v331, %v645
    %v703 = vmul.f32 %v332, %v645
    %v704 = vmul.f32 %v333, %v645
    %v705 = vmul.f32 %v334, %v645
    %v706 = vmul.f32 %v335, %v645
    %v707 = vmul.f32 %v336, %v645
    %v708 = vmul.f32 %v337, %v645
    %v710 = vperm.slane %v119, 0
    %v712 = vadd.f32 %v653, %v710
    %v713 = vadd.f32 %v654, %v710
    %v714 = vadd.f32 %v655, %v710
    %v715 = vadd.f32 %v656, %v710
    %v716 = vadd.f32 %v657, %v710
    %v717 = vadd.f32 %v658, %v710
    %v718 = vadd.f32 %v659, %v710
    %v719 = vadd.f32 %v660, %v710
    %v720 = vadd.f32 %v661, %v710
    %v721 = vadd.f32 %v662, %v710
    %v722 = vadd.f32 %v663, %v710
    %v723 = vadd.f32 %v664, %v710
    %v724 = vadd.f32 %v665, %v710
    %v725 = vadd.f32 %v666, %v710
    %v726 = vadd.f32 %v667, %v710
    %v727 = vadd.f32 %v668, %v710
    %v728 = vadd.f32 %v669, %v710
    %v729 = vadd.f32 %v670, %v710
    %v730 = vadd.f32 %v671, %v710
    %v731 = vadd.f32 %v672, %v710
    %v732 = vadd.f32 %v673, %v710
    %v733 = vadd.f32 %v674, %v710
    %v734 = vadd.f32 %v675, %v710
    %v735 = vadd.f32 %v676, %v710
    %v736 = vadd.f32 %v677, %v710
    %v737 = vadd.f32 %v678, %v710
    %v738 = vadd.f32 %v679, %v710
    %v739 = vadd.f32 %v680, %v710
    %v740 = vadd.f32 %v681, %v710
    %v741 = vadd.f32 %v682, %v710
    %v742 = vadd.f32 %v683, %v710
    %v743 = vadd.f32 %v684, %v710
    %v744 = vadd.f32 %v685, %v710
    %v745 = vadd.f32 %v686, %v710
    %v746 = vadd.f32 %v687, %v710
    %v747 = vadd.f32 %v688, %v710
    %v748 = vadd.f32 %v689, %v710
    %v749 = vadd.f32 %v690, %v710
    %v750 = vadd.f32 %v691, %v710
    %v751 = vadd.f32 %v692, %v710
    %v752 = vadd.f32 %v693, %v710
    %v753 = vadd.f32 %v694, %v710
    %v754 = vadd.f32 %v695, %v710
    %v755 = vadd.f32 %v696, %v710
    %v756 = vadd.f32 %v697, %v710
    %v757 = vadd.f32 %v698, %v710
    %v758 = vadd.f32 %v699, %v710
    %v759 = vadd.f32 %v700, %v710
    %v760 = vadd.f32 %v701, %v710
    %v761 = vadd.f32 %v702, %v710
    %v762 = vadd.f32 %v703, %v710
    %v763 = vadd.f32 %v704, %v710
    %v764 = vadd.f32 %v705, %v710
    %v765 = vadd.f32 %v706, %v710
    %v766 = vadd.f32 %v707, %v710
    %v767 = vadd.f32 %v708, %v710
    %v768 = vld [vmem:[%s7] sm:$0xf]
    %v769 = vld [vmem:[%s7 + $0x4] sm:$0xf]
    %v770 = vld [vmem:[%s8] sm:$0x1]
    %v771 = vld [vmem:[%s9] sm:$0x1]
    %v772 = vpack.c.bf16 %v713, %v712
    %v773 = vpack.c.bf16 %v715, %v714
    %v774 = vpack.c.bf16 %v717, %v716
    %v775 = vpack.c.bf16 %v719, %v718
    %v776 = vpack.c.bf16 %v721, %v720
    %v777 = vpack.c.bf16 %v723, %v722
    %v778 = vpack.c.bf16 %v725, %v724
    %v779 = vpack.c.bf16 %v727, %v726
    %v780 = vpack.c.bf16 %v729, %v728
    %v781 = vpack.c.bf16 %v731, %v730
    %v782 = vpack.c.bf16 %v733, %v732
    %v783 = vpack.c.bf16 %v735, %v734
    %v784 = vpack.c.bf16 %v737, %v736
    %v785 = vpack.c.bf16 %v739, %v738
    %v786 = vpack.c.bf16 %v741, %v740
    %v787 = vpack.c.bf16 %v743, %v742
    %v788 = vpack.c.bf16 %v745, %v744
    %v789 = vpack.c.bf16 %v747, %v746
    %v790 = vpack.c.bf16 %v749, %v748
    %v791 = vpack.c.bf16 %v751, %v750
    %v792 = vpack.c.bf16 %v753, %v752
    %v793 = vpack.c.bf16 %v755, %v754
    %v794 = vpack.c.bf16 %v757, %v756
    %v795 = vpack.c.bf16 %v759, %v758
    %v796 = vpack.c.bf16 %v761, %v760
    %v797 = vpack.c.bf16 %v763, %v762
    %v798 = vpack.c.bf16 %v765, %v764
    %v799 = vpack.c.bf16 %v767, %v766
    %v802 = vunpack.c.l.b16 %v768
    %v803 = vunpack.c.l.b16 %v769
    %v804 = vpack.c.b16 %v803, %v802
    %v807 = vsel %vm120, %v772, 0
    %v810 = vsel %vm120, %v773, 0
    %v813 = vsel %vm120, %v774, 0
    %v816 = vsel %vm120, %v775, 0
    %v819 = vsel %vm120, %v776, 0
    %v822 = vsel %vm120, %v777, 0
    %v825 = vsel %vm120, %v778, 0
    %v828 = vsel %vm120, %v779, 0
    %v831 = vsel %vm120, %v780, 0
    %v834 = vsel %vm120, %v781, 0
    %v837 = vsel %vm120, %v782, 0
    %v840 = vsel %vm120, %v783, 0
    %v843 = vsel %vm120, %v784, 0
    %v846 = vsel %vm120, %v785, 0
    %v849 = vsel %vm120, %v786, 0
    %v852 = vsel %vm120, %v787, 0
    %v855 = vsel %vm120, %v788, 0
    %v858 = vsel %vm120, %v789, 0
    %v861 = vsel %vm120, %v790, 0
    %v864 = vsel %vm120, %v791, 0
    %v867 = vsel %vm120, %v792, 0
    %v870 = vsel %vm120, %v793, 0
    %v873 = vsel %vm120, %v794, 0
    %v876 = vsel %vm120, %v795, 0
    %v879 = vsel %vm120, %v796, 0
    %v882 = vsel %vm120, %v797, 0
    %v885 = vsel %vm120, %v798, 0
    %v888 = vsel %vm120, %v799, 0
    %890 = vmatpush.bf16.msra.mxu0 0
    %891 = vmatpush.bf16.msra.mxu0 0
    %892 = vmatpush.bf16.msra.mxu0 0
    %893 = vmatpush.bf16.msra.mxu0 0
    %894 = vmatpush.bf16.msra.mxu0 0
    %895 = vmatpush.bf16.msra.mxu0 0
    %896 = vmatpush.bf16.msra.mxu0 0
    %897 = vmatpush.bf16.msra.mxu0 %v804
    %898 = vmatmul.bf16.gmra.mxu0 %v807
    %v899 = vpop.f32.mrf.mxu0
    %v900 = vadd.f32 0.0, %v899
    %v901 = vpop.f32.mrf.mxu0
    %v902 = vadd.f32 0.0, %v901
    %903 = vmatmul.bf16.gmra.mxu0 %v810
    %v904 = vpop.f32.mrf.mxu0
    %v905 = vadd.f32 0.0, %v904
    %v906 = vpop.f32.mrf.mxu0
    %v907 = vadd.f32 0.0, %v906
    %908 = vmatmul.bf16.gmra.mxu0 %v813
    %v909 = vpop.f32.mrf.mxu0
    %v910 = vadd.f32 0.0, %v909
    %v911 = vpop.f32.mrf.mxu0
    %v912 = vadd.f32 0.0, %v911
    %913 = vmatmul.bf16.gmra.mxu0 %v816
    %v914 = vpop.f32.mrf.mxu0
    %v915 = vadd.f32 0.0, %v914
    %v916 = vpop.f32.mrf.mxu0
    %v917 = vadd.f32 0.0, %v916
    %918 = vmatmul.bf16.gmra.mxu0 %v819
    %v919 = vpop.f32.mrf.mxu0
    %v920 = vadd.f32 0.0, %v919
    %v921 = vpop.f32.mrf.mxu0
    %v922 = vadd.f32 0.0, %v921
    %923 = vmatmul.bf16.gmra.mxu0 %v822
    %v924 = vpop.f32.mrf.mxu0
    %v925 = vadd.f32 0.0, %v924
    %v926 = vpop.f32.mrf.mxu0
    %v927 = vadd.f32 0.0, %v926
    %928 = vmatmul.bf16.gmra.mxu0 %v825
    %v929 = vpop.f32.mrf.mxu0
    %v930 = vadd.f32 0.0, %v929
    %v931 = vpop.f32.mrf.mxu0
    %v932 = vadd.f32 0.0, %v931
    %933 = vmatmul.bf16.gmra.mxu0 %v828
    %v934 = vpop.f32.mrf.mxu0
    %v935 = vadd.f32 0.0, %v934
    %v936 = vpop.f32.mrf.mxu0
    %v937 = vadd.f32 0.0, %v936
    %938 = vmatmul.bf16.gmra.mxu0 %v831
    %v939 = vpop.f32.mrf.mxu0
    %v940 = vadd.f32 0.0, %v939
    %v941 = vpop.f32.mrf.mxu0
    %v942 = vadd.f32 0.0, %v941
    %943 = vmatmul.bf16.gmra.mxu0 %v834
    %v944 = vpop.f32.mrf.mxu0
    %v945 = vadd.f32 0.0, %v944
    %v946 = vpop.f32.mrf.mxu0
    %v947 = vadd.f32 0.0, %v946
    %948 = vmatmul.bf16.gmra.mxu0 %v837
    %v949 = vpop.f32.mrf.mxu0
    %v950 = vadd.f32 0.0, %v949
    %v951 = vpop.f32.mrf.mxu0
    %v952 = vadd.f32 0.0, %v951
    %953 = vmatmul.bf16.gmra.mxu0 %v840
    %v954 = vpop.f32.mrf.mxu0
    %v955 = vadd.f32 0.0, %v954
    %v956 = vpop.f32.mrf.mxu0
    %v957 = vadd.f32 0.0, %v956
    %958 = vmatmul.bf16.gmra.mxu0 %v843
    %v959 = vpop.f32.mrf.mxu0
    %v960 = vadd.f32 0.0, %v959
    %v961 = vpop.f32.mrf.mxu0
    %v962 = vadd.f32 0.0, %v961
    %963 = vmatmul.bf16.gmra.mxu0 %v846
    %v964 = vpop.f32.mrf.mxu0
    %v965 = vadd.f32 0.0, %v964
    %v966 = vpop.f32.mrf.mxu0
    %v967 = vadd.f32 0.0, %v966
    %968 = vmatmul.bf16.gmra.mxu0 %v849
    %v969 = vpop.f32.mrf.mxu0
    %v970 = vadd.f32 0.0, %v969
    %v971 = vpop.f32.mrf.mxu0
    %v972 = vadd.f32 0.0, %v971
    %973 = vmatmul.bf16.gmra.mxu0 %v852
    %v974 = vpop.f32.mrf.mxu0
    %v975 = vadd.f32 0.0, %v974
    %v976 = vpop.f32.mrf.mxu0
    %v977 = vadd.f32 0.0, %v976
    %978 = vmatmul.bf16.gmra.mxu0 %v855
    %v979 = vpop.f32.mrf.mxu0
    %v980 = vadd.f32 0.0, %v979
    %v981 = vpop.f32.mrf.mxu0
    %v982 = vadd.f32 0.0, %v981
    %983 = vmatmul.bf16.gmra.mxu0 %v858
    %v984 = vpop.f32.mrf.mxu0
    %v985 = vadd.f32 0.0, %v984
    %v986 = vpop.f32.mrf.mxu0
    %v987 = vadd.f32 0.0, %v986
    %988 = vmatmul.bf16.gmra.mxu0 %v861
    %v989 = vpop.f32.mrf.mxu0
    %v990 = vadd.f32 0.0, %v989
    %v991 = vpop.f32.mrf.mxu0
    %v992 = vadd.f32 0.0, %v991
    %993 = vmatmul.bf16.gmra.mxu0 %v864
    %v994 = vpop.f32.mrf.mxu0
    %v995 = vadd.f32 0.0, %v994
    %v996 = vpop.f32.mrf.mxu0
    %v997 = vadd.f32 0.0, %v996
    %998 = vmatmul.bf16.gmra.mxu0 %v867
    %v999 = vpop.f32.mrf.mxu0
    %v1000 = vadd.f32 0.0, %v999
    %v1001 = vpop.f32.mrf.mxu0
    %v1002 = vadd.f32 0.0, %v1001
    %1003 = vmatmul.bf16.gmra.mxu0 %v870
    %v1004 = vpop.f32.mrf.mxu0
    %v1005 = vadd.f32 0.0, %v1004
    %v1006 = vpop.f32.mrf.mxu0
    %v1007 = vadd.f32 0.0, %v1006
    %1008 = vmatmul.bf16.gmra.mxu0 %v873
    %v1009 = vpop.f32.mrf.mxu0
    %v1010 = vadd.f32 0.0, %v1009
    %v1011 = vpop.f32.mrf.mxu0
    %v1012 = vadd.f32 0.0, %v1011
    %1013 = vmatmul.bf16.gmra.mxu0 %v876
    %v1014 = vpop.f32.mrf.mxu0
    %v1015 = vadd.f32 0.0, %v1014
    %v1016 = vpop.f32.mrf.mxu0
    %v1017 = vadd.f32 0.0, %v1016
    %1018 = vmatmul.bf16.gmra.mxu0 %v879
    %v1019 = vpop.f32.mrf.mxu0
    %v1020 = vadd.f32 0.0, %v1019
    %v1021 = vpop.f32.mrf.mxu0
    %v1022 = vadd.f32 0.0, %v1021
    %1023 = vmatmul.bf16.gmra.mxu0 %v882
    %v1024 = vpop.f32.mrf.mxu0
    %v1025 = vadd.f32 0.0, %v1024
    %v1026 = vpop.f32.mrf.mxu0
    %v1027 = vadd.f32 0.0, %v1026
    %1028 = vmatmul.bf16.gmra.mxu0 %v885
    %v1029 = vpop.f32.mrf.mxu0
    %v1030 = vadd.f32 0.0, %v1029
    %v1031 = vpop.f32.mrf.mxu0
    %v1032 = vadd.f32 0.0, %v1031
    %1033 = vmatmul.bf16.gmra.mxu0 %v888
    %v1034 = vpop.f32.mrf.mxu0
    %v1035 = vadd.f32 0.0, %v1034
    %v1036 = vpop.f32.mrf.mxu0
    %v1037 = vadd.f32 0.0, %v1036
    %1038 = vdwg.mxu0
    %vm1039 = vcmask 261120
    %v1040 = vsel %vm1039, %v900, 0.0
    %v1041 = vsel %vm1039, %v902, 0.0
    %v1042 = vadd.f32 %v1040, %v1041
    %v1043 = vsel %vm1039, %v905, 0.0
    %v1044 = vadd.f32 %v1042, %v1043
    %v1045 = vsel %vm1039, %v907, 0.0
    %v1046 = vadd.f32 %v1044, %v1045
    %v1047 = vsel %vm1039, %v910, 0.0
    %v1048 = vadd.f32 %v1046, %v1047
    %v1049 = vsel %vm1039, %v912, 0.0
    %v1050 = vadd.f32 %v1048, %v1049
    %v1051 = vsel %vm1039, %v915, 0.0
    %v1052 = vadd.f32 %v1050, %v1051
    %v1053 = vsel %vm1039, %v917, 0.0
    %v1054 = vadd.f32 %v1052, %v1053
    %v1055 = vrot.slane %v1054, 4
    %v1056 = vadd.f32 %v1054, %v1055
    %v1057 = vrot.slane %v1056, 2
    %v1058 = vadd.f32 %v1056, %v1057
    %v1059 = vrot.slane %v1058, 1
    %v1060 = vadd.f32 %v1058, %v1059
    %v1061 = vsel %vm1039, %v920, 0.0
    %v1062 = vsel %vm1039, %v922, 0.0
    %v1063 = vadd.f32 %v1061, %v1062
    %v1064 = vsel %vm1039, %v925, 0.0
    %v1065 = vadd.f32 %v1063, %v1064
    %v1066 = vsel %vm1039, %v927, 0.0
    %v1067 = vadd.f32 %v1065, %v1066
    %v1068 = vsel %vm1039, %v930, 0.0
    %v1069 = vadd.f32 %v1067, %v1068
    %v1070 = vsel %vm1039, %v932, 0.0
    %v1071 = vadd.f32 %v1069, %v1070
    %v1072 = vsel %vm1039, %v935, 0.0
    %v1073 = vadd.f32 %v1071, %v1072
    %v1074 = vsel %vm1039, %v937, 0.0
    %v1075 = vadd.f32 %v1073, %v1074
    %v1076 = vrot.slane %v1075, 4
    %v1077 = vadd.f32 %v1075, %v1076
    %v1078 = vrot.slane %v1077, 2
    %v1079 = vadd.f32 %v1077, %v1078
    %v1080 = vrot.slane %v1079, 1
    %v1081 = vadd.f32 %v1079, %v1080
    %v1082 = vsel %vm1039, %v940, 0.0
    %v1083 = vsel %vm1039, %v942, 0.0
    %v1084 = vadd.f32 %v1082, %v1083
    %v1085 = vsel %vm1039, %v945, 0.0
    %v1086 = vadd.f32 %v1084, %v1085
    %v1087 = vsel %vm1039, %v947, 0.0
    %v1088 = vadd.f32 %v1086, %v1087
    %v1089 = vsel %vm1039, %v950, 0.0
    %v1090 = vadd.f32 %v1088, %v1089
    %v1091 = vsel %vm1039, %v952, 0.0
    %v1092 = vadd.f32 %v1090, %v1091
    %v1093 = vsel %vm1039, %v955, 0.0
    %v1094 = vadd.f32 %v1092, %v1093
    %v1095 = vsel %vm1039, %v957, 0.0
    %v1096 = vadd.f32 %v1094, %v1095
    %v1097 = vrot.slane %v1096, 4
    %v1098 = vadd.f32 %v1096, %v1097
    %v1099 = vrot.slane %v1098, 2
    %v1100 = vadd.f32 %v1098, %v1099
    %v1101 = vrot.slane %v1100, 1
    %v1102 = vadd.f32 %v1100, %v1101
    %v1103 = vsel %vm1039, %v960, 0.0
    %v1104 = vsel %vm1039, %v962, 0.0
    %v1105 = vadd.f32 %v1103, %v1104
    %v1106 = vsel %vm1039, %v965, 0.0
    %v1107 = vadd.f32 %v1105, %v1106
    %v1108 = vsel %vm1039, %v967, 0.0
    %v1109 = vadd.f32 %v1107, %v1108
    %v1110 = vsel %vm1039, %v970, 0.0
    %v1111 = vadd.f32 %v1109, %v1110
    %v1112 = vsel %vm1039, %v972, 0.0
    %v1113 = vadd.f32 %v1111, %v1112
    %v1114 = vsel %vm1039, %v975, 0.0
    %v1115 = vadd.f32 %v1113, %v1114
    %v1116 = vsel %vm1039, %v977, 0.0
    %v1117 = vadd.f32 %v1115, %v1116
    %v1118 = vrot.slane %v1117, 4
    %v1119 = vadd.f32 %v1117, %v1118
    %v1120 = vrot.slane %v1119, 2
    %v1121 = vadd.f32 %v1119, %v1120
    %v1122 = vrot.slane %v1121, 1
    %v1123 = vadd.f32 %v1121, %v1122
    %v1124 = vsel %vm1039, %v980, 0.0
    %v1125 = vsel %vm1039, %v982, 0.0
    %v1126 = vadd.f32 %v1124, %v1125
    %v1127 = vsel %vm1039, %v985, 0.0
    %v1128 = vadd.f32 %v1126, %v1127
    %v1129 = vsel %vm1039, %v987, 0.0
    %v1130 = vadd.f32 %v1128, %v1129
    %v1131 = vsel %vm1039, %v990, 0.0
    %v1132 = vadd.f32 %v1130, %v1131
    %v1133 = vsel %vm1039, %v992, 0.0
    %v1134 = vadd.f32 %v1132, %v1133
    %v1135 = vsel %vm1039, %v995, 0.0
    %v1136 = vadd.f32 %v1134, %v1135
    %v1137 = vsel %vm1039, %v997, 0.0
    %v1138 = vadd.f32 %v1136, %v1137
    %v1139 = vrot.slane %v1138, 4
    %v1140 = vadd.f32 %v1138, %v1139
    %v1141 = vrot.slane %v1140, 2
    %v1142 = vadd.f32 %v1140, %v1141
    %v1143 = vrot.slane %v1142, 1
    %v1144 = vadd.f32 %v1142, %v1143
    %v1145 = vsel %vm1039, %v1000, 0.0
    %v1146 = vsel %vm1039, %v1002, 0.0
    %v1147 = vadd.f32 %v1145, %v1146
    %v1148 = vsel %vm1039, %v1005, 0.0
    %v1149 = vadd.f32 %v1147, %v1148
    %v1150 = vsel %vm1039, %v1007, 0.0
    %v1151 = vadd.f32 %v1149, %v1150
    %v1152 = vsel %vm1039, %v1010, 0.0
    %v1153 = vadd.f32 %v1151, %v1152
    %v1154 = vsel %vm1039, %v1012, 0.0
    %v1155 = vadd.f32 %v1153, %v1154
    %v1156 = vsel %vm1039, %v1015, 0.0
    %v1157 = vadd.f32 %v1155, %v1156
    %v1158 = vsel %vm1039, %v1017, 0.0
    %v1159 = vadd.f32 %v1157, %v1158
    %v1160 = vrot.slane %v1159, 4
    %v1161 = vadd.f32 %v1159, %v1160
    %v1162 = vrot.slane %v1161, 2
    %v1163 = vadd.f32 %v1161, %v1162
    %v1164 = vrot.slane %v1163, 1
    %v1165 = vadd.f32 %v1163, %v1164
    %v1166 = vsel %vm1039, %v1020, 0.0
    %v1167 = vsel %vm1039, %v1022, 0.0
    %v1168 = vadd.f32 %v1166, %v1167
    %v1169 = vsel %vm1039, %v1025, 0.0
    %v1170 = vadd.f32 %v1168, %v1169
    %v1171 = vsel %vm1039, %v1027, 0.0
    %v1172 = vadd.f32 %v1170, %v1171
    %v1173 = vsel %vm1039, %v1030, 0.0
    %v1174 = vadd.f32 %v1172, %v1173
    %v1175 = vsel %vm1039, %v1032, 0.0
    %v1176 = vadd.f32 %v1174, %v1175
    %v1177 = vsel %vm1039, %v1035, 0.0
    %v1178 = vadd.f32 %v1176, %v1177
    %v1179 = vsel %vm1039, %v1037, 0.0
    %v1180 = vadd.f32 %v1178, %v1179
    %v1181 = vrot.slane %v1180, 4
    %v1182 = vadd.f32 %v1180, %v1181
    %v1183 = vrot.slane %v1182, 2
    %v1184 = vadd.f32 %v1182, %v1183
    %v1185 = vrot.slane %v1184, 1
    %v1186 = vadd.f32 %v1184, %v1185
    %v1187 = vmul.f32 %v1060, %v274
    %v1188 = vmul.f32 %v1081, %v274
    %v1189 = vmul.f32 %v1102, %v274
    %v1190 = vmul.f32 %v1123, %v274
    %v1191 = vmul.f32 %v1144, %v274
    %v1192 = vmul.f32 %v1165, %v274
    %v1193 = vmul.f32 %v1186, %v274
    %v1194 = vsub.f32 %v900, %v1187
    %v1195 = vsub.f32 %v902, %v1187
    %v1196 = vsub.f32 %v905, %v1187
    %v1197 = vsub.f32 %v907, %v1187
    %v1198 = vsub.f32 %v910, %v1187
    %v1199 = vsub.f32 %v912, %v1187
    %v1200 = vsub.f32 %v915, %v1187
    %v1201 = vsub.f32 %v917, %v1187
    %v1202 = vsub.f32 %v920, %v1188
    %v1203 = vsub.f32 %v922, %v1188
    %v1204 = vsub.f32 %v925, %v1188
    %v1205 = vsub.f32 %v927, %v1188
    %v1206 = vsub.f32 %v930, %v1188
    %v1207 = vsub.f32 %v932, %v1188
    %v1208 = vsub.f32 %v935, %v1188
    %v1209 = vsub.f32 %v937, %v1188
    %v1210 = vsub.f32 %v940, %v1189
    %v1211 = vsub.f32 %v942, %v1189
    %v1212 = vsub.f32 %v945, %v1189
    %v1213 = vsub.f32 %v947, %v1189
    %v1214 = vsub.f32 %v950, %v1189
    %v1215 = vsub.f32 %v952, %v1189
    %v1216 = vsub.f32 %v955, %v1189
    %v1217 = vsub.f32 %v957, %v1189
    %v1218 = vsub.f32 %v960, %v1190
    %v1219 = vsub.f32 %v962, %v1190
    %v1220 = vsub.f32 %v965, %v1190
    %v1221 = vsub.f32 %v967, %v1190
    %v1222 = vsub.f32 %v970, %v1190
    %v1223 = vsub.f32 %v972, %v1190
    %v1224 = vsub.f32 %v975, %v1190
    %v1225 = vsub.f32 %v977, %v1190
    %v1226 = vsub.f32 %v980, %v1191
    %v1227 = vsub.f32 %v982, %v1191
    %v1228 = vsub.f32 %v985, %v1191
    %v1229 = vsub.f32 %v987, %v1191
    %v1230 = vsub.f32 %v990, %v1191
    %v1231 = vsub.f32 %v992, %v1191
    %v1232 = vsub.f32 %v995, %v1191
    %v1233 = vsub.f32 %v997, %v1191
    %v1234 = vsub.f32 %v1000, %v1192
    %v1235 = vsub.f32 %v1002, %v1192
    %v1236 = vsub.f32 %v1005, %v1192
    %v1237 = vsub.f32 %v1007, %v1192
    %v1238 = vsub.f32 %v1010, %v1192
    %v1239 = vsub.f32 %v1012, %v1192
    %v1240 = vsub.f32 %v1015, %v1192
    %v1241 = vsub.f32 %v1017, %v1192
    %v1242 = vsub.f32 %v1020, %v1193
    %v1243 = vsub.f32 %v1022, %v1193
    %v1244 = vsub.f32 %v1025, %v1193
    %v1245 = vsub.f32 %v1027, %v1193
    %v1246 = vsub.f32 %v1030, %v1193
    %v1247 = vsub.f32 %v1032, %v1193
    %v1248 = vsub.f32 %v1035, %v1193
    %v1249 = vsub.f32 %v1037, %v1193
    %v1250 = vmul.f32 %v1194, %v1194
    %v1251 = vmul.f32 %v1195, %v1195
    %v1252 = vmul.f32 %v1196, %v1196
    %v1253 = vmul.f32 %v1197, %v1197
    %v1254 = vmul.f32 %v1198, %v1198
    %v1255 = vmul.f32 %v1199, %v1199
    %v1256 = vmul.f32 %v1200, %v1200
    %v1257 = vmul.f32 %v1201, %v1201
    %v1258 = vmul.f32 %v1202, %v1202
    %v1259 = vmul.f32 %v1203, %v1203
    %v1260 = vmul.f32 %v1204, %v1204
    %v1261 = vmul.f32 %v1205, %v1205
    %v1262 = vmul.f32 %v1206, %v1206
    %v1263 = vmul.f32 %v1207, %v1207
    %v1264 = vmul.f32 %v1208, %v1208
    %v1265 = vmul.f32 %v1209, %v1209
    %v1266 = vmul.f32 %v1210, %v1210
    %v1267 = vmul.f32 %v1211, %v1211
    %v1268 = vmul.f32 %v1212, %v1212
    %v1269 = vmul.f32 %v1213, %v1213
    %v1270 = vmul.f32 %v1214, %v1214
    %v1271 = vmul.f32 %v1215, %v1215
    %v1272 = vmul.f32 %v1216, %v1216
    %v1273 = vmul.f32 %v1217, %v1217
    %v1274 = vmul.f32 %v1218, %v1218
    %v1275 = vmul.f32 %v1219, %v1219
    %v1276 = vmul.f32 %v1220, %v1220
    %v1277 = vmul.f32 %v1221, %v1221
    %v1278 = vmul.f32 %v1222, %v1222
    %v1279 = vmul.f32 %v1223, %v1223
    %v1280 = vmul.f32 %v1224, %v1224
    %v1281 = vmul.f32 %v1225, %v1225
    %v1282 = vmul.f32 %v1226, %v1226
    %v1283 = vmul.f32 %v1227, %v1227
    %v1284 = vmul.f32 %v1228, %v1228
    %v1285 = vmul.f32 %v1229, %v1229
    %v1286 = vmul.f32 %v1230, %v1230
    %v1287 = vmul.f32 %v1231, %v1231
    %v1288 = vmul.f32 %v1232, %v1232
    %v1289 = vmul.f32 %v1233, %v1233
    %v1290 = vmul.f32 %v1234, %v1234
    %v1291 = vmul.f32 %v1235, %v1235
    %v1292 = vmul.f32 %v1236, %v1236
    %v1293 = vmul.f32 %v1237, %v1237
    %v1294 = vmul.f32 %v1238, %v1238
    %v1295 = vmul.f32 %v1239, %v1239
    %v1296 = vmul.f32 %v1240, %v1240
    %v1297 = vmul.f32 %v1241, %v1241
    %v1298 = vmul.f32 %v1242, %v1242
    %v1299 = vmul.f32 %v1243, %v1243
    %v1300 = vmul.f32 %v1244, %v1244
    %v1301 = vmul.f32 %v1245, %v1245
    %v1302 = vmul.f32 %v1246, %v1246
    %v1303 = vmul.f32 %v1247, %v1247
    %v1304 = vmul.f32 %v1248, %v1248
    %v1305 = vmul.f32 %v1249, %v1249
    %v1306 = vsel %vm1039, %v1250, 0.0
    %v1307 = vsel %vm1039, %v1251, 0.0
    %v1308 = vadd.f32 %v1306, %v1307
    %v1309 = vsel %vm1039, %v1252, 0.0
    %v1310 = vadd.f32 %v1308, %v1309
    %v1311 = vsel %vm1039, %v1253, 0.0
    %v1312 = vadd.f32 %v1310, %v1311
    %v1313 = vsel %vm1039, %v1254, 0.0
    %v1314 = vadd.f32 %v1312, %v1313
    %v1315 = vsel %vm1039, %v1255, 0.0
    %v1316 = vadd.f32 %v1314, %v1315
    %v1317 = vsel %vm1039, %v1256, 0.0
    %v1318 = vadd.f32 %v1316, %v1317
    %v1319 = vsel %vm1039, %v1257, 0.0
    %v1320 = vadd.f32 %v1318, %v1319
    %v1321 = vrot.slane %v1320, 4
    %v1322 = vadd.f32 %v1320, %v1321
    %v1323 = vrot.slane %v1322, 2
    %v1324 = vadd.f32 %v1322, %v1323
    %v1325 = vrot.slane %v1324, 1
    %v1326 = vadd.f32 %v1324, %v1325
    %v1327 = vsel %vm1039, %v1258, 0.0
    %v1328 = vsel %vm1039, %v1259, 0.0
    %v1329 = vadd.f32 %v1327, %v1328
    %v1330 = vsel %vm1039, %v1260, 0.0
    %v1331 = vadd.f32 %v1329, %v1330
    %v1332 = vsel %vm1039, %v1261, 0.0
    %v1333 = vadd.f32 %v1331, %v1332
    %v1334 = vsel %vm1039, %v1262, 0.0
    %v1335 = vadd.f32 %v1333, %v1334
    %v1336 = vsel %vm1039, %v1263, 0.0
    %v1337 = vadd.f32 %v1335, %v1336
    %v1338 = vsel %vm1039, %v1264, 0.0
    %v1339 = vadd.f32 %v1337, %v1338
    %v1340 = vsel %vm1039, %v1265, 0.0
    %v1341 = vadd.f32 %v1339, %v1340
    %v1342 = vrot.slane %v1341, 4
    %v1343 = vadd.f32 %v1341, %v1342
    %v1344 = vrot.slane %v1343, 2
    %v1345 = vadd.f32 %v1343, %v1344
    %v1346 = vrot.slane %v1345, 1
    %v1347 = vadd.f32 %v1345, %v1346
    %v1348 = vsel %vm1039, %v1266, 0.0
    %v1349 = vsel %vm1039, %v1267, 0.0
    %v1350 = vadd.f32 %v1348, %v1349
    %v1351 = vsel %vm1039, %v1268, 0.0
    %v1352 = vadd.f32 %v1350, %v1351
    %v1353 = vsel %vm1039, %v1269, 0.0
    %v1354 = vadd.f32 %v1352, %v1353
    %v1355 = vsel %vm1039, %v1270, 0.0
    %v1356 = vadd.f32 %v1354, %v1355
    %v1357 = vsel %vm1039, %v1271, 0.0
    %v1358 = vadd.f32 %v1356, %v1357
    %v1359 = vsel %vm1039, %v1272, 0.0
    %v1360 = vadd.f32 %v1358, %v1359
    %v1361 = vsel %vm1039, %v1273, 0.0
    %v1362 = vadd.f32 %v1360, %v1361
    %v1363 = vrot.slane %v1362, 4
    %v1364 = vadd.f32 %v1362, %v1363
    %v1365 = vrot.slane %v1364, 2
    %v1366 = vadd.f32 %v1364, %v1365
    %v1367 = vrot.slane %v1366, 1
    %v1368 = vadd.f32 %v1366, %v1367
    %v1369 = vsel %vm1039, %v1274, 0.0
    %v1370 = vsel %vm1039, %v1275, 0.0
    %v1371 = vadd.f32 %v1369, %v1370
    %v1372 = vsel %vm1039, %v1276, 0.0
    %v1373 = vadd.f32 %v1371, %v1372
    %v1374 = vsel %vm1039, %v1277, 0.0
    %v1375 = vadd.f32 %v1373, %v1374
    %v1376 = vsel %vm1039, %v1278, 0.0
    %v1377 = vadd.f32 %v1375, %v1376
    %v1378 = vsel %vm1039, %v1279, 0.0
    %v1379 = vadd.f32 %v1377, %v1378
    %v1380 = vsel %vm1039, %v1280, 0.0
    %v1381 = vadd.f32 %v1379, %v1380
    %v1382 = vsel %vm1039, %v1281, 0.0
    %v1383 = vadd.f32 %v1381, %v1382
    %v1384 = vrot.slane %v1383, 4
    %v1385 = vadd.f32 %v1383, %v1384
    %v1386 = vrot.slane %v1385, 2
    %v1387 = vadd.f32 %v1385, %v1386
    %v1388 = vrot.slane %v1387, 1
    %v1389 = vadd.f32 %v1387, %v1388
    %v1390 = vsel %vm1039, %v1282, 0.0
    %v1391 = vsel %vm1039, %v1283, 0.0
    %v1392 = vadd.f32 %v1390, %v1391
    %v1393 = vsel %vm1039, %v1284, 0.0
    %v1394 = vadd.f32 %v1392, %v1393
    %v1395 = vsel %vm1039, %v1285, 0.0
    %v1396 = vadd.f32 %v1394, %v1395
    %v1397 = vsel %vm1039, %v1286, 0.0
    %v1398 = vadd.f32 %v1396, %v1397
    %v1399 = vsel %vm1039, %v1287, 0.0
    %v1400 = vadd.f32 %v1398, %v1399
    %v1401 = vsel %vm1039, %v1288, 0.0
    %v1402 = vadd.f32 %v1400, %v1401
    %v1403 = vsel %vm1039, %v1289, 0.0
    %v1404 = vadd.f32 %v1402, %v1403
    %v1405 = vrot.slane %v1404, 4
    %v1406 = vadd.f32 %v1404, %v1405
    %v1407 = vrot.slane %v1406, 2
    %v1408 = vadd.f32 %v1406, %v1407
    %v1409 = vrot.slane %v1408, 1
    %v1410 = vadd.f32 %v1408, %v1409
    %v1411 = vsel %vm1039, %v1290, 0.0
    %v1412 = vsel %vm1039, %v1291, 0.0
    %v1413 = vadd.f32 %v1411, %v1412
    %v1414 = vsel %vm1039, %v1292, 0.0
    %v1415 = vadd.f32 %v1413, %v1414
    %v1416 = vsel %vm1039, %v1293, 0.0
    %v1417 = vadd.f32 %v1415, %v1416
    %v1418 = vsel %vm1039, %v1294, 0.0
    %v1419 = vadd.f32 %v1417, %v1418
    %v1420 = vsel %vm1039, %v1295, 0.0
    %v1421 = vadd.f32 %v1419, %v1420
    %v1422 = vsel %vm1039, %v1296, 0.0
    %v1423 = vadd.f32 %v1421, %v1422
    %v1424 = vsel %vm1039, %v1297, 0.0
    %v1425 = vadd.f32 %v1423, %v1424
    %v1426 = vrot.slane %v1425, 4
    %v1427 = vadd.f32 %v1425, %v1426
    %v1428 = vrot.slane %v1427, 2
    %v1429 = vadd.f32 %v1427, %v1428
    %v1430 = vrot.slane %v1429, 1
    %v1431 = vadd.f32 %v1429, %v1430
    %v1432 = vsel %vm1039, %v1298, 0.0
    %v1433 = vsel %vm1039, %v1299, 0.0
    %v1434 = vadd.f32 %v1432, %v1433
    %v1435 = vsel %vm1039, %v1300, 0.0
    %v1436 = vadd.f32 %v1434, %v1435
    %v1437 = vsel %vm1039, %v1301, 0.0
    %v1438 = vadd.f32 %v1436, %v1437
    %v1439 = vsel %vm1039, %v1302, 0.0
    %v1440 = vadd.f32 %v1438, %v1439
    %v1441 = vsel %vm1039, %v1303, 0.0
    %v1442 = vadd.f32 %v1440, %v1441
    %v1443 = vsel %vm1039, %v1304, 0.0
    %v1444 = vadd.f32 %v1442, %v1443
    %v1445 = vsel %vm1039, %v1305, 0.0
    %v1446 = vadd.f32 %v1444, %v1445
    %v1447 = vrot.slane %v1446, 4
    %v1448 = vadd.f32 %v1446, %v1447
    %v1449 = vrot.slane %v1448, 2
    %v1450 = vadd.f32 %v1448, %v1449
    %v1451 = vrot.slane %v1450, 1
    %v1452 = vadd.f32 %v1450, %v1451
    %v1453 = vmul.f32 %v1326, %v274
    %v1454 = vmul.f32 %v1347, %v274
    %v1455 = vmul.f32 %v1368, %v274
    %v1456 = vmul.f32 %v1389, %v274
    %v1457 = vmul.f32 %v1410, %v274
    %v1458 = vmul.f32 %v1431, %v274
    %v1459 = vmul.f32 %v1452, %v274
    %v1460 = vadd.f32 %v1453, 1e-06
    %v1461 = vadd.f32 %v1454, 1e-06
    %v1462 = vadd.f32 %v1455, 1e-06
    %v1463 = vadd.f32 %v1456, 1e-06
    %v1464 = vadd.f32 %v1457, 1e-06
    %v1465 = vadd.f32 %v1458, 1e-06
    %v1466 = vadd.f32 %v1459, 1e-06
    %v1467 = vrsqrt.pop %v1460
    %v1468 = vmul.f32 %v1467, %v1460
    %v1469 = vmul.f32 %v1468, %v1467
    %v1470 = vmul.f32 0.5, %v1469
    %v1471 = vsub.f32 1.5, %v1470
    %v1472 = vmul.f32 %v1467, %v1471
    %vm1473 = vweird.f32 %v1460
    %vm1474 = vweird.f32 %v1467
    %vm1475 = vmor %vm1473, %vm1474
    %v1476 = vsel %vm1475, %v1467, %v1472
    %v1477 = vrsqrt.pop %v1461
    %v1478 = vmul.f32 %v1477, %v1461
    %v1479 = vmul.f32 %v1478, %v1477
    %v1480 = vmul.f32 0.5, %v1479
    %v1481 = vsub.f32 1.5, %v1480
    %v1482 = vmul.f32 %v1477, %v1481
    %vm1483 = vweird.f32 %v1461
    %vm1484 = vweird.f32 %v1477
    %vm1485 = vmor %vm1483, %vm1484
    %v1486 = vsel %vm1485, %v1477, %v1482
    %v1487 = vrsqrt.pop %v1462
    %v1488 = vmul.f32 %v1487, %v1462
    %v1489 = vmul.f32 %v1488, %v1487
    %v1490 = vmul.f32 0.5, %v1489
    %v1491 = vsub.f32 1.5, %v1490
    %v1492 = vmul.f32 %v1487, %v1491
    %vm1493 = vweird.f32 %v1462
    %vm1494 = vweird.f32 %v1487
    %vm1495 = vmor %vm1493, %vm1494
    %v1496 = vsel %vm1495, %v1487, %v1492
    %v1497 = vrsqrt.pop %v1463
    %v1498 = vmul.f32 %v1497, %v1463
    %v1499 = vmul.f32 %v1498, %v1497
    %v1500 = vmul.f32 0.5, %v1499
    %v1501 = vsub.f32 1.5, %v1500
    %v1502 = vmul.f32 %v1497, %v1501
    %vm1503 = vweird.f32 %v1463
    %vm1504 = vweird.f32 %v1497
    %vm1505 = vmor %vm1503, %vm1504
    %v1506 = vsel %vm1505, %v1497, %v1502
    %v1507 = vrsqrt.pop %v1464
    %v1508 = vmul.f32 %v1507, %v1464
    %v1509 = vmul.f32 %v1508, %v1507
    %v1510 = vmul.f32 0.5, %v1509
    %v1511 = vsub.f32 1.5, %v1510
    %v1512 = vmul.f32 %v1507, %v1511
    %vm1513 = vweird.f32 %v1464
    %vm1514 = vweird.f32 %v1507
    %vm1515 = vmor %vm1513, %vm1514
    %v1516 = vsel %vm1515, %v1507, %v1512
    %v1517 = vrsqrt.pop %v1465
    %v1518 = vmul.f32 %v1517, %v1465
    %v1519 = vmul.f32 %v1518, %v1517
    %v1520 = vmul.f32 0.5, %v1519
    %v1521 = vsub.f32 1.5, %v1520
    %v1522 = vmul.f32 %v1517, %v1521
    %vm1523 = vweird.f32 %v1465
    %vm1524 = vweird.f32 %v1517
    %vm1525 = vmor %vm1523, %vm1524
    %v1526 = vsel %vm1525, %v1517, %v1522
    %v1527 = vrsqrt.pop %v1466
    %v1528 = vmul.f32 %v1527, %v1466
    %v1529 = vmul.f32 %v1528, %v1527
    %v1530 = vmul.f32 0.5, %v1529
    %v1531 = vsub.f32 1.5, %v1530
    %v1532 = vmul.f32 %v1527, %v1531
    %vm1533 = vweird.f32 %v1466
    %vm1534 = vweird.f32 %v1527
    %vm1535 = vmor %vm1533, %vm1534
    %v1536 = vsel %vm1535, %v1527, %v1532
    %v1537 = vmul.f32 %v770, %v1476
    %v1538 = vmul.f32 %v770, %v1486
    %v1539 = vmul.f32 %v770, %v1496
    %v1540 = vmul.f32 %v770, %v1506
    %v1541 = vmul.f32 %v770, %v1516
    %v1542 = vmul.f32 %v770, %v1526
    %v1543 = vmul.f32 %v770, %v1536
    %v1551 = vperm.slane %v1537, 0
    %v1552 = vperm.slane %v1538, 0
    %v1553 = vperm.slane %v1539, 0
    %v1554 = vperm.slane %v1540, 0
    %v1555 = vperm.slane %v1541, 0
    %v1556 = vperm.slane %v1542, 0
    %v1557 = vperm.slane %v1543, 0
    %v1565 = vmul.f32 %v1194, %v1551
    %v1566 = vmul.f32 %v1195, %v1551
    %v1567 = vmul.f32 %v1196, %v1551
    %v1568 = vmul.f32 %v1197, %v1551
    %v1569 = vmul.f32 %v1198, %v1551
    %v1570 = vmul.f32 %v1199, %v1551
    %v1571 = vmul.f32 %v1200, %v1551
    %v1572 = vmul.f32 %v1201, %v1551
    %v1573 = vmul.f32 %v1202, %v1552
    %v1574 = vmul.f32 %v1203, %v1552
    %v1575 = vmul.f32 %v1204, %v1552
    %v1576 = vmul.f32 %v1205, %v1552
    %v1577 = vmul.f32 %v1206, %v1552
    %v1578 = vmul.f32 %v1207, %v1552
    %v1579 = vmul.f32 %v1208, %v1552
    %v1580 = vmul.f32 %v1209, %v1552
    %v1581 = vmul.f32 %v1210, %v1553
    %v1582 = vmul.f32 %v1211, %v1553
    %v1583 = vmul.f32 %v1212, %v1553
    %v1584 = vmul.f32 %v1213, %v1553
    %v1585 = vmul.f32 %v1214, %v1553
    %v1586 = vmul.f32 %v1215, %v1553
    %v1587 = vmul.f32 %v1216, %v1553
    %v1588 = vmul.f32 %v1217, %v1553
    %v1589 = vmul.f32 %v1218, %v1554
    %v1590 = vmul.f32 %v1219, %v1554
    %v1591 = vmul.f32 %v1220, %v1554
    %v1592 = vmul.f32 %v1221, %v1554
    %v1593 = vmul.f32 %v1222, %v1554
    %v1594 = vmul.f32 %v1223, %v1554
    %v1595 = vmul.f32 %v1224, %v1554
    %v1596 = vmul.f32 %v1225, %v1554
    %v1597 = vmul.f32 %v1226, %v1555
    %v1598 = vmul.f32 %v1227, %v1555
    %v1599 = vmul.f32 %v1228, %v1555
    %v1600 = vmul.f32 %v1229, %v1555
    %v1601 = vmul.f32 %v1230, %v1555
    %v1602 = vmul.f32 %v1231, %v1555
    %v1603 = vmul.f32 %v1232, %v1555
    %v1604 = vmul.f32 %v1233, %v1555
    %v1605 = vmul.f32 %v1234, %v1556
    %v1606 = vmul.f32 %v1235, %v1556
    %v1607 = vmul.f32 %v1236, %v1556
    %v1608 = vmul.f32 %v1237, %v1556
    %v1609 = vmul.f32 %v1238, %v1556
    %v1610 = vmul.f32 %v1239, %v1556
    %v1611 = vmul.f32 %v1240, %v1556
    %v1612 = vmul.f32 %v1241, %v1556
    %v1613 = vmul.f32 %v1242, %v1557
    %v1614 = vmul.f32 %v1243, %v1557
    %v1615 = vmul.f32 %v1244, %v1557
    %v1616 = vmul.f32 %v1245, %v1557
    %v1617 = vmul.f32 %v1246, %v1557
    %v1618 = vmul.f32 %v1247, %v1557
    %v1619 = vmul.f32 %v1248, %v1557
    %v1620 = vmul.f32 %v1249, %v1557
    %v1622 = vperm.slane %v771, 0
    %v1624 = vadd.f32 %v1565, %v1622
    %v1625 = vadd.f32 %v1566, %v1622
    %v1626 = vadd.f32 %v1567, %v1622
    %v1627 = vadd.f32 %v1568, %v1622
    %v1628 = vadd.f32 %v1569, %v1622
    %v1629 = vadd.f32 %v1570, %v1622
    %v1630 = vadd.f32 %v1571, %v1622
    %v1631 = vadd.f32 %v1572, %v1622
    %v1632 = vadd.f32 %v1573, %v1622
    %v1633 = vadd.f32 %v1574, %v1622
    %v1634 = vadd.f32 %v1575, %v1622
    %v1635 = vadd.f32 %v1576, %v1622
    %v1636 = vadd.f32 %v1577, %v1622
    %v1637 = vadd.f32 %v1578, %v1622
    %v1638 = vadd.f32 %v1579, %v1622
    %v1639 = vadd.f32 %v1580, %v1622
    %v1640 = vadd.f32 %v1581, %v1622
    %v1641 = vadd.f32 %v1582, %v1622
    %v1642 = vadd.f32 %v1583, %v1622
    %v1643 = vadd.f32 %v1584, %v1622
    %v1644 = vadd.f32 %v1585, %v1622
    %v1645 = vadd.f32 %v1586, %v1622
    %v1646 = vadd.f32 %v1587, %v1622
    %v1647 = vadd.f32 %v1588, %v1622
    %v1648 = vadd.f32 %v1589, %v1622
    %v1649 = vadd.f32 %v1590, %v1622
    %v1650 = vadd.f32 %v1591, %v1622
    %v1651 = vadd.f32 %v1592, %v1622
    %v1652 = vadd.f32 %v1593, %v1622
    %v1653 = vadd.f32 %v1594, %v1622
    %v1654 = vadd.f32 %v1595, %v1622
    %v1655 = vadd.f32 %v1596, %v1622
    %v1656 = vadd.f32 %v1597, %v1622
    %v1657 = vadd.f32 %v1598, %v1622
    %v1658 = vadd.f32 %v1599, %v1622
    %v1659 = vadd.f32 %v1600, %v1622
    %v1660 = vadd.f32 %v1601, %v1622
    %v1661 = vadd.f32 %v1602, %v1622
    %v1662 = vadd.f32 %v1603, %v1622
    %v1663 = vadd.f32 %v1604, %v1622
    %v1664 = vadd.f32 %v1605, %v1622
    %v1665 = vadd.f32 %v1606, %v1622
    %v1666 = vadd.f32 %v1607, %v1622
    %v1667 = vadd.f32 %v1608, %v1622
    %v1668 = vadd.f32 %v1609, %v1622
    %v1669 = vadd.f32 %v1610, %v1622
    %v1670 = vadd.f32 %v1611, %v1622
    %v1671 = vadd.f32 %v1612, %v1622
    %v1672 = vadd.f32 %v1613, %v1622
    %v1673 = vadd.f32 %v1614, %v1622
    %v1674 = vadd.f32 %v1615, %v1622
    %v1675 = vadd.f32 %v1616, %v1622
    %v1676 = vadd.f32 %v1617, %v1622
    %v1677 = vadd.f32 %v1618, %v1622
    %v1678 = vadd.f32 %v1619, %v1622
    %v1679 = vadd.f32 %v1620, %v1622
    %v1680 = vmax.f32 %v1624, 0.0
    %v1681 = vmax.f32 %v1625, 0.0
    %v1682 = vmax.f32 %v1626, 0.0
    %v1683 = vmax.f32 %v1627, 0.0
    %v1684 = vmax.f32 %v1628, 0.0
    %v1685 = vmax.f32 %v1629, 0.0
    %v1686 = vmax.f32 %v1630, 0.0
    %v1687 = vmax.f32 %v1631, 0.0
    %v1688 = vmax.f32 %v1632, 0.0
    %v1689 = vmax.f32 %v1633, 0.0
    %v1690 = vmax.f32 %v1634, 0.0
    %v1691 = vmax.f32 %v1635, 0.0
    %v1692 = vmax.f32 %v1636, 0.0
    %v1693 = vmax.f32 %v1637, 0.0
    %v1694 = vmax.f32 %v1638, 0.0
    %v1695 = vmax.f32 %v1639, 0.0
    %v1696 = vmax.f32 %v1640, 0.0
    %v1697 = vmax.f32 %v1641, 0.0
    %v1698 = vmax.f32 %v1642, 0.0
    %v1699 = vmax.f32 %v1643, 0.0
    %v1700 = vmax.f32 %v1644, 0.0
    %v1701 = vmax.f32 %v1645, 0.0
    %v1702 = vmax.f32 %v1646, 0.0
    %v1703 = vmax.f32 %v1647, 0.0
    %v1704 = vmax.f32 %v1648, 0.0
    %v1705 = vmax.f32 %v1649, 0.0
    %v1706 = vmax.f32 %v1650, 0.0
    %v1707 = vmax.f32 %v1651, 0.0
    %v1708 = vmax.f32 %v1652, 0.0
    %v1709 = vmax.f32 %v1653, 0.0
    %v1710 = vmax.f32 %v1654, 0.0
    %v1711 = vmax.f32 %v1655, 0.0
    %v1712 = vmax.f32 %v1656, 0.0
    %v1713 = vmax.f32 %v1657, 0.0
    %v1714 = vmax.f32 %v1658, 0.0
    %v1715 = vmax.f32 %v1659, 0.0
    %v1716 = vmax.f32 %v1660, 0.0
    %v1717 = vmax.f32 %v1661, 0.0
    %v1718 = vmax.f32 %v1662, 0.0
    %v1719 = vmax.f32 %v1663, 0.0
    %v1720 = vmax.f32 %v1664, 0.0
    %v1721 = vmax.f32 %v1665, 0.0
    %v1722 = vmax.f32 %v1666, 0.0
    %v1723 = vmax.f32 %v1667, 0.0
    %v1724 = vmax.f32 %v1668, 0.0
    %v1725 = vmax.f32 %v1669, 0.0
    %v1726 = vmax.f32 %v1670, 0.0
    %v1727 = vmax.f32 %v1671, 0.0
    %v1728 = vmax.f32 %v1672, 0.0
    %v1729 = vmax.f32 %v1673, 0.0
    %v1730 = vmax.f32 %v1674, 0.0
    %v1731 = vmax.f32 %v1675, 0.0
    %v1732 = vmax.f32 %v1676, 0.0
    %v1733 = vmax.f32 %v1677, 0.0
    %v1734 = vmax.f32 %v1678, 0.0
    %v1735 = vmax.f32 %v1679, 0.0
    %v1736 = vld [vmem:[%s10] sm:$0xf]
    %v1737 = vld [vmem:[%s10 + $0x4] sm:$0xf]
    %v1738 = vld [vmem:[%s10 + $0x8] sm:$0xf]
    %v1739 = vld [vmem:[%s10 + $0xc] sm:$0xf]
    %v1740 = vld [vmem:[%s11] sm:$0x1]
    %v1741 = vld [vmem:[%s12] sm:$0x1]
    %v1742 = vpack.c.bf16 %v1681, %v1680
    %v1743 = vpack.c.bf16 %v1683, %v1682
    %v1744 = vpack.c.bf16 %v1685, %v1684
    %v1745 = vpack.c.bf16 %v1687, %v1686
    %v1746 = vpack.c.bf16 %v1689, %v1688
    %v1747 = vpack.c.bf16 %v1691, %v1690
    %v1748 = vpack.c.bf16 %v1693, %v1692
    %v1749 = vpack.c.bf16 %v1695, %v1694
    %v1750 = vpack.c.bf16 %v1697, %v1696
    %v1751 = vpack.c.bf16 %v1699, %v1698
    %v1752 = vpack.c.bf16 %v1701, %v1700
    %v1753 = vpack.c.bf16 %v1703, %v1702
    %v1754 = vpack.c.bf16 %v1705, %v1704
    %v1755 = vpack.c.bf16 %v1707, %v1706
    %v1756 = vpack.c.bf16 %v1709, %v1708
    %v1757 = vpack.c.bf16 %v1711, %v1710
    %v1758 = vpack.c.bf16 %v1713, %v1712
    %v1759 = vpack.c.bf16 %v1715, %v1714
    %v1760 = vpack.c.bf16 %v1717, %v1716
    %v1761 = vpack.c.bf16 %v1719, %v1718
    %v1762 = vpack.c.bf16 %v1721, %v1720
    %v1763 = vpack.c.bf16 %v1723, %v1722
    %v1764 = vpack.c.bf16 %v1725, %v1724
    %v1765 = vpack.c.bf16 %v1727, %v1726
    %v1766 = vpack.c.bf16 %v1729, %v1728
    %v1767 = vpack.c.bf16 %v1731, %v1730
    %v1768 = vpack.c.bf16 %v1733, %v1732
    %v1769 = vpack.c.bf16 %v1735, %v1734
    %v1774 = vunpack.c.l.b16 %v1736
    %v1775 = vunpack.c.l.b16 %v1737
    %v1776 = vunpack.c.l.b16 %v1738
    %v1777 = vunpack.c.l.b16 %v1739
    %v1778 = vpack.c.b16 %v1775, %v1774
    %v1779 = vpack.c.b16 %v1777, %v1776
    %v1783 = vsel %vm1039, %v1742, 0
    %v1786 = vsel %vm1039, %v1743, 0
    %v1789 = vsel %vm1039, %v1744, 0
    %v1792 = vsel %vm1039, %v1745, 0
    %v1795 = vsel %vm1039, %v1746, 0
    %v1798 = vsel %vm1039, %v1747, 0
    %v1801 = vsel %vm1039, %v1748, 0
    %v1804 = vsel %vm1039, %v1749, 0
    %v1807 = vsel %vm1039, %v1750, 0
    %v1810 = vsel %vm1039, %v1751, 0
    %v1813 = vsel %vm1039, %v1752, 0
    %v1816 = vsel %vm1039, %v1753, 0
    %v1819 = vsel %vm1039, %v1754, 0
    %v1822 = vsel %vm1039, %v1755, 0
    %v1825 = vsel %vm1039, %v1756, 0
    %v1828 = vsel %vm1039, %v1757, 0
    %v1831 = vsel %vm1039, %v1758, 0
    %v1834 = vsel %vm1039, %v1759, 0
    %v1837 = vsel %vm1039, %v1760, 0
    %v1840 = vsel %vm1039, %v1761, 0
    %v1843 = vsel %vm1039, %v1762, 0
    %v1846 = vsel %vm1039, %v1763, 0
    %v1849 = vsel %vm1039, %v1764, 0
    %v1852 = vsel %vm1039, %v1765, 0
    %v1855 = vsel %vm1039, %v1766, 0
    %v1858 = vsel %vm1039, %v1767, 0
    %v1861 = vsel %vm1039, %v1768, 0
    %v1864 = vsel %vm1039, %v1769, 0
    %1866 = vmatpush.bf16.msra.mxu0 0
    %1867 = vmatpush.bf16.msra.mxu0 0
    %1868 = vmatpush.bf16.msra.mxu0 0
    %1869 = vmatpush.bf16.msra.mxu0 0
    %1870 = vmatpush.bf16.msra.mxu0 0
    %1871 = vmatpush.bf16.msra.mxu0 0
    %1872 = vmatpush.bf16.msra.mxu0 %v1779
    %1873 = vmatpush.bf16.msra.mxu0 %v1778
    %1874 = vmatmul.bf16.gmra.mxu0 %v1783
    %v1875 = vpop.f32.mrf.mxu0
    %v1876 = vadd.f32 0.0, %v1875
    %v1877 = vpop.f32.mrf.mxu0
    %v1878 = vadd.f32 0.0, %v1877
    %1879 = vmatmul.bf16.gmra.mxu0 %v1786
    %v1880 = vpop.f32.mrf.mxu0
    %v1881 = vadd.f32 0.0, %v1880
    %v1882 = vpop.f32.mrf.mxu0
    %v1883 = vadd.f32 0.0, %v1882
    %1884 = vmatmul.bf16.gmra.mxu0 %v1789
    %v1885 = vpop.f32.mrf.mxu0
    %v1886 = vadd.f32 0.0, %v1885
    %v1887 = vpop.f32.mrf.mxu0
    %v1888 = vadd.f32 0.0, %v1887
    %1889 = vmatmul.bf16.gmra.mxu0 %v1792
    %v1890 = vpop.f32.mrf.mxu0
    %v1891 = vadd.f32 0.0, %v1890
    %v1892 = vpop.f32.mrf.mxu0
    %v1893 = vadd.f32 0.0, %v1892
    %1894 = vmatmul.bf16.gmra.mxu0 %v1795
    %v1895 = vpop.f32.mrf.mxu0
    %v1896 = vadd.f32 0.0, %v1895
    %v1897 = vpop.f32.mrf.mxu0
    %v1898 = vadd.f32 0.0, %v1897
    %1899 = vmatmul.bf16.gmra.mxu0 %v1798
    %v1900 = vpop.f32.mrf.mxu0
    %v1901 = vadd.f32 0.0, %v1900
    %v1902 = vpop.f32.mrf.mxu0
    %v1903 = vadd.f32 0.0, %v1902
    %1904 = vmatmul.bf16.gmra.mxu0 %v1801
    %v1905 = vpop.f32.mrf.mxu0
    %v1906 = vadd.f32 0.0, %v1905
    %v1907 = vpop.f32.mrf.mxu0
    %v1908 = vadd.f32 0.0, %v1907
    %1909 = vmatmul.bf16.gmra.mxu0 %v1804
    %v1910 = vpop.f32.mrf.mxu0
    %v1911 = vadd.f32 0.0, %v1910
    %v1912 = vpop.f32.mrf.mxu0
    %v1913 = vadd.f32 0.0, %v1912
    %1914 = vmatmul.bf16.gmra.mxu0 %v1807
    %v1915 = vpop.f32.mrf.mxu0
    %v1916 = vadd.f32 0.0, %v1915
    %v1917 = vpop.f32.mrf.mxu0
    %v1918 = vadd.f32 0.0, %v1917
    %1919 = vmatmul.bf16.gmra.mxu0 %v1810
    %v1920 = vpop.f32.mrf.mxu0
    %v1921 = vadd.f32 0.0, %v1920
    %v1922 = vpop.f32.mrf.mxu0
    %v1923 = vadd.f32 0.0, %v1922
    %1924 = vmatmul.bf16.gmra.mxu0 %v1813
    %v1925 = vpop.f32.mrf.mxu0
    %v1926 = vadd.f32 0.0, %v1925
    %v1927 = vpop.f32.mrf.mxu0
    %v1928 = vadd.f32 0.0, %v1927
    %1929 = vmatmul.bf16.gmra.mxu0 %v1816
    %v1930 = vpop.f32.mrf.mxu0
    %v1931 = vadd.f32 0.0, %v1930
    %v1932 = vpop.f32.mrf.mxu0
    %v1933 = vadd.f32 0.0, %v1932
    %1934 = vmatmul.bf16.gmra.mxu0 %v1819
    %v1935 = vpop.f32.mrf.mxu0
    %v1936 = vadd.f32 0.0, %v1935
    %v1937 = vpop.f32.mrf.mxu0
    %v1938 = vadd.f32 0.0, %v1937
    %1939 = vmatmul.bf16.gmra.mxu0 %v1822
    %v1940 = vpop.f32.mrf.mxu0
    %v1941 = vadd.f32 0.0, %v1940
    %v1942 = vpop.f32.mrf.mxu0
    %v1943 = vadd.f32 0.0, %v1942
    %1944 = vmatmul.bf16.gmra.mxu0 %v1825
    %v1945 = vpop.f32.mrf.mxu0
    %v1946 = vadd.f32 0.0, %v1945
    %v1947 = vpop.f32.mrf.mxu0
    %v1948 = vadd.f32 0.0, %v1947
    %1949 = vmatmul.bf16.gmra.mxu0 %v1828
    %v1950 = vpop.f32.mrf.mxu0
    %v1951 = vadd.f32 0.0, %v1950
    %v1952 = vpop.f32.mrf.mxu0
    %v1953 = vadd.f32 0.0, %v1952
    %1954 = vmatmul.bf16.gmra.mxu0 %v1831
    %v1955 = vpop.f32.mrf.mxu0
    %v1956 = vadd.f32 0.0, %v1955
    %v1957 = vpop.f32.mrf.mxu0
    %v1958 = vadd.f32 0.0, %v1957
    %1959 = vmatmul.bf16.gmra.mxu0 %v1834
    %v1960 = vpop.f32.mrf.mxu0
    %v1961 = vadd.f32 0.0, %v1960
    %v1962 = vpop.f32.mrf.mxu0
    %v1963 = vadd.f32 0.0, %v1962
    %1964 = vmatmul.bf16.gmra.mxu0 %v1837
    %v1965 = vpop.f32.mrf.mxu0
    %v1966 = vadd.f32 0.0, %v1965
    %v1967 = vpop.f32.mrf.mxu0
    %v1968 = vadd.f32 0.0, %v1967
    %1969 = vmatmul.bf16.gmra.mxu0 %v1840
    %v1970 = vpop.f32.mrf.mxu0
    %v1971 = vadd.f32 0.0, %v1970
    %v1972 = vpop.f32.mrf.mxu0
    %v1973 = vadd.f32 0.0, %v1972
    %1974 = vmatmul.bf16.gmra.mxu0 %v1843
    %v1975 = vpop.f32.mrf.mxu0
    %v1976 = vadd.f32 0.0, %v1975
    %v1977 = vpop.f32.mrf.mxu0
    %v1978 = vadd.f32 0.0, %v1977
    %1979 = vmatmul.bf16.gmra.mxu0 %v1846
    %v1980 = vpop.f32.mrf.mxu0
    %v1981 = vadd.f32 0.0, %v1980
    %v1982 = vpop.f32.mrf.mxu0
    %v1983 = vadd.f32 0.0, %v1982
    %1984 = vmatmul.bf16.gmra.mxu0 %v1849
    %v1985 = vpop.f32.mrf.mxu0
    %v1986 = vadd.f32 0.0, %v1985
    %v1987 = vpop.f32.mrf.mxu0
    %v1988 = vadd.f32 0.0, %v1987
    %1989 = vmatmul.bf16.gmra.mxu0 %v1852
    %v1990 = vpop.f32.mrf.mxu0
    %v1991 = vadd.f32 0.0, %v1990
    %v1992 = vpop.f32.mrf.mxu0
    %v1993 = vadd.f32 0.0, %v1992
    %1994 = vmatmul.bf16.gmra.mxu0 %v1855
    %v1995 = vpop.f32.mrf.mxu0
    %v1996 = vadd.f32 0.0, %v1995
    %v1997 = vpop.f32.mrf.mxu0
    %v1998 = vadd.f32 0.0, %v1997
    %1999 = vmatmul.bf16.gmra.mxu0 %v1858
    %v2000 = vpop.f32.mrf.mxu0
    %v2001 = vadd.f32 0.0, %v2000
    %v2002 = vpop.f32.mrf.mxu0
    %v2003 = vadd.f32 0.0, %v2002
    %2004 = vmatmul.bf16.gmra.mxu0 %v1861
    %v2005 = vpop.f32.mrf.mxu0
    %v2006 = vadd.f32 0.0, %v2005
    %v2007 = vpop.f32.mrf.mxu0
    %v2008 = vadd.f32 0.0, %v2007
    %2009 = vmatmul.bf16.gmra.mxu0 %v1864
    %v2010 = vpop.f32.mrf.mxu0
    %v2011 = vadd.f32 0.0, %v2010
    %v2012 = vpop.f32.mrf.mxu0
    %v2013 = vadd.f32 0.0, %v2012
    %2014 = vdwg.mxu0
    %v2015 = vsel %vm1039, %v1876, 0.0
    %v2016 = vsel %vm1039, %v1878, 0.0
    %v2017 = vadd.f32 %v2015, %v2016
    %v2018 = vsel %vm1039, %v1881, 0.0
    %v2019 = vadd.f32 %v2017, %v2018
    %v2020 = vsel %vm1039, %v1883, 0.0
    %v2021 = vadd.f32 %v2019, %v2020
    %v2022 = vsel %vm1039, %v1886, 0.0
    %v2023 = vadd.f32 %v2021, %v2022
    %v2024 = vsel %vm1039, %v1888, 0.0
    %v2025 = vadd.f32 %v2023, %v2024
    %v2026 = vsel %vm1039, %v1891, 0.0
    %v2027 = vadd.f32 %v2025, %v2026
    %v2028 = vsel %vm1039, %v1893, 0.0
    %v2029 = vadd.f32 %v2027, %v2028
    %v2030 = vrot.slane %v2029, 4
    %v2031 = vadd.f32 %v2029, %v2030
    %v2032 = vrot.slane %v2031, 2
    %v2033 = vadd.f32 %v2031, %v2032
    %v2034 = vrot.slane %v2033, 1
    %v2035 = vadd.f32 %v2033, %v2034
    %v2036 = vsel %vm1039, %v1896, 0.0
    %v2037 = vsel %vm1039, %v1898, 0.0
    %v2038 = vadd.f32 %v2036, %v2037
    %v2039 = vsel %vm1039, %v1901, 0.0
    %v2040 = vadd.f32 %v2038, %v2039
    %v2041 = vsel %vm1039, %v1903, 0.0
    %v2042 = vadd.f32 %v2040, %v2041
    %v2043 = vsel %vm1039, %v1906, 0.0
    %v2044 = vadd.f32 %v2042, %v2043
    %v2045 = vsel %vm1039, %v1908, 0.0
    %v2046 = vadd.f32 %v2044, %v2045
    %v2047 = vsel %vm1039, %v1911, 0.0
    %v2048 = vadd.f32 %v2046, %v2047
    %v2049 = vsel %vm1039, %v1913, 0.0
    %v2050 = vadd.f32 %v2048, %v2049
    %v2051 = vrot.slane %v2050, 4
    %v2052 = vadd.f32 %v2050, %v2051
    %v2053 = vrot.slane %v2052, 2
    %v2054 = vadd.f32 %v2052, %v2053
    %v2055 = vrot.slane %v2054, 1
    %v2056 = vadd.f32 %v2054, %v2055
    %v2057 = vsel %vm1039, %v1916, 0.0
    %v2058 = vsel %vm1039, %v1918, 0.0
    %v2059 = vadd.f32 %v2057, %v2058
    %v2060 = vsel %vm1039, %v1921, 0.0
    %v2061 = vadd.f32 %v2059, %v2060
    %v2062 = vsel %vm1039, %v1923, 0.0
    %v2063 = vadd.f32 %v2061, %v2062
    %v2064 = vsel %vm1039, %v1926, 0.0
    %v2065 = vadd.f32 %v2063, %v2064
    %v2066 = vsel %vm1039, %v1928, 0.0
    %v2067 = vadd.f32 %v2065, %v2066
    %v2068 = vsel %vm1039, %v1931, 0.0
    %v2069 = vadd.f32 %v2067, %v2068
    %v2070 = vsel %vm1039, %v1933, 0.0
    %v2071 = vadd.f32 %v2069, %v2070
    %v2072 = vrot.slane %v2071, 4
    %v2073 = vadd.f32 %v2071, %v2072
    %v2074 = vrot.slane %v2073, 2
    %v2075 = vadd.f32 %v2073, %v2074
    %v2076 = vrot.slane %v2075, 1
    %v2077 = vadd.f32 %v2075, %v2076
    %v2078 = vsel %vm1039, %v1936, 0.0
    %v2079 = vsel %vm1039, %v1938, 0.0
    %v2080 = vadd.f32 %v2078, %v2079
    %v2081 = vsel %vm1039, %v1941, 0.0
    %v2082 = vadd.f32 %v2080, %v2081
    %v2083 = vsel %vm1039, %v1943, 0.0
    %v2084 = vadd.f32 %v2082, %v2083
    %v2085 = vsel %vm1039, %v1946, 0.0
    %v2086 = vadd.f32 %v2084, %v2085
    %v2087 = vsel %vm1039, %v1948, 0.0
    %v2088 = vadd.f32 %v2086, %v2087
    %v2089 = vsel %vm1039, %v1951, 0.0
    %v2090 = vadd.f32 %v2088, %v2089
    %v2091 = vsel %vm1039, %v1953, 0.0
    %v2092 = vadd.f32 %v2090, %v2091
    %v2093 = vrot.slane %v2092, 4
    %v2094 = vadd.f32 %v2092, %v2093
    %v2095 = vrot.slane %v2094, 2
    %v2096 = vadd.f32 %v2094, %v2095
    %v2097 = vrot.slane %v2096, 1
    %v2098 = vadd.f32 %v2096, %v2097
    %v2099 = vsel %vm1039, %v1956, 0.0
    %v2100 = vsel %vm1039, %v1958, 0.0
    %v2101 = vadd.f32 %v2099, %v2100
    %v2102 = vsel %vm1039, %v1961, 0.0
    %v2103 = vadd.f32 %v2101, %v2102
    %v2104 = vsel %vm1039, %v1963, 0.0
    %v2105 = vadd.f32 %v2103, %v2104
    %v2106 = vsel %vm1039, %v1966, 0.0
    %v2107 = vadd.f32 %v2105, %v2106
    %v2108 = vsel %vm1039, %v1968, 0.0
    %v2109 = vadd.f32 %v2107, %v2108
    %v2110 = vsel %vm1039, %v1971, 0.0
    %v2111 = vadd.f32 %v2109, %v2110
    %v2112 = vsel %vm1039, %v1973, 0.0
    %v2113 = vadd.f32 %v2111, %v2112
    %v2114 = vrot.slane %v2113, 4
    %v2115 = vadd.f32 %v2113, %v2114
    %v2116 = vrot.slane %v2115, 2
    %v2117 = vadd.f32 %v2115, %v2116
    %v2118 = vrot.slane %v2117, 1
    %v2119 = vadd.f32 %v2117, %v2118
    %v2120 = vsel %vm1039, %v1976, 0.0
    %v2121 = vsel %vm1039, %v1978, 0.0
    %v2122 = vadd.f32 %v2120, %v2121
    %v2123 = vsel %vm1039, %v1981, 0.0
    %v2124 = vadd.f32 %v2122, %v2123
    %v2125 = vsel %vm1039, %v1983, 0.0
    %v2126 = vadd.f32 %v2124, %v2125
    %v2127 = vsel %vm1039, %v1986, 0.0
    %v2128 = vadd.f32 %v2126, %v2127
    %v2129 = vsel %vm1039, %v1988, 0.0
    %v2130 = vadd.f32 %v2128, %v2129
    %v2131 = vsel %vm1039, %v1991, 0.0
    %v2132 = vadd.f32 %v2130, %v2131
    %v2133 = vsel %vm1039, %v1993, 0.0
    %v2134 = vadd.f32 %v2132, %v2133
    %v2135 = vrot.slane %v2134, 4
    %v2136 = vadd.f32 %v2134, %v2135
    %v2137 = vrot.slane %v2136, 2
    %v2138 = vadd.f32 %v2136, %v2137
    %v2139 = vrot.slane %v2138, 1
    %v2140 = vadd.f32 %v2138, %v2139
    %v2141 = vsel %vm1039, %v1996, 0.0
    %v2142 = vsel %vm1039, %v1998, 0.0
    %v2143 = vadd.f32 %v2141, %v2142
    %v2144 = vsel %vm1039, %v2001, 0.0
    %v2145 = vadd.f32 %v2143, %v2144
    %v2146 = vsel %vm1039, %v2003, 0.0
    %v2147 = vadd.f32 %v2145, %v2146
    %v2148 = vsel %vm1039, %v2006, 0.0
    %v2149 = vadd.f32 %v2147, %v2148
    %v2150 = vsel %vm1039, %v2008, 0.0
    %v2151 = vadd.f32 %v2149, %v2150
    %v2152 = vsel %vm1039, %v2011, 0.0
    %v2153 = vadd.f32 %v2151, %v2152
    %v2154 = vsel %vm1039, %v2013, 0.0
    %v2155 = vadd.f32 %v2153, %v2154
    %v2156 = vrot.slane %v2155, 4
    %v2157 = vadd.f32 %v2155, %v2156
    %v2158 = vrot.slane %v2157, 2
    %v2159 = vadd.f32 %v2157, %v2158
    %v2160 = vrot.slane %v2159, 1
    %v2161 = vadd.f32 %v2159, %v2160
    %v2162 = vmul.f32 %v2035, %v274
    %v2163 = vmul.f32 %v2056, %v274
    %v2164 = vmul.f32 %v2077, %v274
    %v2165 = vmul.f32 %v2098, %v274
    %v2166 = vmul.f32 %v2119, %v274
    %v2167 = vmul.f32 %v2140, %v274
    %v2168 = vmul.f32 %v2161, %v274
    %v2169 = vsub.f32 %v1876, %v2162
    %v2170 = vsub.f32 %v1878, %v2162
    %v2171 = vsub.f32 %v1881, %v2162
    %v2172 = vsub.f32 %v1883, %v2162
    %v2173 = vsub.f32 %v1886, %v2162
    %v2174 = vsub.f32 %v1888, %v2162
    %v2175 = vsub.f32 %v1891, %v2162
    %v2176 = vsub.f32 %v1893, %v2162
    %v2177 = vsub.f32 %v1896, %v2163
    %v2178 = vsub.f32 %v1898, %v2163
    %v2179 = vsub.f32 %v1901, %v2163
    %v2180 = vsub.f32 %v1903, %v2163
    %v2181 = vsub.f32 %v1906, %v2163
    %v2182 = vsub.f32 %v1908, %v2163
    %v2183 = vsub.f32 %v1911, %v2163
    %v2184 = vsub.f32 %v1913, %v2163
    %v2185 = vsub.f32 %v1916, %v2164
    %v2186 = vsub.f32 %v1918, %v2164
    %v2187 = vsub.f32 %v1921, %v2164
    %v2188 = vsub.f32 %v1923, %v2164
    %v2189 = vsub.f32 %v1926, %v2164
    %v2190 = vsub.f32 %v1928, %v2164
    %v2191 = vsub.f32 %v1931, %v2164
    %v2192 = vsub.f32 %v1933, %v2164
    %v2193 = vsub.f32 %v1936, %v2165
    %v2194 = vsub.f32 %v1938, %v2165
    %v2195 = vsub.f32 %v1941, %v2165
    %v2196 = vsub.f32 %v1943, %v2165
    %v2197 = vsub.f32 %v1946, %v2165
    %v2198 = vsub.f32 %v1948, %v2165
    %v2199 = vsub.f32 %v1951, %v2165
    %v2200 = vsub.f32 %v1953, %v2165
    %v2201 = vsub.f32 %v1956, %v2166
    %v2202 = vsub.f32 %v1958, %v2166
    %v2203 = vsub.f32 %v1961, %v2166
    %v2204 = vsub.f32 %v1963, %v2166
    %v2205 = vsub.f32 %v1966, %v2166
    %v2206 = vsub.f32 %v1968, %v2166
    %v2207 = vsub.f32 %v1971, %v2166
    %v2208 = vsub.f32 %v1973, %v2166
    %v2209 = vsub.f32 %v1976, %v2167
    %v2210 = vsub.f32 %v1978, %v2167
    %v2211 = vsub.f32 %v1981, %v2167
    %v2212 = vsub.f32 %v1983, %v2167
    %v2213 = vsub.f32 %v1986, %v2167
    %v2214 = vsub.f32 %v1988, %v2167
    %v2215 = vsub.f32 %v1991, %v2167
    %v2216 = vsub.f32 %v1993, %v2167
    %v2217 = vsub.f32 %v1996, %v2168
    %v2218 = vsub.f32 %v1998, %v2168
    %v2219 = vsub.f32 %v2001, %v2168
    %v2220 = vsub.f32 %v2003, %v2168
    %v2221 = vsub.f32 %v2006, %v2168
    %v2222 = vsub.f32 %v2008, %v2168
    %v2223 = vsub.f32 %v2011, %v2168
    %v2224 = vsub.f32 %v2013, %v2168
    %v2225 = vmul.f32 %v2169, %v2169
    %v2226 = vmul.f32 %v2170, %v2170
    %v2227 = vmul.f32 %v2171, %v2171
    %v2228 = vmul.f32 %v2172, %v2172
    %v2229 = vmul.f32 %v2173, %v2173
    %v2230 = vmul.f32 %v2174, %v2174
    %v2231 = vmul.f32 %v2175, %v2175
    %v2232 = vmul.f32 %v2176, %v2176
    %v2233 = vmul.f32 %v2177, %v2177
    %v2234 = vmul.f32 %v2178, %v2178
    %v2235 = vmul.f32 %v2179, %v2179
    %v2236 = vmul.f32 %v2180, %v2180
    %v2237 = vmul.f32 %v2181, %v2181
    %v2238 = vmul.f32 %v2182, %v2182
    %v2239 = vmul.f32 %v2183, %v2183
    %v2240 = vmul.f32 %v2184, %v2184
    %v2241 = vmul.f32 %v2185, %v2185
    %v2242 = vmul.f32 %v2186, %v2186
    %v2243 = vmul.f32 %v2187, %v2187
    %v2244 = vmul.f32 %v2188, %v2188
    %v2245 = vmul.f32 %v2189, %v2189
    %v2246 = vmul.f32 %v2190, %v2190
    %v2247 = vmul.f32 %v2191, %v2191
    %v2248 = vmul.f32 %v2192, %v2192
    %v2249 = vmul.f32 %v2193, %v2193
    %v2250 = vmul.f32 %v2194, %v2194
    %v2251 = vmul.f32 %v2195, %v2195
    %v2252 = vmul.f32 %v2196, %v2196
    %v2253 = vmul.f32 %v2197, %v2197
    %v2254 = vmul.f32 %v2198, %v2198
    %v2255 = vmul.f32 %v2199, %v2199
    %v2256 = vmul.f32 %v2200, %v2200
    %v2257 = vmul.f32 %v2201, %v2201
    %v2258 = vmul.f32 %v2202, %v2202
    %v2259 = vmul.f32 %v2203, %v2203
    %v2260 = vmul.f32 %v2204, %v2204
    %v2261 = vmul.f32 %v2205, %v2205
    %v2262 = vmul.f32 %v2206, %v2206
    %v2263 = vmul.f32 %v2207, %v2207
    %v2264 = vmul.f32 %v2208, %v2208
    %v2265 = vmul.f32 %v2209, %v2209
    %v2266 = vmul.f32 %v2210, %v2210
    %v2267 = vmul.f32 %v2211, %v2211
    %v2268 = vmul.f32 %v2212, %v2212
    %v2269 = vmul.f32 %v2213, %v2213
    %v2270 = vmul.f32 %v2214, %v2214
    %v2271 = vmul.f32 %v2215, %v2215
    %v2272 = vmul.f32 %v2216, %v2216
    %v2273 = vmul.f32 %v2217, %v2217
    %v2274 = vmul.f32 %v2218, %v2218
    %v2275 = vmul.f32 %v2219, %v2219
    %v2276 = vmul.f32 %v2220, %v2220
    %v2277 = vmul.f32 %v2221, %v2221
    %v2278 = vmul.f32 %v2222, %v2222
    %v2279 = vmul.f32 %v2223, %v2223
    %v2280 = vmul.f32 %v2224, %v2224
    %v2281 = vsel %vm1039, %v2225, 0.0
    %v2282 = vsel %vm1039, %v2226, 0.0
    %v2283 = vadd.f32 %v2281, %v2282
    %v2284 = vsel %vm1039, %v2227, 0.0
    %v2285 = vadd.f32 %v2283, %v2284
    %v2286 = vsel %vm1039, %v2228, 0.0
    %v2287 = vadd.f32 %v2285, %v2286
    %v2288 = vsel %vm1039, %v2229, 0.0
    %v2289 = vadd.f32 %v2287, %v2288
    %v2290 = vsel %vm1039, %v2230, 0.0
    %v2291 = vadd.f32 %v2289, %v2290
    %v2292 = vsel %vm1039, %v2231, 0.0
    %v2293 = vadd.f32 %v2291, %v2292
    %v2294 = vsel %vm1039, %v2232, 0.0
    %v2295 = vadd.f32 %v2293, %v2294
    %v2296 = vrot.slane %v2295, 4
    %v2297 = vadd.f32 %v2295, %v2296
    %v2298 = vrot.slane %v2297, 2
    %v2299 = vadd.f32 %v2297, %v2298
    %v2300 = vrot.slane %v2299, 1
    %v2301 = vadd.f32 %v2299, %v2300
    %v2302 = vsel %vm1039, %v2233, 0.0
    %v2303 = vsel %vm1039, %v2234, 0.0
    %v2304 = vadd.f32 %v2302, %v2303
    %v2305 = vsel %vm1039, %v2235, 0.0
    %v2306 = vadd.f32 %v2304, %v2305
    %v2307 = vsel %vm1039, %v2236, 0.0
    %v2308 = vadd.f32 %v2306, %v2307
    %v2309 = vsel %vm1039, %v2237, 0.0
    %v2310 = vadd.f32 %v2308, %v2309
    %v2311 = vsel %vm1039, %v2238, 0.0
    %v2312 = vadd.f32 %v2310, %v2311
    %v2313 = vsel %vm1039, %v2239, 0.0
    %v2314 = vadd.f32 %v2312, %v2313
    %v2315 = vsel %vm1039, %v2240, 0.0
    %v2316 = vadd.f32 %v2314, %v2315
    %v2317 = vrot.slane %v2316, 4
    %v2318 = vadd.f32 %v2316, %v2317
    %v2319 = vrot.slane %v2318, 2
    %v2320 = vadd.f32 %v2318, %v2319
    %v2321 = vrot.slane %v2320, 1
    %v2322 = vadd.f32 %v2320, %v2321
    %v2323 = vsel %vm1039, %v2241, 0.0
    %v2324 = vsel %vm1039, %v2242, 0.0
    %v2325 = vadd.f32 %v2323, %v2324
    %v2326 = vsel %vm1039, %v2243, 0.0
    %v2327 = vadd.f32 %v2325, %v2326
    %v2328 = vsel %vm1039, %v2244, 0.0
    %v2329 = vadd.f32 %v2327, %v2328
    %v2330 = vsel %vm1039, %v2245, 0.0
    %v2331 = vadd.f32 %v2329, %v2330
    %v2332 = vsel %vm1039, %v2246, 0.0
    %v2333 = vadd.f32 %v2331, %v2332
    %v2334 = vsel %vm1039, %v2247, 0.0
    %v2335 = vadd.f32 %v2333, %v2334
    %v2336 = vsel %vm1039, %v2248, 0.0
    %v2337 = vadd.f32 %v2335, %v2336
    %v2338 = vrot.slane %v2337, 4
    %v2339 = vadd.f32 %v2337, %v2338
    %v2340 = vrot.slane %v2339, 2
    %v2341 = vadd.f32 %v2339, %v2340
    %v2342 = vrot.slane %v2341, 1
    %v2343 = vadd.f32 %v2341, %v2342
    %v2344 = vsel %vm1039, %v2249, 0.0
    %v2345 = vsel %vm1039, %v2250, 0.0
    %v2346 = vadd.f32 %v2344, %v2345
    %v2347 = vsel %vm1039, %v2251, 0.0
    %v2348 = vadd.f32 %v2346, %v2347
    %v2349 = vsel %vm1039, %v2252, 0.0
    %v2350 = vadd.f32 %v2348, %v2349
    %v2351 = vsel %vm1039, %v2253, 0.0
    %v2352 = vadd.f32 %v2350, %v2351
    %v2353 = vsel %vm1039, %v2254, 0.0
    %v2354 = vadd.f32 %v2352, %v2353
    %v2355 = vsel %vm1039, %v2255, 0.0
    %v2356 = vadd.f32 %v2354, %v2355
    %v2357 = vsel %vm1039, %v2256, 0.0
    %v2358 = vadd.f32 %v2356, %v2357
    %v2359 = vrot.slane %v2358, 4
    %v2360 = vadd.f32 %v2358, %v2359
    %v2361 = vrot.slane %v2360, 2
    %v2362 = vadd.f32 %v2360, %v2361
    %v2363 = vrot.slane %v2362, 1
    %v2364 = vadd.f32 %v2362, %v2363
    %v2365 = vsel %vm1039, %v2257, 0.0
    %v2366 = vsel %vm1039, %v2258, 0.0
    %v2367 = vadd.f32 %v2365, %v2366
    %v2368 = vsel %vm1039, %v2259, 0.0
    %v2369 = vadd.f32 %v2367, %v2368
    %v2370 = vsel %vm1039, %v2260, 0.0
    %v2371 = vadd.f32 %v2369, %v2370
    %v2372 = vsel %vm1039, %v2261, 0.0
    %v2373 = vadd.f32 %v2371, %v2372
    %v2374 = vsel %vm1039, %v2262, 0.0
    %v2375 = vadd.f32 %v2373, %v2374
    %v2376 = vsel %vm1039, %v2263, 0.0
    %v2377 = vadd.f32 %v2375, %v2376
    %v2378 = vsel %vm1039, %v2264, 0.0
    %v2379 = vadd.f32 %v2377, %v2378
    %v2380 = vrot.slane %v2379, 4
    %v2381 = vadd.f32 %v2379, %v2380
    %v2382 = vrot.slane %v2381, 2
    %v2383 = vadd.f32 %v2381, %v2382
    %v2384 = vrot.slane %v2383, 1
    %v2385 = vadd.f32 %v2383, %v2384
    %v2386 = vsel %vm1039, %v2265, 0.0
    %v2387 = vsel %vm1039, %v2266, 0.0
    %v2388 = vadd.f32 %v2386, %v2387
    %v2389 = vsel %vm1039, %v2267, 0.0
    %v2390 = vadd.f32 %v2388, %v2389
    %v2391 = vsel %vm1039, %v2268, 0.0
    %v2392 = vadd.f32 %v2390, %v2391
    %v2393 = vsel %vm1039, %v2269, 0.0
    %v2394 = vadd.f32 %v2392, %v2393
    %v2395 = vsel %vm1039, %v2270, 0.0
    %v2396 = vadd.f32 %v2394, %v2395
    %v2397 = vsel %vm1039, %v2271, 0.0
    %v2398 = vadd.f32 %v2396, %v2397
    %v2399 = vsel %vm1039, %v2272, 0.0
    %v2400 = vadd.f32 %v2398, %v2399
    %v2401 = vrot.slane %v2400, 4
    %v2402 = vadd.f32 %v2400, %v2401
    %v2403 = vrot.slane %v2402, 2
    %v2404 = vadd.f32 %v2402, %v2403
    %v2405 = vrot.slane %v2404, 1
    %v2406 = vadd.f32 %v2404, %v2405
    %v2407 = vsel %vm1039, %v2273, 0.0
    %v2408 = vsel %vm1039, %v2274, 0.0
    %v2409 = vadd.f32 %v2407, %v2408
    %v2410 = vsel %vm1039, %v2275, 0.0
    %v2411 = vadd.f32 %v2409, %v2410
    %v2412 = vsel %vm1039, %v2276, 0.0
    %v2413 = vadd.f32 %v2411, %v2412
    %v2414 = vsel %vm1039, %v2277, 0.0
    %v2415 = vadd.f32 %v2413, %v2414
    %v2416 = vsel %vm1039, %v2278, 0.0
    %v2417 = vadd.f32 %v2415, %v2416
    %v2418 = vsel %vm1039, %v2279, 0.0
    %v2419 = vadd.f32 %v2417, %v2418
    %v2420 = vsel %vm1039, %v2280, 0.0
    %v2421 = vadd.f32 %v2419, %v2420
    %v2422 = vrot.slane %v2421, 4
    %v2423 = vadd.f32 %v2421, %v2422
    %v2424 = vrot.slane %v2423, 2
    %v2425 = vadd.f32 %v2423, %v2424
    %v2426 = vrot.slane %v2425, 1
    %v2427 = vadd.f32 %v2425, %v2426
    %v2428 = vmul.f32 %v2301, %v274
    %v2429 = vmul.f32 %v2322, %v274
    %v2430 = vmul.f32 %v2343, %v274
    %v2431 = vmul.f32 %v2364, %v274
    %v2432 = vmul.f32 %v2385, %v274
    %v2433 = vmul.f32 %v2406, %v274
    %v2434 = vmul.f32 %v2427, %v274
    %v2435 = vadd.f32 %v2428, 1e-06
    %v2436 = vadd.f32 %v2429, 1e-06
    %v2437 = vadd.f32 %v2430, 1e-06
    %v2438 = vadd.f32 %v2431, 1e-06
    %v2439 = vadd.f32 %v2432, 1e-06
    %v2440 = vadd.f32 %v2433, 1e-06
    %v2441 = vadd.f32 %v2434, 1e-06
    %v2442 = vrsqrt.pop %v2435
    %v2443 = vmul.f32 %v2442, %v2435
    %v2444 = vmul.f32 %v2443, %v2442
    %v2445 = vmul.f32 0.5, %v2444
    %v2446 = vsub.f32 1.5, %v2445
    %v2447 = vmul.f32 %v2442, %v2446
    %vm2448 = vweird.f32 %v2435
    %vm2449 = vweird.f32 %v2442
    %vm2450 = vmor %vm2448, %vm2449
    %v2451 = vsel %vm2450, %v2442, %v2447
    %v2452 = vrsqrt.pop %v2436
    %v2453 = vmul.f32 %v2452, %v2436
    %v2454 = vmul.f32 %v2453, %v2452
    %v2455 = vmul.f32 0.5, %v2454
    %v2456 = vsub.f32 1.5, %v2455
    %v2457 = vmul.f32 %v2452, %v2456
    %vm2458 = vweird.f32 %v2436
    %vm2459 = vweird.f32 %v2452
    %vm2460 = vmor %vm2458, %vm2459
    %v2461 = vsel %vm2460, %v2452, %v2457
    %v2462 = vrsqrt.pop %v2437
    %v2463 = vmul.f32 %v2462, %v2437
    %v2464 = vmul.f32 %v2463, %v2462
    %v2465 = vmul.f32 0.5, %v2464
    %v2466 = vsub.f32 1.5, %v2465
    %v2467 = vmul.f32 %v2462, %v2466
    %vm2468 = vweird.f32 %v2437
    %vm2469 = vweird.f32 %v2462
    %vm2470 = vmor %vm2468, %vm2469
    %v2471 = vsel %vm2470, %v2462, %v2467
    %v2472 = vrsqrt.pop %v2438
    %v2473 = vmul.f32 %v2472, %v2438
    %v2474 = vmul.f32 %v2473, %v2472
    %v2475 = vmul.f32 0.5, %v2474
    %v2476 = vsub.f32 1.5, %v2475
    %v2477 = vmul.f32 %v2472, %v2476
    %vm2478 = vweird.f32 %v2438
    %vm2479 = vweird.f32 %v2472
    %vm2480 = vmor %vm2478, %vm2479
    %v2481 = vsel %vm2480, %v2472, %v2477
    %v2482 = vrsqrt.pop %v2439
    %v2483 = vmul.f32 %v2482, %v2439
    %v2484 = vmul.f32 %v2483, %v2482
    %v2485 = vmul.f32 0.5, %v2484
    %v2486 = vsub.f32 1.5, %v2485
    %v2487 = vmul.f32 %v2482, %v2486
    %vm2488 = vweird.f32 %v2439
    %vm2489 = vweird.f32 %v2482
    %vm2490 = vmor %vm2488, %vm2489
    %v2491 = vsel %vm2490, %v2482, %v2487
    %v2492 = vrsqrt.pop %v2440
    %v2493 = vmul.f32 %v2492, %v2440
    %v2494 = vmul.f32 %v2493, %v2492
    %v2495 = vmul.f32 0.5, %v2494
    %v2496 = vsub.f32 1.5, %v2495
    %v2497 = vmul.f32 %v2492, %v2496
    %vm2498 = vweird.f32 %v2440
    %vm2499 = vweird.f32 %v2492
    %vm2500 = vmor %vm2498, %vm2499
    %v2501 = vsel %vm2500, %v2492, %v2497
    %v2502 = vrsqrt.pop %v2441
    %v2503 = vmul.f32 %v2502, %v2441
    %v2504 = vmul.f32 %v2503, %v2502
    %v2505 = vmul.f32 0.5, %v2504
    %v2506 = vsub.f32 1.5, %v2505
    %v2507 = vmul.f32 %v2502, %v2506
    %vm2508 = vweird.f32 %v2441
    %vm2509 = vweird.f32 %v2502
    %vm2510 = vmor %vm2508, %vm2509
    %v2511 = vsel %vm2510, %v2502, %v2507
    %v2512 = vmul.f32 %v1740, %v2451
    %v2513 = vmul.f32 %v1740, %v2461
    %v2514 = vmul.f32 %v1740, %v2471
    %v2515 = vmul.f32 %v1740, %v2481
    %v2516 = vmul.f32 %v1740, %v2491
    %v2517 = vmul.f32 %v1740, %v2501
    %v2518 = vmul.f32 %v1740, %v2511
    %v2526 = vperm.slane %v2512, 0
    %v2527 = vperm.slane %v2513, 0
    %v2528 = vperm.slane %v2514, 0
    %v2529 = vperm.slane %v2515, 0
    %v2530 = vperm.slane %v2516, 0
    %v2531 = vperm.slane %v2517, 0
    %v2532 = vperm.slane %v2518, 0
    %v2540 = vmul.f32 %v2169, %v2526
    %v2541 = vmul.f32 %v2170, %v2526
    %v2542 = vmul.f32 %v2171, %v2526
    %v2543 = vmul.f32 %v2172, %v2526
    %v2544 = vmul.f32 %v2173, %v2526
    %v2545 = vmul.f32 %v2174, %v2526
    %v2546 = vmul.f32 %v2175, %v2526
    %v2547 = vmul.f32 %v2176, %v2526
    %v2548 = vmul.f32 %v2177, %v2527
    %v2549 = vmul.f32 %v2178, %v2527
    %v2550 = vmul.f32 %v2179, %v2527
    %v2551 = vmul.f32 %v2180, %v2527
    %v2552 = vmul.f32 %v2181, %v2527
    %v2553 = vmul.f32 %v2182, %v2527
    %v2554 = vmul.f32 %v2183, %v2527
    %v2555 = vmul.f32 %v2184, %v2527
    %v2556 = vmul.f32 %v2185, %v2528
    %v2557 = vmul.f32 %v2186, %v2528
    %v2558 = vmul.f32 %v2187, %v2528
    %v2559 = vmul.f32 %v2188, %v2528
    %v2560 = vmul.f32 %v2189, %v2528
    %v2561 = vmul.f32 %v2190, %v2528
    %v2562 = vmul.f32 %v2191, %v2528
    %v2563 = vmul.f32 %v2192, %v2528
    %v2564 = vmul.f32 %v2193, %v2529
    %v2565 = vmul.f32 %v2194, %v2529
    %v2566 = vmul.f32 %v2195, %v2529
    %v2567 = vmul.f32 %v2196, %v2529
    %v2568 = vmul.f32 %v2197, %v2529
    %v2569 = vmul.f32 %v2198, %v2529
    %v2570 = vmul.f32 %v2199, %v2529
    %v2571 = vmul.f32 %v2200, %v2529
    %v2572 = vmul.f32 %v2201, %v2530
    %v2573 = vmul.f32 %v2202, %v2530
    %v2574 = vmul.f32 %v2203, %v2530
    %v2575 = vmul.f32 %v2204, %v2530
    %v2576 = vmul.f32 %v2205, %v2530
    %v2577 = vmul.f32 %v2206, %v2530
    %v2578 = vmul.f32 %v2207, %v2530
    %v2579 = vmul.f32 %v2208, %v2530
    %v2580 = vmul.f32 %v2209, %v2531
    %v2581 = vmul.f32 %v2210, %v2531
    %v2582 = vmul.f32 %v2211, %v2531
    %v2583 = vmul.f32 %v2212, %v2531
    %v2584 = vmul.f32 %v2213, %v2531
    %v2585 = vmul.f32 %v2214, %v2531
    %v2586 = vmul.f32 %v2215, %v2531
    %v2587 = vmul.f32 %v2216, %v2531
    %v2588 = vmul.f32 %v2217, %v2532
    %v2589 = vmul.f32 %v2218, %v2532
    %v2590 = vmul.f32 %v2219, %v2532
    %v2591 = vmul.f32 %v2220, %v2532
    %v2592 = vmul.f32 %v2221, %v2532
    %v2593 = vmul.f32 %v2222, %v2532
    %v2594 = vmul.f32 %v2223, %v2532
    %v2595 = vmul.f32 %v2224, %v2532
    %v2597 = vperm.slane %v1741, 0
    %v2599 = vadd.f32 %v2540, %v2597
    %v2600 = vadd.f32 %v2541, %v2597
    %v2601 = vadd.f32 %v2542, %v2597
    %v2602 = vadd.f32 %v2543, %v2597
    %v2603 = vadd.f32 %v2544, %v2597
    %v2604 = vadd.f32 %v2545, %v2597
    %v2605 = vadd.f32 %v2546, %v2597
    %v2606 = vadd.f32 %v2547, %v2597
    %v2607 = vadd.f32 %v2548, %v2597
    %v2608 = vadd.f32 %v2549, %v2597
    %v2609 = vadd.f32 %v2550, %v2597
    %v2610 = vadd.f32 %v2551, %v2597
    %v2611 = vadd.f32 %v2552, %v2597
    %v2612 = vadd.f32 %v2553, %v2597
    %v2613 = vadd.f32 %v2554, %v2597
    %v2614 = vadd.f32 %v2555, %v2597
    %v2615 = vadd.f32 %v2556, %v2597
    %v2616 = vadd.f32 %v2557, %v2597
    %v2617 = vadd.f32 %v2558, %v2597
    %v2618 = vadd.f32 %v2559, %v2597
    %v2619 = vadd.f32 %v2560, %v2597
    %v2620 = vadd.f32 %v2561, %v2597
    %v2621 = vadd.f32 %v2562, %v2597
    %v2622 = vadd.f32 %v2563, %v2597
    %v2623 = vadd.f32 %v2564, %v2597
    %v2624 = vadd.f32 %v2565, %v2597
    %v2625 = vadd.f32 %v2566, %v2597
    %v2626 = vadd.f32 %v2567, %v2597
    %v2627 = vadd.f32 %v2568, %v2597
    %v2628 = vadd.f32 %v2569, %v2597
    %v2629 = vadd.f32 %v2570, %v2597
    %v2630 = vadd.f32 %v2571, %v2597
    %v2631 = vadd.f32 %v2572, %v2597
    %v2632 = vadd.f32 %v2573, %v2597
    %v2633 = vadd.f32 %v2574, %v2597
    %v2634 = vadd.f32 %v2575, %v2597
    %v2635 = vadd.f32 %v2576, %v2597
    %v2636 = vadd.f32 %v2577, %v2597
    %v2637 = vadd.f32 %v2578, %v2597
    %v2638 = vadd.f32 %v2579, %v2597
    %v2639 = vadd.f32 %v2580, %v2597
    %v2640 = vadd.f32 %v2581, %v2597
    %v2641 = vadd.f32 %v2582, %v2597
    %v2642 = vadd.f32 %v2583, %v2597
    %v2643 = vadd.f32 %v2584, %v2597
    %v2644 = vadd.f32 %v2585, %v2597
    %v2645 = vadd.f32 %v2586, %v2597
    %v2646 = vadd.f32 %v2587, %v2597
    %v2647 = vadd.f32 %v2588, %v2597
    %v2648 = vadd.f32 %v2589, %v2597
    %v2649 = vadd.f32 %v2590, %v2597
    %v2650 = vadd.f32 %v2591, %v2597
    %v2651 = vadd.f32 %v2592, %v2597
    %v2652 = vadd.f32 %v2593, %v2597
    %v2653 = vadd.f32 %v2594, %v2597
    %v2654 = vadd.f32 %v2595, %v2597
    %v2655 = vmax.f32 %v2599, 0.0
    %v2656 = vmax.f32 %v2600, 0.0
    %v2657 = vmax.f32 %v2601, 0.0
    %v2658 = vmax.f32 %v2602, 0.0
    %v2659 = vmax.f32 %v2603, 0.0
    %v2660 = vmax.f32 %v2604, 0.0
    %v2661 = vmax.f32 %v2605, 0.0
    %v2662 = vmax.f32 %v2606, 0.0
    %v2663 = vmax.f32 %v2607, 0.0
    %v2664 = vmax.f32 %v2608, 0.0
    %v2665 = vmax.f32 %v2609, 0.0
    %v2666 = vmax.f32 %v2610, 0.0
    %v2667 = vmax.f32 %v2611, 0.0
    %v2668 = vmax.f32 %v2612, 0.0
    %v2669 = vmax.f32 %v2613, 0.0
    %v2670 = vmax.f32 %v2614, 0.0
    %v2671 = vmax.f32 %v2615, 0.0
    %v2672 = vmax.f32 %v2616, 0.0
    %v2673 = vmax.f32 %v2617, 0.0
    %v2674 = vmax.f32 %v2618, 0.0
    %v2675 = vmax.f32 %v2619, 0.0
    %v2676 = vmax.f32 %v2620, 0.0
    %v2677 = vmax.f32 %v2621, 0.0
    %v2678 = vmax.f32 %v2622, 0.0
    %v2679 = vmax.f32 %v2623, 0.0
    %v2680 = vmax.f32 %v2624, 0.0
    %v2681 = vmax.f32 %v2625, 0.0
    %v2682 = vmax.f32 %v2626, 0.0
    %v2683 = vmax.f32 %v2627, 0.0
    %v2684 = vmax.f32 %v2628, 0.0
    %v2685 = vmax.f32 %v2629, 0.0
    %v2686 = vmax.f32 %v2630, 0.0
    %v2687 = vmax.f32 %v2631, 0.0
    %v2688 = vmax.f32 %v2632, 0.0
    %v2689 = vmax.f32 %v2633, 0.0
    %v2690 = vmax.f32 %v2634, 0.0
    %v2691 = vmax.f32 %v2635, 0.0
    %v2692 = vmax.f32 %v2636, 0.0
    %v2693 = vmax.f32 %v2637, 0.0
    %v2694 = vmax.f32 %v2638, 0.0
    %v2695 = vmax.f32 %v2639, 0.0
    %v2696 = vmax.f32 %v2640, 0.0
    %v2697 = vmax.f32 %v2641, 0.0
    %v2698 = vmax.f32 %v2642, 0.0
    %v2699 = vmax.f32 %v2643, 0.0
    %v2700 = vmax.f32 %v2644, 0.0
    %v2701 = vmax.f32 %v2645, 0.0
    %v2702 = vmax.f32 %v2646, 0.0
    %v2703 = vmax.f32 %v2647, 0.0
    %v2704 = vmax.f32 %v2648, 0.0
    %v2705 = vmax.f32 %v2649, 0.0
    %v2706 = vmax.f32 %v2650, 0.0
    %v2707 = vmax.f32 %v2651, 0.0
    %v2708 = vmax.f32 %v2652, 0.0
    %v2709 = vmax.f32 %v2653, 0.0
    %v2710 = vmax.f32 %v2654, 0.0
    %v2711 = vld [vmem:[%s13] sm:$0xf]
    %v2712 = vld [vmem:[%s13 + $0x4] sm:$0xf]
    %v2713 = vld [vmem:[%s13 + $0x8] sm:$0xf]
    %v2714 = vld [vmem:[%s13 + $0xc] sm:$0xf]
    %v2715 = vld [vmem:[%s14] sm:$0x1]
    %v2716 = vld [vmem:[%s15] sm:$0x1]
    %v2717 = vpack.c.bf16 %v2656, %v2655
    %v2718 = vpack.c.bf16 %v2658, %v2657
    %v2719 = vpack.c.bf16 %v2660, %v2659
    %v2720 = vpack.c.bf16 %v2662, %v2661
    %v2721 = vpack.c.bf16 %v2664, %v2663
    %v2722 = vpack.c.bf16 %v2666, %v2665
    %v2723 = vpack.c.bf16 %v2668, %v2667
    %v2724 = vpack.c.bf16 %v2670, %v2669
    %v2725 = vpack.c.bf16 %v2672, %v2671
    %v2726 = vpack.c.bf16 %v2674, %v2673
    %v2727 = vpack.c.bf16 %v2676, %v2675
    %v2728 = vpack.c.bf16 %v2678, %v2677
    %v2729 = vpack.c.bf16 %v2680, %v2679
    %v2730 = vpack.c.bf16 %v2682, %v2681
    %v2731 = vpack.c.bf16 %v2684, %v2683
    %v2732 = vpack.c.bf16 %v2686, %v2685
    %v2733 = vpack.c.bf16 %v2688, %v2687
    %v2734 = vpack.c.bf16 %v2690, %v2689
    %v2735 = vpack.c.bf16 %v2692, %v2691
    %v2736 = vpack.c.bf16 %v2694, %v2693
    %v2737 = vpack.c.bf16 %v2696, %v2695
    %v2738 = vpack.c.bf16 %v2698, %v2697
    %v2739 = vpack.c.bf16 %v2700, %v2699
    %v2740 = vpack.c.bf16 %v2702, %v2701
    %v2741 = vpack.c.bf16 %v2704, %v2703
    %v2742 = vpack.c.bf16 %v2706, %v2705
    %v2743 = vpack.c.bf16 %v2708, %v2707
    %v2744 = vpack.c.bf16 %v2710, %v2709
    %v2749 = vunpack.c.l.b16 %v2711
    %v2750 = vunpack.c.l.b16 %v2712
    %v2751 = vunpack.c.l.b16 %v2713
    %v2752 = vunpack.c.l.b16 %v2714
    %v2753 = vpack.c.b16 %v2750, %v2749
    %v2754 = vpack.c.b16 %v2752, %v2751
    %v2758 = vsel %vm1039, %v2717, 0
    %v2761 = vsel %vm1039, %v2718, 0
    %v2764 = vsel %vm1039, %v2719, 0
    %v2767 = vsel %vm1039, %v2720, 0
    %v2770 = vsel %vm1039, %v2721, 0
    %v2773 = vsel %vm1039, %v2722, 0
    %v2776 = vsel %vm1039, %v2723, 0
    %v2779 = vsel %vm1039, %v2724, 0
    %v2782 = vsel %vm1039, %v2725, 0
    %v2785 = vsel %vm1039, %v2726, 0
    %v2788 = vsel %vm1039, %v2727, 0
    %v2791 = vsel %vm1039, %v2728, 0
    %v2794 = vsel %vm1039, %v2729, 0
    %v2797 = vsel %vm1039, %v2730, 0
    %v2800 = vsel %vm1039, %v2731, 0
    %v2803 = vsel %vm1039, %v2732, 0
    %v2806 = vsel %vm1039, %v2733, 0
    %v2809 = vsel %vm1039, %v2734, 0
    %v2812 = vsel %vm1039, %v2735, 0
    %v2815 = vsel %vm1039, %v2736, 0
    %v2818 = vsel %vm1039, %v2737, 0
    %v2821 = vsel %vm1039, %v2738, 0
    %v2824 = vsel %vm1039, %v2739, 0
    %v2827 = vsel %vm1039, %v2740, 0
    %v2830 = vsel %vm1039, %v2741, 0
    %v2833 = vsel %vm1039, %v2742, 0
    %v2836 = vsel %vm1039, %v2743, 0
    %v2839 = vsel %vm1039, %v2744, 0
    %2841 = vmatpush.bf16.msra.mxu0 0
    %2842 = vmatpush.bf16.msra.mxu0 0
    %2843 = vmatpush.bf16.msra.mxu0 0
    %2844 = vmatpush.bf16.msra.mxu0 0
    %2845 = vmatpush.bf16.msra.mxu0 0
    %2846 = vmatpush.bf16.msra.mxu0 0
    %2847 = vmatpush.bf16.msra.mxu0 %v2754
    %2848 = vmatpush.bf16.msra.mxu0 %v2753
    %2849 = vmatmul.bf16.gmra.mxu0 %v2758
    %v2850 = vpop.f32.mrf.mxu0
    %v2851 = vadd.f32 0.0, %v2850
    %v2852 = vpop.f32.mrf.mxu0
    %v2853 = vadd.f32 0.0, %v2852
    %2854 = vmatmul.bf16.gmra.mxu0 %v2761
    %v2855 = vpop.f32.mrf.mxu0
    %v2856 = vadd.f32 0.0, %v2855
    %v2857 = vpop.f32.mrf.mxu0
    %v2858 = vadd.f32 0.0, %v2857
    %2859 = vmatmul.bf16.gmra.mxu0 %v2764
    %v2860 = vpop.f32.mrf.mxu0
    %v2861 = vadd.f32 0.0, %v2860
    %v2862 = vpop.f32.mrf.mxu0
    %v2863 = vadd.f32 0.0, %v2862
    %2864 = vmatmul.bf16.gmra.mxu0 %v2767
    %v2865 = vpop.f32.mrf.mxu0
    %v2866 = vadd.f32 0.0, %v2865
    %v2867 = vpop.f32.mrf.mxu0
    %v2868 = vadd.f32 0.0, %v2867
    %2869 = vmatmul.bf16.gmra.mxu0 %v2770
    %v2870 = vpop.f32.mrf.mxu0
    %v2871 = vadd.f32 0.0, %v2870
    %v2872 = vpop.f32.mrf.mxu0
    %v2873 = vadd.f32 0.0, %v2872
    %2874 = vmatmul.bf16.gmra.mxu0 %v2773
    %v2875 = vpop.f32.mrf.mxu0
    %v2876 = vadd.f32 0.0, %v2875
    %v2877 = vpop.f32.mrf.mxu0
    %v2878 = vadd.f32 0.0, %v2877
    %2879 = vmatmul.bf16.gmra.mxu0 %v2776
    %v2880 = vpop.f32.mrf.mxu0
    %v2881 = vadd.f32 0.0, %v2880
    %v2882 = vpop.f32.mrf.mxu0
    %v2883 = vadd.f32 0.0, %v2882
    %2884 = vmatmul.bf16.gmra.mxu0 %v2779
    %v2885 = vpop.f32.mrf.mxu0
    %v2886 = vadd.f32 0.0, %v2885
    %v2887 = vpop.f32.mrf.mxu0
    %v2888 = vadd.f32 0.0, %v2887
    %2889 = vmatmul.bf16.gmra.mxu0 %v2782
    %v2890 = vpop.f32.mrf.mxu0
    %v2891 = vadd.f32 0.0, %v2890
    %v2892 = vpop.f32.mrf.mxu0
    %v2893 = vadd.f32 0.0, %v2892
    %2894 = vmatmul.bf16.gmra.mxu0 %v2785
    %v2895 = vpop.f32.mrf.mxu0
    %v2896 = vadd.f32 0.0, %v2895
    %v2897 = vpop.f32.mrf.mxu0
    %v2898 = vadd.f32 0.0, %v2897
    %2899 = vmatmul.bf16.gmra.mxu0 %v2788
    %v2900 = vpop.f32.mrf.mxu0
    %v2901 = vadd.f32 0.0, %v2900
    %v2902 = vpop.f32.mrf.mxu0
    %v2903 = vadd.f32 0.0, %v2902
    %2904 = vmatmul.bf16.gmra.mxu0 %v2791
    %v2905 = vpop.f32.mrf.mxu0
    %v2906 = vadd.f32 0.0, %v2905
    %v2907 = vpop.f32.mrf.mxu0
    %v2908 = vadd.f32 0.0, %v2907
    %2909 = vmatmul.bf16.gmra.mxu0 %v2794
    %v2910 = vpop.f32.mrf.mxu0
    %v2911 = vadd.f32 0.0, %v2910
    %v2912 = vpop.f32.mrf.mxu0
    %v2913 = vadd.f32 0.0, %v2912
    %2914 = vmatmul.bf16.gmra.mxu0 %v2797
    %v2915 = vpop.f32.mrf.mxu0
    %v2916 = vadd.f32 0.0, %v2915
    %v2917 = vpop.f32.mrf.mxu0
    %v2918 = vadd.f32 0.0, %v2917
    %2919 = vmatmul.bf16.gmra.mxu0 %v2800
    %v2920 = vpop.f32.mrf.mxu0
    %v2921 = vadd.f32 0.0, %v2920
    %v2922 = vpop.f32.mrf.mxu0
    %v2923 = vadd.f32 0.0, %v2922
    %2924 = vmatmul.bf16.gmra.mxu0 %v2803
    %v2925 = vpop.f32.mrf.mxu0
    %v2926 = vadd.f32 0.0, %v2925
    %v2927 = vpop.f32.mrf.mxu0
    %v2928 = vadd.f32 0.0, %v2927
    %2929 = vmatmul.bf16.gmra.mxu0 %v2806
    %v2930 = vpop.f32.mrf.mxu0
    %v2931 = vadd.f32 0.0, %v2930
    %v2932 = vpop.f32.mrf.mxu0
    %v2933 = vadd.f32 0.0, %v2932
    %2934 = vmatmul.bf16.gmra.mxu0 %v2809
    %v2935 = vpop.f32.mrf.mxu0
    %v2936 = vadd.f32 0.0, %v2935
    %v2937 = vpop.f32.mrf.mxu0
    %v2938 = vadd.f32 0.0, %v2937
    %2939 = vmatmul.bf16.gmra.mxu0 %v2812
    %v2940 = vpop.f32.mrf.mxu0
    %v2941 = vadd.f32 0.0, %v2940
    %v2942 = vpop.f32.mrf.mxu0
    %v2943 = vadd.f32 0.0, %v2942
    %2944 = vmatmul.bf16.gmra.mxu0 %v2815
    %v2945 = vpop.f32.mrf.mxu0
    %v2946 = vadd.f32 0.0, %v2945
    %v2947 = vpop.f32.mrf.mxu0
    %v2948 = vadd.f32 0.0, %v2947
    %2949 = vmatmul.bf16.gmra.mxu0 %v2818
    %v2950 = vpop.f32.mrf.mxu0
    %v2951 = vadd.f32 0.0, %v2950
    %v2952 = vpop.f32.mrf.mxu0
    %v2953 = vadd.f32 0.0, %v2952
    %2954 = vmatmul.bf16.gmra.mxu0 %v2821
    %v2955 = vpop.f32.mrf.mxu0
    %v2956 = vadd.f32 0.0, %v2955
    %v2957 = vpop.f32.mrf.mxu0
    %v2958 = vadd.f32 0.0, %v2957
    %2959 = vmatmul.bf16.gmra.mxu0 %v2824
    %v2960 = vpop.f32.mrf.mxu0
    %v2961 = vadd.f32 0.0, %v2960
    %v2962 = vpop.f32.mrf.mxu0
    %v2963 = vadd.f32 0.0, %v2962
    %2964 = vmatmul.bf16.gmra.mxu0 %v2827
    %v2965 = vpop.f32.mrf.mxu0
    %v2966 = vadd.f32 0.0, %v2965
    %v2967 = vpop.f32.mrf.mxu0
    %v2968 = vadd.f32 0.0, %v2967
    %2969 = vmatmul.bf16.gmra.mxu0 %v2830
    %v2970 = vpop.f32.mrf.mxu0
    %v2971 = vadd.f32 0.0, %v2970
    %v2972 = vpop.f32.mrf.mxu0
    %v2973 = vadd.f32 0.0, %v2972
    %2974 = vmatmul.bf16.gmra.mxu0 %v2833
    %v2975 = vpop.f32.mrf.mxu0
    %v2976 = vadd.f32 0.0, %v2975
    %v2977 = vpop.f32.mrf.mxu0
    %v2978 = vadd.f32 0.0, %v2977
    %2979 = vmatmul.bf16.gmra.mxu0 %v2836
    %v2980 = vpop.f32.mrf.mxu0
    %v2981 = vadd.f32 0.0, %v2980
    %v2982 = vpop.f32.mrf.mxu0
    %v2983 = vadd.f32 0.0, %v2982
    %2984 = vmatmul.bf16.gmra.mxu0 %v2839
    %v2985 = vpop.f32.mrf.mxu0
    %v2986 = vadd.f32 0.0, %v2985
    %v2987 = vpop.f32.mrf.mxu0
    %v2988 = vadd.f32 0.0, %v2987
    %2989 = vdwg.mxu0
    %v2990 = vsel %vm120, %v2851, 0.0
    %v2991 = vsel %vm120, %v2853, 0.0
    %v2992 = vadd.f32 %v2990, %v2991
    %v2993 = vsel %vm120, %v2856, 0.0
    %v2994 = vadd.f32 %v2992, %v2993
    %v2995 = vsel %vm120, %v2858, 0.0
    %v2996 = vadd.f32 %v2994, %v2995
    %v2997 = vsel %vm120, %v2861, 0.0
    %v2998 = vadd.f32 %v2996, %v2997
    %v2999 = vsel %vm120, %v2863, 0.0
    %v3000 = vadd.f32 %v2998, %v2999
    %v3001 = vsel %vm120, %v2866, 0.0
    %v3002 = vadd.f32 %v3000, %v3001
    %v3003 = vsel %vm120, %v2868, 0.0
    %v3004 = vadd.f32 %v3002, %v3003
    %v3005 = vrot.slane %v3004, 4
    %v3006 = vadd.f32 %v3004, %v3005
    %v3007 = vrot.slane %v3006, 2
    %v3008 = vadd.f32 %v3006, %v3007
    %v3009 = vrot.slane %v3008, 1
    %v3010 = vadd.f32 %v3008, %v3009
    %v3011 = vsel %vm120, %v2871, 0.0
    %v3012 = vsel %vm120, %v2873, 0.0
    %v3013 = vadd.f32 %v3011, %v3012
    %v3014 = vsel %vm120, %v2876, 0.0
    %v3015 = vadd.f32 %v3013, %v3014
    %v3016 = vsel %vm120, %v2878, 0.0
    %v3017 = vadd.f32 %v3015, %v3016
    %v3018 = vsel %vm120, %v2881, 0.0
    %v3019 = vadd.f32 %v3017, %v3018
    %v3020 = vsel %vm120, %v2883, 0.0
    %v3021 = vadd.f32 %v3019, %v3020
    %v3022 = vsel %vm120, %v2886, 0.0
    %v3023 = vadd.f32 %v3021, %v3022
    %v3024 = vsel %vm120, %v2888, 0.0
    %v3025 = vadd.f32 %v3023, %v3024
    %v3026 = vrot.slane %v3025, 4
    %v3027 = vadd.f32 %v3025, %v3026
    %v3028 = vrot.slane %v3027, 2
    %v3029 = vadd.f32 %v3027, %v3028
    %v3030 = vrot.slane %v3029, 1
    %v3031 = vadd.f32 %v3029, %v3030
    %v3032 = vsel %vm120, %v2891, 0.0
    %v3033 = vsel %vm120, %v2893, 0.0
    %v3034 = vadd.f32 %v3032, %v3033
    %v3035 = vsel %vm120, %v2896, 0.0
    %v3036 = vadd.f32 %v3034, %v3035
    %v3037 = vsel %vm120, %v2898, 0.0
    %v3038 = vadd.f32 %v3036, %v3037
    %v3039 = vsel %vm120, %v2901, 0.0
    %v3040 = vadd.f32 %v3038, %v3039
    %v3041 = vsel %vm120, %v2903, 0.0
    %v3042 = vadd.f32 %v3040, %v3041
    %v3043 = vsel %vm120, %v2906, 0.0
    %v3044 = vadd.f32 %v3042, %v3043
    %v3045 = vsel %vm120, %v2908, 0.0
    %v3046 = vadd.f32 %v3044, %v3045
    %v3047 = vrot.slane %v3046, 4
    %v3048 = vadd.f32 %v3046, %v3047
    %v3049 = vrot.slane %v3048, 2
    %v3050 = vadd.f32 %v3048, %v3049
    %v3051 = vrot.slane %v3050, 1
    %v3052 = vadd.f32 %v3050, %v3051
    %v3053 = vsel %vm120, %v2911, 0.0
    %v3054 = vsel %vm120, %v2913, 0.0
    %v3055 = vadd.f32 %v3053, %v3054
    %v3056 = vsel %vm120, %v2916, 0.0
    %v3057 = vadd.f32 %v3055, %v3056
    %v3058 = vsel %vm120, %v2918, 0.0
    %v3059 = vadd.f32 %v3057, %v3058
    %v3060 = vsel %vm120, %v2921, 0.0
    %v3061 = vadd.f32 %v3059, %v3060
    %v3062 = vsel %vm120, %v2923, 0.0
    %v3063 = vadd.f32 %v3061, %v3062
    %v3064 = vsel %vm120, %v2926, 0.0
    %v3065 = vadd.f32 %v3063, %v3064
    %v3066 = vsel %vm120, %v2928, 0.0
    %v3067 = vadd.f32 %v3065, %v3066
    %v3068 = vrot.slane %v3067, 4
    %v3069 = vadd.f32 %v3067, %v3068
    %v3070 = vrot.slane %v3069, 2
    %v3071 = vadd.f32 %v3069, %v3070
    %v3072 = vrot.slane %v3071, 1
    %v3073 = vadd.f32 %v3071, %v3072
    %v3074 = vsel %vm120, %v2931, 0.0
    %v3075 = vsel %vm120, %v2933, 0.0
    %v3076 = vadd.f32 %v3074, %v3075
    %v3077 = vsel %vm120, %v2936, 0.0
    %v3078 = vadd.f32 %v3076, %v3077
    %v3079 = vsel %vm120, %v2938, 0.0
    %v3080 = vadd.f32 %v3078, %v3079
    %v3081 = vsel %vm120, %v2941, 0.0
    %v3082 = vadd.f32 %v3080, %v3081
    %v3083 = vsel %vm120, %v2943, 0.0
    %v3084 = vadd.f32 %v3082, %v3083
    %v3085 = vsel %vm120, %v2946, 0.0
    %v3086 = vadd.f32 %v3084, %v3085
    %v3087 = vsel %vm120, %v2948, 0.0
    %v3088 = vadd.f32 %v3086, %v3087
    %v3089 = vrot.slane %v3088, 4
    %v3090 = vadd.f32 %v3088, %v3089
    %v3091 = vrot.slane %v3090, 2
    %v3092 = vadd.f32 %v3090, %v3091
    %v3093 = vrot.slane %v3092, 1
    %v3094 = vadd.f32 %v3092, %v3093
    %v3095 = vsel %vm120, %v2951, 0.0
    %v3096 = vsel %vm120, %v2953, 0.0
    %v3097 = vadd.f32 %v3095, %v3096
    %v3098 = vsel %vm120, %v2956, 0.0
    %v3099 = vadd.f32 %v3097, %v3098
    %v3100 = vsel %vm120, %v2958, 0.0
    %v3101 = vadd.f32 %v3099, %v3100
    %v3102 = vsel %vm120, %v2961, 0.0
    %v3103 = vadd.f32 %v3101, %v3102
    %v3104 = vsel %vm120, %v2963, 0.0
    %v3105 = vadd.f32 %v3103, %v3104
    %v3106 = vsel %vm120, %v2966, 0.0
    %v3107 = vadd.f32 %v3105, %v3106
    %v3108 = vsel %vm120, %v2968, 0.0
    %v3109 = vadd.f32 %v3107, %v3108
    %v3110 = vrot.slane %v3109, 4
    %v3111 = vadd.f32 %v3109, %v3110
    %v3112 = vrot.slane %v3111, 2
    %v3113 = vadd.f32 %v3111, %v3112
    %v3114 = vrot.slane %v3113, 1
    %v3115 = vadd.f32 %v3113, %v3114
    %v3116 = vsel %vm120, %v2971, 0.0
    %v3117 = vsel %vm120, %v2973, 0.0
    %v3118 = vadd.f32 %v3116, %v3117
    %v3119 = vsel %vm120, %v2976, 0.0
    %v3120 = vadd.f32 %v3118, %v3119
    %v3121 = vsel %vm120, %v2978, 0.0
    %v3122 = vadd.f32 %v3120, %v3121
    %v3123 = vsel %vm120, %v2981, 0.0
    %v3124 = vadd.f32 %v3122, %v3123
    %v3125 = vsel %vm120, %v2983, 0.0
    %v3126 = vadd.f32 %v3124, %v3125
    %v3127 = vsel %vm120, %v2986, 0.0
    %v3128 = vadd.f32 %v3126, %v3127
    %v3129 = vsel %vm120, %v2988, 0.0
    %v3130 = vadd.f32 %v3128, %v3129
    %v3131 = vrot.slane %v3130, 4
    %v3132 = vadd.f32 %v3130, %v3131
    %v3133 = vrot.slane %v3132, 2
    %v3134 = vadd.f32 %v3132, %v3133
    %v3135 = vrot.slane %v3134, 1
    %v3136 = vadd.f32 %v3134, %v3135
    %v3137 = vmul.f32 %v3010, %v274
    %v3138 = vmul.f32 %v3031, %v274
    %v3139 = vmul.f32 %v3052, %v274
    %v3140 = vmul.f32 %v3073, %v274
    %v3141 = vmul.f32 %v3094, %v274
    %v3142 = vmul.f32 %v3115, %v274
    %v3143 = vmul.f32 %v3136, %v274
    %v3144 = vsub.f32 %v2851, %v3137
    %v3145 = vsub.f32 %v2853, %v3137
    %v3146 = vsub.f32 %v2856, %v3137
    %v3147 = vsub.f32 %v2858, %v3137
    %v3148 = vsub.f32 %v2861, %v3137
    %v3149 = vsub.f32 %v2863, %v3137
    %v3150 = vsub.f32 %v2866, %v3137
    %v3151 = vsub.f32 %v2868, %v3137
    %v3152 = vsub.f32 %v2871, %v3138
    %v3153 = vsub.f32 %v2873, %v3138
    %v3154 = vsub.f32 %v2876, %v3138
    %v3155 = vsub.f32 %v2878, %v3138
    %v3156 = vsub.f32 %v2881, %v3138
    %v3157 = vsub.f32 %v2883, %v3138
    %v3158 = vsub.f32 %v2886, %v3138
    %v3159 = vsub.f32 %v2888, %v3138
    %v3160 = vsub.f32 %v2891, %v3139
    %v3161 = vsub.f32 %v2893, %v3139
    %v3162 = vsub.f32 %v2896, %v3139
    %v3163 = vsub.f32 %v2898, %v3139
    %v3164 = vsub.f32 %v2901, %v3139
    %v3165 = vsub.f32 %v2903, %v3139
    %v3166 = vsub.f32 %v2906, %v3139
    %v3167 = vsub.f32 %v2908, %v3139
    %v3168 = vsub.f32 %v2911, %v3140
    %v3169 = vsub.f32 %v2913, %v3140
    %v3170 = vsub.f32 %v2916, %v3140
    %v3171 = vsub.f32 %v2918, %v3140
    %v3172 = vsub.f32 %v2921, %v3140
    %v3173 = vsub.f32 %v2923, %v3140
    %v3174 = vsub.f32 %v2926, %v3140
    %v3175 = vsub.f32 %v2928, %v3140
    %v3176 = vsub.f32 %v2931, %v3141
    %v3177 = vsub.f32 %v2933, %v3141
    %v3178 = vsub.f32 %v2936, %v3141
    %v3179 = vsub.f32 %v2938, %v3141
    %v3180 = vsub.f32 %v2941, %v3141
    %v3181 = vsub.f32 %v2943, %v3141
    %v3182 = vsub.f32 %v2946, %v3141
    %v3183 = vsub.f32 %v2948, %v3141
    %v3184 = vsub.f32 %v2951, %v3142
    %v3185 = vsub.f32 %v2953, %v3142
    %v3186 = vsub.f32 %v2956, %v3142
    %v3187 = vsub.f32 %v2958, %v3142
    %v3188 = vsub.f32 %v2961, %v3142
    %v3189 = vsub.f32 %v2963, %v3142
    %v3190 = vsub.f32 %v2966, %v3142
    %v3191 = vsub.f32 %v2968, %v3142
    %v3192 = vsub.f32 %v2971, %v3143
    %v3193 = vsub.f32 %v2973, %v3143
    %v3194 = vsub.f32 %v2976, %v3143
    %v3195 = vsub.f32 %v2978, %v3143
    %v3196 = vsub.f32 %v2981, %v3143
    %v3197 = vsub.f32 %v2983, %v3143
    %v3198 = vsub.f32 %v2986, %v3143
    %v3199 = vsub.f32 %v2988, %v3143
    %v3200 = vmul.f32 %v3144, %v3144
    %v3201 = vmul.f32 %v3145, %v3145
    %v3202 = vmul.f32 %v3146, %v3146
    %v3203 = vmul.f32 %v3147, %v3147
    %v3204 = vmul.f32 %v3148, %v3148
    %v3205 = vmul.f32 %v3149, %v3149
    %v3206 = vmul.f32 %v3150, %v3150
    %v3207 = vmul.f32 %v3151, %v3151
    %v3208 = vmul.f32 %v3152, %v3152
    %v3209 = vmul.f32 %v3153, %v3153
    %v3210 = vmul.f32 %v3154, %v3154
    %v3211 = vmul.f32 %v3155, %v3155
    %v3212 = vmul.f32 %v3156, %v3156
    %v3213 = vmul.f32 %v3157, %v3157
    %v3214 = vmul.f32 %v3158, %v3158
    %v3215 = vmul.f32 %v3159, %v3159
    %v3216 = vmul.f32 %v3160, %v3160
    %v3217 = vmul.f32 %v3161, %v3161
    %v3218 = vmul.f32 %v3162, %v3162
    %v3219 = vmul.f32 %v3163, %v3163
    %v3220 = vmul.f32 %v3164, %v3164
    %v3221 = vmul.f32 %v3165, %v3165
    %v3222 = vmul.f32 %v3166, %v3166
    %v3223 = vmul.f32 %v3167, %v3167
    %v3224 = vmul.f32 %v3168, %v3168
    %v3225 = vmul.f32 %v3169, %v3169
    %v3226 = vmul.f32 %v3170, %v3170
    %v3227 = vmul.f32 %v3171, %v3171
    %v3228 = vmul.f32 %v3172, %v3172
    %v3229 = vmul.f32 %v3173, %v3173
    %v3230 = vmul.f32 %v3174, %v3174
    %v3231 = vmul.f32 %v3175, %v3175
    %v3232 = vmul.f32 %v3176, %v3176
    %v3233 = vmul.f32 %v3177, %v3177
    %v3234 = vmul.f32 %v3178, %v3178
    %v3235 = vmul.f32 %v3179, %v3179
    %v3236 = vmul.f32 %v3180, %v3180
    %v3237 = vmul.f32 %v3181, %v3181
    %v3238 = vmul.f32 %v3182, %v3182
    %v3239 = vmul.f32 %v3183, %v3183
    %v3240 = vmul.f32 %v3184, %v3184
    %v3241 = vmul.f32 %v3185, %v3185
    %v3242 = vmul.f32 %v3186, %v3186
    %v3243 = vmul.f32 %v3187, %v3187
    %v3244 = vmul.f32 %v3188, %v3188
    %v3245 = vmul.f32 %v3189, %v3189
    %v3246 = vmul.f32 %v3190, %v3190
    %v3247 = vmul.f32 %v3191, %v3191
    %v3248 = vmul.f32 %v3192, %v3192
    %v3249 = vmul.f32 %v3193, %v3193
    %v3250 = vmul.f32 %v3194, %v3194
    %v3251 = vmul.f32 %v3195, %v3195
    %v3252 = vmul.f32 %v3196, %v3196
    %v3253 = vmul.f32 %v3197, %v3197
    %v3254 = vmul.f32 %v3198, %v3198
    %v3255 = vmul.f32 %v3199, %v3199
    %v3256 = vsel %vm120, %v3200, 0.0
    %v3257 = vsel %vm120, %v3201, 0.0
    %v3258 = vadd.f32 %v3256, %v3257
    %v3259 = vsel %vm120, %v3202, 0.0
    %v3260 = vadd.f32 %v3258, %v3259
    %v3261 = vsel %vm120, %v3203, 0.0
    %v3262 = vadd.f32 %v3260, %v3261
    %v3263 = vsel %vm120, %v3204, 0.0
    %v3264 = vadd.f32 %v3262, %v3263
    %v3265 = vsel %vm120, %v3205, 0.0
    %v3266 = vadd.f32 %v3264, %v3265
    %v3267 = vsel %vm120, %v3206, 0.0
    %v3268 = vadd.f32 %v3266, %v3267
    %v3269 = vsel %vm120, %v3207, 0.0
    %v3270 = vadd.f32 %v3268, %v3269
    %v3271 = vrot.slane %v3270, 4
    %v3272 = vadd.f32 %v3270, %v3271
    %v3273 = vrot.slane %v3272, 2
    %v3274 = vadd.f32 %v3272, %v3273
    %v3275 = vrot.slane %v3274, 1
    %v3276 = vadd.f32 %v3274, %v3275
    %v3277 = vsel %vm120, %v3208, 0.0
    %v3278 = vsel %vm120, %v3209, 0.0
    %v3279 = vadd.f32 %v3277, %v3278
    %v3280 = vsel %vm120, %v3210, 0.0
    %v3281 = vadd.f32 %v3279, %v3280
    %v3282 = vsel %vm120, %v3211, 0.0
    %v3283 = vadd.f32 %v3281, %v3282
    %v3284 = vsel %vm120, %v3212, 0.0
    %v3285 = vadd.f32 %v3283, %v3284
    %v3286 = vsel %vm120, %v3213, 0.0
    %v3287 = vadd.f32 %v3285, %v3286
    %v3288 = vsel %vm120, %v3214, 0.0
    %v3289 = vadd.f32 %v3287, %v3288
    %v3290 = vsel %vm120, %v3215, 0.0
    %v3291 = vadd.f32 %v3289, %v3290
    %v3292 = vrot.slane %v3291, 4
    %v3293 = vadd.f32 %v3291, %v3292
    %v3294 = vrot.slane %v3293, 2
    %v3295 = vadd.f32 %v3293, %v3294
    %v3296 = vrot.slane %v3295, 1
    %v3297 = vadd.f32 %v3295, %v3296
    %v3298 = vsel %vm120, %v3216, 0.0
    %v3299 = vsel %vm120, %v3217, 0.0
    %v3300 = vadd.f32 %v3298, %v3299
    %v3301 = vsel %vm120, %v3218, 0.0
    %v3302 = vadd.f32 %v3300, %v3301
    %v3303 = vsel %vm120, %v3219, 0.0
    %v3304 = vadd.f32 %v3302, %v3303
    %v3305 = vsel %vm120, %v3220, 0.0
    %v3306 = vadd.f32 %v3304, %v3305
    %v3307 = vsel %vm120, %v3221, 0.0
    %v3308 = vadd.f32 %v3306, %v3307
    %v3309 = vsel %vm120, %v3222, 0.0
    %v3310 = vadd.f32 %v3308, %v3309
    %v3311 = vsel %vm120, %v3223, 0.0
    %v3312 = vadd.f32 %v3310, %v3311
    %v3313 = vrot.slane %v3312, 4
    %v3314 = vadd.f32 %v3312, %v3313
    %v3315 = vrot.slane %v3314, 2
    %v3316 = vadd.f32 %v3314, %v3315
    %v3317 = vrot.slane %v3316, 1
    %v3318 = vadd.f32 %v3316, %v3317
    %v3319 = vsel %vm120, %v3224, 0.0
    %v3320 = vsel %vm120, %v3225, 0.0
    %v3321 = vadd.f32 %v3319, %v3320
    %v3322 = vsel %vm120, %v3226, 0.0
    %v3323 = vadd.f32 %v3321, %v3322
    %v3324 = vsel %vm120, %v3227, 0.0
    %v3325 = vadd.f32 %v3323, %v3324
    %v3326 = vsel %vm120, %v3228, 0.0
    %v3327 = vadd.f32 %v3325, %v3326
    %v3328 = vsel %vm120, %v3229, 0.0
    %v3329 = vadd.f32 %v3327, %v3328
    %v3330 = vsel %vm120, %v3230, 0.0
    %v3331 = vadd.f32 %v3329, %v3330
    %v3332 = vsel %vm120, %v3231, 0.0
    %v3333 = vadd.f32 %v3331, %v3332
    %v3334 = vrot.slane %v3333, 4
    %v3335 = vadd.f32 %v3333, %v3334
    %v3336 = vrot.slane %v3335, 2
    %v3337 = vadd.f32 %v3335, %v3336
    %v3338 = vrot.slane %v3337, 1
    %v3339 = vadd.f32 %v3337, %v3338
    %v3340 = vsel %vm120, %v3232, 0.0
    %v3341 = vsel %vm120, %v3233, 0.0
    %v3342 = vadd.f32 %v3340, %v3341
    %v3343 = vsel %vm120, %v3234, 0.0
    %v3344 = vadd.f32 %v3342, %v3343
    %v3345 = vsel %vm120, %v3235, 0.0
    %v3346 = vadd.f32 %v3344, %v3345
    %v3347 = vsel %vm120, %v3236, 0.0
    %v3348 = vadd.f32 %v3346, %v3347
    %v3349 = vsel %vm120, %v3237, 0.0
    %v3350 = vadd.f32 %v3348, %v3349
    %v3351 = vsel %vm120, %v3238, 0.0
    %v3352 = vadd.f32 %v3350, %v3351
    %v3353 = vsel %vm120, %v3239, 0.0
    %v3354 = vadd.f32 %v3352, %v3353
    %v3355 = vrot.slane %v3354, 4
    %v3356 = vadd.f32 %v3354, %v3355
    %v3357 = vrot.slane %v3356, 2
    %v3358 = vadd.f32 %v3356, %v3357
    %v3359 = vrot.slane %v3358, 1
    %v3360 = vadd.f32 %v3358, %v3359
    %v3361 = vsel %vm120, %v3240, 0.0
    %v3362 = vsel %vm120, %v3241, 0.0
    %v3363 = vadd.f32 %v3361, %v3362
    %v3364 = vsel %vm120, %v3242, 0.0
    %v3365 = vadd.f32 %v3363, %v3364
    %v3366 = vsel %vm120, %v3243, 0.0
    %v3367 = vadd.f32 %v3365, %v3366
    %v3368 = vsel %vm120, %v3244, 0.0
    %v3369 = vadd.f32 %v3367, %v3368
    %v3370 = vsel %vm120, %v3245, 0.0
    %v3371 = vadd.f32 %v3369, %v3370
    %v3372 = vsel %vm120, %v3246, 0.0
    %v3373 = vadd.f32 %v3371, %v3372
    %v3374 = vsel %vm120, %v3247, 0.0
    %v3375 = vadd.f32 %v3373, %v3374
    %v3376 = vrot.slane %v3375, 4
    %v3377 = vadd.f32 %v3375, %v3376
    %v3378 = vrot.slane %v3377, 2
    %v3379 = vadd.f32 %v3377, %v3378
    %v3380 = vrot.slane %v3379, 1
    %v3381 = vadd.f32 %v3379, %v3380
    %v3382 = vsel %vm120, %v3248, 0.0
    %v3383 = vsel %vm120, %v3249, 0.0
    %v3384 = vadd.f32 %v3382, %v3383
    %v3385 = vsel %vm120, %v3250, 0.0
    %v3386 = vadd.f32 %v3384, %v3385
    %v3387 = vsel %vm120, %v3251, 0.0
    %v3388 = vadd.f32 %v3386, %v3387
    %v3389 = vsel %vm120, %v3252, 0.0
    %v3390 = vadd.f32 %v3388, %v3389
    %v3391 = vsel %vm120, %v3253, 0.0
    %v3392 = vadd.f32 %v3390, %v3391
    %v3393 = vsel %vm120, %v3254, 0.0
    %v3394 = vadd.f32 %v3392, %v3393
    %v3395 = vsel %vm120, %v3255, 0.0
    %v3396 = vadd.f32 %v3394, %v3395
    %v3397 = vrot.slane %v3396, 4
    %v3398 = vadd.f32 %v3396, %v3397
    %v3399 = vrot.slane %v3398, 2
    %v3400 = vadd.f32 %v3398, %v3399
    %v3401 = vrot.slane %v3400, 1
    %v3402 = vadd.f32 %v3400, %v3401
    %v3403 = vmul.f32 %v3276, %v274
    %v3404 = vmul.f32 %v3297, %v274
    %v3405 = vmul.f32 %v3318, %v274
    %v3406 = vmul.f32 %v3339, %v274
    %v3407 = vmul.f32 %v3360, %v274
    %v3408 = vmul.f32 %v3381, %v274
    %v3409 = vmul.f32 %v3402, %v274
    %v3410 = vadd.f32 %v3403, 1e-06
    %v3411 = vadd.f32 %v3404, 1e-06
    %v3412 = vadd.f32 %v3405, 1e-06
    %v3413 = vadd.f32 %v3406, 1e-06
    %v3414 = vadd.f32 %v3407, 1e-06
    %v3415 = vadd.f32 %v3408, 1e-06
    %v3416 = vadd.f32 %v3409, 1e-06
    %v3417 = vrsqrt.pop %v3410
    %v3418 = vmul.f32 %v3417, %v3410
    %v3419 = vmul.f32 %v3418, %v3417
    %v3420 = vmul.f32 0.5, %v3419
    %v3421 = vsub.f32 1.5, %v3420
    %v3422 = vmul.f32 %v3417, %v3421
    %vm3423 = vweird.f32 %v3410
    %vm3424 = vweird.f32 %v3417
    %vm3425 = vmor %vm3423, %vm3424
    %v3426 = vsel %vm3425, %v3417, %v3422
    %v3427 = vrsqrt.pop %v3411
    %v3428 = vmul.f32 %v3427, %v3411
    %v3429 = vmul.f32 %v3428, %v3427
    %v3430 = vmul.f32 0.5, %v3429
    %v3431 = vsub.f32 1.5, %v3430
    %v3432 = vmul.f32 %v3427, %v3431
    %vm3433 = vweird.f32 %v3411
    %vm3434 = vweird.f32 %v3427
    %vm3435 = vmor %vm3433, %vm3434
    %v3436 = vsel %vm3435, %v3427, %v3432
    %v3437 = vrsqrt.pop %v3412
    %v3438 = vmul.f32 %v3437, %v3412
    %v3439 = vmul.f32 %v3438, %v3437
    %v3440 = vmul.f32 0.5, %v3439
    %v3441 = vsub.f32 1.5, %v3440
    %v3442 = vmul.f32 %v3437, %v3441
    %vm3443 = vweird.f32 %v3412
    %vm3444 = vweird.f32 %v3437
    %vm3445 = vmor %vm3443, %vm3444
    %v3446 = vsel %vm3445, %v3437, %v3442
    %v3447 = vrsqrt.pop %v3413
    %v3448 = vmul.f32 %v3447, %v3413
    %v3449 = vmul.f32 %v3448, %v3447
    %v3450 = vmul.f32 0.5, %v3449
    %v3451 = vsub.f32 1.5, %v3450
    %v3452 = vmul.f32 %v3447, %v3451
    %vm3453 = vweird.f32 %v3413
    %vm3454 = vweird.f32 %v3447
    %vm3455 = vmor %vm3453, %vm3454
    %v3456 = vsel %vm3455, %v3447, %v3452
    %v3457 = vrsqrt.pop %v3414
    %v3458 = vmul.f32 %v3457, %v3414
    %v3459 = vmul.f32 %v3458, %v3457
    %v3460 = vmul.f32 0.5, %v3459
    %v3461 = vsub.f32 1.5, %v3460
    %v3462 = vmul.f32 %v3457, %v3461
    %vm3463 = vweird.f32 %v3414
    %vm3464 = vweird.f32 %v3457
    %vm3465 = vmor %vm3463, %vm3464
    %v3466 = vsel %vm3465, %v3457, %v3462
    %v3467 = vrsqrt.pop %v3415
    %v3468 = vmul.f32 %v3467, %v3415
    %v3469 = vmul.f32 %v3468, %v3467
    %v3470 = vmul.f32 0.5, %v3469
    %v3471 = vsub.f32 1.5, %v3470
    %v3472 = vmul.f32 %v3467, %v3471
    %vm3473 = vweird.f32 %v3415
    %vm3474 = vweird.f32 %v3467
    %vm3475 = vmor %vm3473, %vm3474
    %v3476 = vsel %vm3475, %v3467, %v3472
    %v3477 = vrsqrt.pop %v3416
    %v3478 = vmul.f32 %v3477, %v3416
    %v3479 = vmul.f32 %v3478, %v3477
    %v3480 = vmul.f32 0.5, %v3479
    %v3481 = vsub.f32 1.5, %v3480
    %v3482 = vmul.f32 %v3477, %v3481
    %vm3483 = vweird.f32 %v3416
    %vm3484 = vweird.f32 %v3477
    %vm3485 = vmor %vm3483, %vm3484
    %v3486 = vsel %vm3485, %v3477, %v3482
    %v3487 = vmul.f32 %v2715, %v3426
    %v3488 = vmul.f32 %v2715, %v3436
    %v3489 = vmul.f32 %v2715, %v3446
    %v3490 = vmul.f32 %v2715, %v3456
    %v3491 = vmul.f32 %v2715, %v3466
    %v3492 = vmul.f32 %v2715, %v3476
    %v3493 = vmul.f32 %v2715, %v3486
    %v3501 = vperm.slane %v3487, 0
    %v3502 = vperm.slane %v3488, 0
    %v3503 = vperm.slane %v3489, 0
    %v3504 = vperm.slane %v3490, 0
    %v3505 = vperm.slane %v3491, 0
    %v3506 = vperm.slane %v3492, 0
    %v3507 = vperm.slane %v3493, 0
    %v3515 = vmul.f32 %v3144, %v3501
    %v3516 = vmul.f32 %v3145, %v3501
    %v3517 = vmul.f32 %v3146, %v3501
    %v3518 = vmul.f32 %v3147, %v3501
    %v3519 = vmul.f32 %v3148, %v3501
    %v3520 = vmul.f32 %v3149, %v3501
    %v3521 = vmul.f32 %v3150, %v3501
    %v3522 = vmul.f32 %v3151, %v3501
    %v3523 = vmul.f32 %v3152, %v3502
    %v3524 = vmul.f32 %v3153, %v3502
    %v3525 = vmul.f32 %v3154, %v3502
    %v3526 = vmul.f32 %v3155, %v3502
    %v3527 = vmul.f32 %v3156, %v3502
    %v3528 = vmul.f32 %v3157, %v3502
    %v3529 = vmul.f32 %v3158, %v3502
    %v3530 = vmul.f32 %v3159, %v3502
    %v3531 = vmul.f32 %v3160, %v3503
    %v3532 = vmul.f32 %v3161, %v3503
    %v3533 = vmul.f32 %v3162, %v3503
    %v3534 = vmul.f32 %v3163, %v3503
    %v3535 = vmul.f32 %v3164, %v3503
    %v3536 = vmul.f32 %v3165, %v3503
    %v3537 = vmul.f32 %v3166, %v3503
    %v3538 = vmul.f32 %v3167, %v3503
    %v3539 = vmul.f32 %v3168, %v3504
    %v3540 = vmul.f32 %v3169, %v3504
    %v3541 = vmul.f32 %v3170, %v3504
    %v3542 = vmul.f32 %v3171, %v3504
    %v3543 = vmul.f32 %v3172, %v3504
    %v3544 = vmul.f32 %v3173, %v3504
    %v3545 = vmul.f32 %v3174, %v3504
    %v3546 = vmul.f32 %v3175, %v3504
    %v3547 = vmul.f32 %v3176, %v3505
    %v3548 = vmul.f32 %v3177, %v3505
    %v3549 = vmul.f32 %v3178, %v3505
    %v3550 = vmul.f32 %v3179, %v3505
    %v3551 = vmul.f32 %v3180, %v3505
    %v3552 = vmul.f32 %v3181, %v3505
    %v3553 = vmul.f32 %v3182, %v3505
    %v3554 = vmul.f32 %v3183, %v3505
    %v3555 = vmul.f32 %v3184, %v3506
    %v3556 = vmul.f32 %v3185, %v3506
    %v3557 = vmul.f32 %v3186, %v3506
    %v3558 = vmul.f32 %v3187, %v3506
    %v3559 = vmul.f32 %v3188, %v3506
    %v3560 = vmul.f32 %v3189, %v3506
    %v3561 = vmul.f32 %v3190, %v3506
    %v3562 = vmul.f32 %v3191, %v3506
    %v3563 = vmul.f32 %v3192, %v3507
    %v3564 = vmul.f32 %v3193, %v3507
    %v3565 = vmul.f32 %v3194, %v3507
    %v3566 = vmul.f32 %v3195, %v3507
    %v3567 = vmul.f32 %v3196, %v3507
    %v3568 = vmul.f32 %v3197, %v3507
    %v3569 = vmul.f32 %v3198, %v3507
    %v3570 = vmul.f32 %v3199, %v3507
    %v3572 = vperm.slane %v2716, 0
    %v3574 = vadd.f32 %v3515, %v3572
    %v3575 = vadd.f32 %v3516, %v3572
    %v3576 = vadd.f32 %v3517, %v3572
    %v3577 = vadd.f32 %v3518, %v3572
    %v3578 = vadd.f32 %v3519, %v3572
    %v3579 = vadd.f32 %v3520, %v3572
    %v3580 = vadd.f32 %v3521, %v3572
    %v3581 = vadd.f32 %v3522, %v3572
    %v3582 = vadd.f32 %v3523, %v3572
    %v3583 = vadd.f32 %v3524, %v3572
    %v3584 = vadd.f32 %v3525, %v3572
    %v3585 = vadd.f32 %v3526, %v3572
    %v3586 = vadd.f32 %v3527, %v3572
    %v3587 = vadd.f32 %v3528, %v3572
    %v3588 = vadd.f32 %v3529, %v3572
    %v3589 = vadd.f32 %v3530, %v3572
    %v3590 = vadd.f32 %v3531, %v3572
    %v3591 = vadd.f32 %v3532, %v3572
    %v3592 = vadd.f32 %v3533, %v3572
    %v3593 = vadd.f32 %v3534, %v3572
    %v3594 = vadd.f32 %v3535, %v3572
    %v3595 = vadd.f32 %v3536, %v3572
    %v3596 = vadd.f32 %v3537, %v3572
    %v3597 = vadd.f32 %v3538, %v3572
    %v3598 = vadd.f32 %v3539, %v3572
    %v3599 = vadd.f32 %v3540, %v3572
    %v3600 = vadd.f32 %v3541, %v3572
    %v3601 = vadd.f32 %v3542, %v3572
    %v3602 = vadd.f32 %v3543, %v3572
    %v3603 = vadd.f32 %v3544, %v3572
    %v3604 = vadd.f32 %v3545, %v3572
    %v3605 = vadd.f32 %v3546, %v3572
    %v3606 = vadd.f32 %v3547, %v3572
    %v3607 = vadd.f32 %v3548, %v3572
    %v3608 = vadd.f32 %v3549, %v3572
    %v3609 = vadd.f32 %v3550, %v3572
    %v3610 = vadd.f32 %v3551, %v3572
    %v3611 = vadd.f32 %v3552, %v3572
    %v3612 = vadd.f32 %v3553, %v3572
    %v3613 = vadd.f32 %v3554, %v3572
    %v3614 = vadd.f32 %v3555, %v3572
    %v3615 = vadd.f32 %v3556, %v3572
    %v3616 = vadd.f32 %v3557, %v3572
    %v3617 = vadd.f32 %v3558, %v3572
    %v3618 = vadd.f32 %v3559, %v3572
    %v3619 = vadd.f32 %v3560, %v3572
    %v3620 = vadd.f32 %v3561, %v3572
    %v3621 = vadd.f32 %v3562, %v3572
    %v3622 = vadd.f32 %v3563, %v3572
    %v3623 = vadd.f32 %v3564, %v3572
    %v3624 = vadd.f32 %v3565, %v3572
    %v3625 = vadd.f32 %v3566, %v3572
    %v3626 = vadd.f32 %v3567, %v3572
    %v3627 = vadd.f32 %v3568, %v3572
    %v3628 = vadd.f32 %v3569, %v3572
    %v3629 = vadd.f32 %v3570, %v3572
    %v3630 = vmax.f32 %v3574, 0.0
    %v3631 = vmax.f32 %v3575, 0.0
    %v3632 = vmax.f32 %v3576, 0.0
    %v3633 = vmax.f32 %v3577, 0.0
    %v3634 = vmax.f32 %v3578, 0.0
    %v3635 = vmax.f32 %v3579, 0.0
    %v3636 = vmax.f32 %v3580, 0.0
    %v3637 = vmax.f32 %v3581, 0.0
    %v3638 = vmax.f32 %v3582, 0.0
    %v3639 = vmax.f32 %v3583, 0.0
    %v3640 = vmax.f32 %v3584, 0.0
    %v3641 = vmax.f32 %v3585, 0.0
    %v3642 = vmax.f32 %v3586, 0.0
    %v3643 = vmax.f32 %v3587, 0.0
    %v3644 = vmax.f32 %v3588, 0.0
    %v3645 = vmax.f32 %v3589, 0.0
    %v3646 = vmax.f32 %v3590, 0.0
    %v3647 = vmax.f32 %v3591, 0.0
    %v3648 = vmax.f32 %v3592, 0.0
    %v3649 = vmax.f32 %v3593, 0.0
    %v3650 = vmax.f32 %v3594, 0.0
    %v3651 = vmax.f32 %v3595, 0.0
    %v3652 = vmax.f32 %v3596, 0.0
    %v3653 = vmax.f32 %v3597, 0.0
    %v3654 = vmax.f32 %v3598, 0.0
    %v3655 = vmax.f32 %v3599, 0.0
    %v3656 = vmax.f32 %v3600, 0.0
    %v3657 = vmax.f32 %v3601, 0.0
    %v3658 = vmax.f32 %v3602, 0.0
    %v3659 = vmax.f32 %v3603, 0.0
    %v3660 = vmax.f32 %v3604, 0.0
    %v3661 = vmax.f32 %v3605, 0.0
    %v3662 = vmax.f32 %v3606, 0.0
    %v3663 = vmax.f32 %v3607, 0.0
    %v3664 = vmax.f32 %v3608, 0.0
    %v3665 = vmax.f32 %v3609, 0.0
    %v3666 = vmax.f32 %v3610, 0.0
    %v3667 = vmax.f32 %v3611, 0.0
    %v3668 = vmax.f32 %v3612, 0.0
    %v3669 = vmax.f32 %v3613, 0.0
    %v3670 = vmax.f32 %v3614, 0.0
    %v3671 = vmax.f32 %v3615, 0.0
    %v3672 = vmax.f32 %v3616, 0.0
    %v3673 = vmax.f32 %v3617, 0.0
    %v3674 = vmax.f32 %v3618, 0.0
    %v3675 = vmax.f32 %v3619, 0.0
    %v3676 = vmax.f32 %v3620, 0.0
    %v3677 = vmax.f32 %v3621, 0.0
    %v3678 = vmax.f32 %v3622, 0.0
    %v3679 = vmax.f32 %v3623, 0.0
    %v3680 = vmax.f32 %v3624, 0.0
    %v3681 = vmax.f32 %v3625, 0.0
    %v3682 = vmax.f32 %v3626, 0.0
    %v3683 = vmax.f32 %v3627, 0.0
    %v3684 = vmax.f32 %v3628, 0.0
    %v3685 = vmax.f32 %v3629, 0.0
    %v3686 = vld [vmem:[%s16] sm:$0x1]
    %v3687 = vmul.f32 %v3686, 0.0625
    %v3688 = vld [vmem:[%s17] sm:$0x1]
    %v3689 = vmul.f32 %v3688, 0.0625
    %v3690 = vsel %vm120, %v3630, 0.0
    %v3691 = vsel %vm120, %v3631, 0.0
    %v3692 = vadd.f32 %v3690, %v3691
    %v3693 = vsel %vm120, %v3632, 0.0
    %v3694 = vadd.f32 %v3692, %v3693
    %v3695 = vsel %vm120, %v3633, 0.0
    %v3696 = vadd.f32 %v3694, %v3695
    %v3697 = vsel %vm120, %v3634, 0.0
    %v3698 = vadd.f32 %v3696, %v3697
    %v3699 = vsel %vm120, %v3635, 0.0
    %v3700 = vadd.f32 %v3698, %v3699
    %v3701 = vsel %vm120, %v3636, 0.0
    %v3702 = vadd.f32 %v3700, %v3701
    %v3703 = vsel %vm120, %v3637, 0.0
    %v3704 = vadd.f32 %v3702, %v3703
    %v3705 = vrot.slane %v3704, 4
    %v3706 = vadd.f32 %v3704, %v3705
    %v3707 = vrot.slane %v3706, 2
    %v3708 = vadd.f32 %v3706, %v3707
    %v3709 = vrot.slane %v3708, 1
    %v3710 = vadd.f32 %v3708, %v3709
    %v3711 = vsel %vm120, %v3638, 0.0
    %v3712 = vsel %vm120, %v3639, 0.0
    %v3713 = vadd.f32 %v3711, %v3712
    %v3714 = vsel %vm120, %v3640, 0.0
    %v3715 = vadd.f32 %v3713, %v3714
    %v3716 = vsel %vm120, %v3641, 0.0
    %v3717 = vadd.f32 %v3715, %v3716
    %v3718 = vsel %vm120, %v3642, 0.0
    %v3719 = vadd.f32 %v3717, %v3718
    %v3720 = vsel %vm120, %v3643, 0.0
    %v3721 = vadd.f32 %v3719, %v3720
    %v3722 = vsel %vm120, %v3644, 0.0
    %v3723 = vadd.f32 %v3721, %v3722
    %v3724 = vsel %vm120, %v3645, 0.0
    %v3725 = vadd.f32 %v3723, %v3724
    %v3726 = vrot.slane %v3725, 4
    %v3727 = vadd.f32 %v3725, %v3726
    %v3728 = vrot.slane %v3727, 2
    %v3729 = vadd.f32 %v3727, %v3728
    %v3730 = vrot.slane %v3729, 1
    %v3731 = vadd.f32 %v3729, %v3730
    %v3732 = vsel %vm120, %v3646, 0.0
    %v3733 = vsel %vm120, %v3647, 0.0
    %v3734 = vadd.f32 %v3732, %v3733
    %v3735 = vsel %vm120, %v3648, 0.0
    %v3736 = vadd.f32 %v3734, %v3735
    %v3737 = vsel %vm120, %v3649, 0.0
    %v3738 = vadd.f32 %v3736, %v3737
    %v3739 = vsel %vm120, %v3650, 0.0
    %v3740 = vadd.f32 %v3738, %v3739
    %v3741 = vsel %vm120, %v3651, 0.0
    %v3742 = vadd.f32 %v3740, %v3741
    %v3743 = vsel %vm120, %v3652, 0.0
    %v3744 = vadd.f32 %v3742, %v3743
    %v3745 = vsel %vm120, %v3653, 0.0
    %v3746 = vadd.f32 %v3744, %v3745
    %v3747 = vrot.slane %v3746, 4
    %v3748 = vadd.f32 %v3746, %v3747
    %v3749 = vrot.slane %v3748, 2
    %v3750 = vadd.f32 %v3748, %v3749
    %v3751 = vrot.slane %v3750, 1
    %v3752 = vadd.f32 %v3750, %v3751
    %v3753 = vsel %vm120, %v3654, 0.0
    %v3754 = vsel %vm120, %v3655, 0.0
    %v3755 = vadd.f32 %v3753, %v3754
    %v3756 = vsel %vm120, %v3656, 0.0
    %v3757 = vadd.f32 %v3755, %v3756
    %v3758 = vsel %vm120, %v3657, 0.0
    %v3759 = vadd.f32 %v3757, %v3758
    %v3760 = vsel %vm120, %v3658, 0.0
    %v3761 = vadd.f32 %v3759, %v3760
    %v3762 = vsel %vm120, %v3659, 0.0
    %v3763 = vadd.f32 %v3761, %v3762
    %v3764 = vsel %vm120, %v3660, 0.0
    %v3765 = vadd.f32 %v3763, %v3764
    %v3766 = vsel %vm120, %v3661, 0.0
    %v3767 = vadd.f32 %v3765, %v3766
    %v3768 = vrot.slane %v3767, 4
    %v3769 = vadd.f32 %v3767, %v3768
    %v3770 = vrot.slane %v3769, 2
    %v3771 = vadd.f32 %v3769, %v3770
    %v3772 = vrot.slane %v3771, 1
    %v3773 = vadd.f32 %v3771, %v3772
    %v3774 = vsel %vm120, %v3662, 0.0
    %v3775 = vsel %vm120, %v3663, 0.0
    %v3776 = vadd.f32 %v3774, %v3775
    %v3777 = vsel %vm120, %v3664, 0.0
    %v3778 = vadd.f32 %v3776, %v3777
    %v3779 = vsel %vm120, %v3665, 0.0
    %v3780 = vadd.f32 %v3778, %v3779
    %v3781 = vsel %vm120, %v3666, 0.0
    %v3782 = vadd.f32 %v3780, %v3781
    %v3783 = vsel %vm120, %v3667, 0.0
    %v3784 = vadd.f32 %v3782, %v3783
    %v3785 = vsel %vm120, %v3668, 0.0
    %v3786 = vadd.f32 %v3784, %v3785
    %v3787 = vsel %vm120, %v3669, 0.0
    %v3788 = vadd.f32 %v3786, %v3787
    %v3789 = vrot.slane %v3788, 4
    %v3790 = vadd.f32 %v3788, %v3789
    %v3791 = vrot.slane %v3790, 2
    %v3792 = vadd.f32 %v3790, %v3791
    %v3793 = vrot.slane %v3792, 1
    %v3794 = vadd.f32 %v3792, %v3793
    %v3795 = vsel %vm120, %v3670, 0.0
    %v3796 = vsel %vm120, %v3671, 0.0
    %v3797 = vadd.f32 %v3795, %v3796
    %v3798 = vsel %vm120, %v3672, 0.0
    %v3799 = vadd.f32 %v3797, %v3798
    %v3800 = vsel %vm120, %v3673, 0.0
    %v3801 = vadd.f32 %v3799, %v3800
    %v3802 = vsel %vm120, %v3674, 0.0
    %v3803 = vadd.f32 %v3801, %v3802
    %v3804 = vsel %vm120, %v3675, 0.0
    %v3805 = vadd.f32 %v3803, %v3804
    %v3806 = vsel %vm120, %v3676, 0.0
    %v3807 = vadd.f32 %v3805, %v3806
    %v3808 = vsel %vm120, %v3677, 0.0
    %v3809 = vadd.f32 %v3807, %v3808
    %v3810 = vrot.slane %v3809, 4
    %v3811 = vadd.f32 %v3809, %v3810
    %v3812 = vrot.slane %v3811, 2
    %v3813 = vadd.f32 %v3811, %v3812
    %v3814 = vrot.slane %v3813, 1
    %v3815 = vadd.f32 %v3813, %v3814
    %v3816 = vsel %vm120, %v3678, 0.0
    %v3817 = vsel %vm120, %v3679, 0.0
    %v3818 = vadd.f32 %v3816, %v3817
    %v3819 = vsel %vm120, %v3680, 0.0
    %v3820 = vadd.f32 %v3818, %v3819
    %v3821 = vsel %vm120, %v3681, 0.0
    %v3822 = vadd.f32 %v3820, %v3821
    %v3823 = vsel %vm120, %v3682, 0.0
    %v3824 = vadd.f32 %v3822, %v3823
    %v3825 = vsel %vm120, %v3683, 0.0
    %v3826 = vadd.f32 %v3824, %v3825
    %v3827 = vsel %vm120, %v3684, 0.0
    %v3828 = vadd.f32 %v3826, %v3827
    %v3829 = vsel %vm120, %v3685, 0.0
    %v3830 = vadd.f32 %v3828, %v3829
    %v3831 = vrot.slane %v3830, 4
    %v3832 = vadd.f32 %v3830, %v3831
    %v3833 = vrot.slane %v3832, 2
    %v3834 = vadd.f32 %v3832, %v3833
    %v3835 = vrot.slane %v3834, 1
    %v3836 = vadd.f32 %v3834, %v3835
    %v3837 = vmul.f32 %v3710, %v274
    %v3838 = vmul.f32 %v3731, %v274
    %v3839 = vmul.f32 %v3752, %v274
    %v3840 = vmul.f32 %v3773, %v274
    %v3841 = vmul.f32 %v3794, %v274
    %v3842 = vmul.f32 %v3815, %v274
    %v3843 = vmul.f32 %v3836, %v274
    %v3844 = vsub.f32 %v3630, %v3837
    %v3845 = vsub.f32 %v3631, %v3837
    %v3846 = vsub.f32 %v3632, %v3837
    %v3847 = vsub.f32 %v3633, %v3837
    %v3848 = vsub.f32 %v3634, %v3837
    %v3849 = vsub.f32 %v3635, %v3837
    %v3850 = vsub.f32 %v3636, %v3837
    %v3851 = vsub.f32 %v3637, %v3837
    %v3852 = vsub.f32 %v3638, %v3838
    %v3853 = vsub.f32 %v3639, %v3838
    %v3854 = vsub.f32 %v3640, %v3838
    %v3855 = vsub.f32 %v3641, %v3838
    %v3856 = vsub.f32 %v3642, %v3838
    %v3857 = vsub.f32 %v3643, %v3838
    %v3858 = vsub.f32 %v3644, %v3838
    %v3859 = vsub.f32 %v3645, %v3838
    %v3860 = vsub.f32 %v3646, %v3839
    %v3861 = vsub.f32 %v3647, %v3839
    %v3862 = vsub.f32 %v3648, %v3839
    %v3863 = vsub.f32 %v3649, %v3839
    %v3864 = vsub.f32 %v3650, %v3839
    %v3865 = vsub.f32 %v3651, %v3839
    %v3866 = vsub.f32 %v3652, %v3839
    %v3867 = vsub.f32 %v3653, %v3839
    %v3868 = vsub.f32 %v3654, %v3840
    %v3869 = vsub.f32 %v3655, %v3840
    %v3870 = vsub.f32 %v3656, %v3840
    %v3871 = vsub.f32 %v3657, %v3840
    %v3872 = vsub.f32 %v3658, %v3840
    %v3873 = vsub.f32 %v3659, %v3840
    %v3874 = vsub.f32 %v3660, %v3840
    %v3875 = vsub.f32 %v3661, %v3840
    %v3876 = vsub.f32 %v3662, %v3841
    %v3877 = vsub.f32 %v3663, %v3841
    %v3878 = vsub.f32 %v3664, %v3841
    %v3879 = vsub.f32 %v3665, %v3841
    %v3880 = vsub.f32 %v3666, %v3841
    %v3881 = vsub.f32 %v3667, %v3841
    %v3882 = vsub.f32 %v3668, %v3841
    %v3883 = vsub.f32 %v3669, %v3841
    %v3884 = vsub.f32 %v3670, %v3842
    %v3885 = vsub.f32 %v3671, %v3842
    %v3886 = vsub.f32 %v3672, %v3842
    %v3887 = vsub.f32 %v3673, %v3842
    %v3888 = vsub.f32 %v3674, %v3842
    %v3889 = vsub.f32 %v3675, %v3842
    %v3890 = vsub.f32 %v3676, %v3842
    %v3891 = vsub.f32 %v3677, %v3842
    %v3892 = vsub.f32 %v3678, %v3843
    %v3893 = vsub.f32 %v3679, %v3843
    %v3894 = vsub.f32 %v3680, %v3843
    %v3895 = vsub.f32 %v3681, %v3843
    %v3896 = vsub.f32 %v3682, %v3843
    %v3897 = vsub.f32 %v3683, %v3843
    %v3898 = vsub.f32 %v3684, %v3843
    %v3899 = vsub.f32 %v3685, %v3843
    %v3900 = vmul.f32 %v3844, %v3844
    %v3901 = vmul.f32 %v3845, %v3845
    %v3902 = vmul.f32 %v3846, %v3846
    %v3903 = vmul.f32 %v3847, %v3847
    %v3904 = vmul.f32 %v3848, %v3848
    %v3905 = vmul.f32 %v3849, %v3849
    %v3906 = vmul.f32 %v3850, %v3850
    %v3907 = vmul.f32 %v3851, %v3851
    %v3908 = vmul.f32 %v3852, %v3852
    %v3909 = vmul.f32 %v3853, %v3853
    %v3910 = vmul.f32 %v3854, %v3854
    %v3911 = vmul.f32 %v3855, %v3855
    %v3912 = vmul.f32 %v3856, %v3856
    %v3913 = vmul.f32 %v3857, %v3857
    %v3914 = vmul.f32 %v3858, %v3858
    %v3915 = vmul.f32 %v3859, %v3859
    %v3916 = vmul.f32 %v3860, %v3860
    %v3917 = vmul.f32 %v3861, %v3861
    %v3918 = vmul.f32 %v3862, %v3862
    %v3919 = vmul.f32 %v3863, %v3863
    %v3920 = vmul.f32 %v3864, %v3864
    %v3921 = vmul.f32 %v3865, %v3865
    %v3922 = vmul.f32 %v3866, %v3866
    %v3923 = vmul.f32 %v3867, %v3867
    %v3924 = vmul.f32 %v3868, %v3868
    %v3925 = vmul.f32 %v3869, %v3869
    %v3926 = vmul.f32 %v3870, %v3870
    %v3927 = vmul.f32 %v3871, %v3871
    %v3928 = vmul.f32 %v3872, %v3872
    %v3929 = vmul.f32 %v3873, %v3873
    %v3930 = vmul.f32 %v3874, %v3874
    %v3931 = vmul.f32 %v3875, %v3875
    %v3932 = vmul.f32 %v3876, %v3876
    %v3933 = vmul.f32 %v3877, %v3877
    %v3934 = vmul.f32 %v3878, %v3878
    %v3935 = vmul.f32 %v3879, %v3879
    %v3936 = vmul.f32 %v3880, %v3880
    %v3937 = vmul.f32 %v3881, %v3881
    %v3938 = vmul.f32 %v3882, %v3882
    %v3939 = vmul.f32 %v3883, %v3883
    %v3940 = vmul.f32 %v3884, %v3884
    %v3941 = vmul.f32 %v3885, %v3885
    %v3942 = vmul.f32 %v3886, %v3886
    %v3943 = vmul.f32 %v3887, %v3887
    %v3944 = vmul.f32 %v3888, %v3888
    %v3945 = vmul.f32 %v3889, %v3889
    %v3946 = vmul.f32 %v3890, %v3890
    %v3947 = vmul.f32 %v3891, %v3891
    %v3948 = vmul.f32 %v3892, %v3892
    %v3949 = vmul.f32 %v3893, %v3893
    %v3950 = vmul.f32 %v3894, %v3894
    %v3951 = vmul.f32 %v3895, %v3895
    %v3952 = vmul.f32 %v3896, %v3896
    %v3953 = vmul.f32 %v3897, %v3897
    %v3954 = vmul.f32 %v3898, %v3898
    %v3955 = vmul.f32 %v3899, %v3899
    %v3956 = vsel %vm120, %v3900, 0.0
    %v3957 = vsel %vm120, %v3901, 0.0
    %v3958 = vadd.f32 %v3956, %v3957
    %v3959 = vsel %vm120, %v3902, 0.0
    %v3960 = vadd.f32 %v3958, %v3959
    %v3961 = vsel %vm120, %v3903, 0.0
    %v3962 = vadd.f32 %v3960, %v3961
    %v3963 = vsel %vm120, %v3904, 0.0
    %v3964 = vadd.f32 %v3962, %v3963
    %v3965 = vsel %vm120, %v3905, 0.0
    %v3966 = vadd.f32 %v3964, %v3965
    %v3967 = vsel %vm120, %v3906, 0.0
    %v3968 = vadd.f32 %v3966, %v3967
    %v3969 = vsel %vm120, %v3907, 0.0
    %v3970 = vadd.f32 %v3968, %v3969
    %v3971 = vrot.slane %v3970, 4
    %v3972 = vadd.f32 %v3970, %v3971
    %v3973 = vrot.slane %v3972, 2
    %v3974 = vadd.f32 %v3972, %v3973
    %v3975 = vrot.slane %v3974, 1
    %v3976 = vadd.f32 %v3974, %v3975
    %v3977 = vsel %vm120, %v3908, 0.0
    %v3978 = vsel %vm120, %v3909, 0.0
    %v3979 = vadd.f32 %v3977, %v3978
    %v3980 = vsel %vm120, %v3910, 0.0
    %v3981 = vadd.f32 %v3979, %v3980
    %v3982 = vsel %vm120, %v3911, 0.0
    %v3983 = vadd.f32 %v3981, %v3982
    %v3984 = vsel %vm120, %v3912, 0.0
    %v3985 = vadd.f32 %v3983, %v3984
    %v3986 = vsel %vm120, %v3913, 0.0
    %v3987 = vadd.f32 %v3985, %v3986
    %v3988 = vsel %vm120, %v3914, 0.0
    %v3989 = vadd.f32 %v3987, %v3988
    %v3990 = vsel %vm120, %v3915, 0.0
    %v3991 = vadd.f32 %v3989, %v3990
    %v3992 = vrot.slane %v3991, 4
    %v3993 = vadd.f32 %v3991, %v3992
    %v3994 = vrot.slane %v3993, 2
    %v3995 = vadd.f32 %v3993, %v3994
    %v3996 = vrot.slane %v3995, 1
    %v3997 = vadd.f32 %v3995, %v3996
    %v3998 = vsel %vm120, %v3916, 0.0
    %v3999 = vsel %vm120, %v3917, 0.0
    %v4000 = vadd.f32 %v3998, %v3999
    %v4001 = vsel %vm120, %v3918, 0.0
    %v4002 = vadd.f32 %v4000, %v4001
    %v4003 = vsel %vm120, %v3919, 0.0
    %v4004 = vadd.f32 %v4002, %v4003
    %v4005 = vsel %vm120, %v3920, 0.0
    %v4006 = vadd.f32 %v4004, %v4005
    %v4007 = vsel %vm120, %v3921, 0.0
    %v4008 = vadd.f32 %v4006, %v4007
    %v4009 = vsel %vm120, %v3922, 0.0
    %v4010 = vadd.f32 %v4008, %v4009
    %v4011 = vsel %vm120, %v3923, 0.0
    %v4012 = vadd.f32 %v4010, %v4011
    %v4013 = vrot.slane %v4012, 4
    %v4014 = vadd.f32 %v4012, %v4013
    %v4015 = vrot.slane %v4014, 2
    %v4016 = vadd.f32 %v4014, %v4015
    %v4017 = vrot.slane %v4016, 1
    %v4018 = vadd.f32 %v4016, %v4017
    %v4019 = vsel %vm120, %v3924, 0.0
    %v4020 = vsel %vm120, %v3925, 0.0
    %v4021 = vadd.f32 %v4019, %v4020
    %v4022 = vsel %vm120, %v3926, 0.0
    %v4023 = vadd.f32 %v4021, %v4022
    %v4024 = vsel %vm120, %v3927, 0.0
    %v4025 = vadd.f32 %v4023, %v4024
    %v4026 = vsel %vm120, %v3928, 0.0
    %v4027 = vadd.f32 %v4025, %v4026
    %v4028 = vsel %vm120, %v3929, 0.0
    %v4029 = vadd.f32 %v4027, %v4028
    %v4030 = vsel %vm120, %v3930, 0.0
    %v4031 = vadd.f32 %v4029, %v4030
    %v4032 = vsel %vm120, %v3931, 0.0
    %v4033 = vadd.f32 %v4031, %v4032
    %v4034 = vrot.slane %v4033, 4
    %v4035 = vadd.f32 %v4033, %v4034
    %v4036 = vrot.slane %v4035, 2
    %v4037 = vadd.f32 %v4035, %v4036
    %v4038 = vrot.slane %v4037, 1
    %v4039 = vadd.f32 %v4037, %v4038
    %v4040 = vsel %vm120, %v3932, 0.0
    %v4041 = vsel %vm120, %v3933, 0.0
    %v4042 = vadd.f32 %v4040, %v4041
    %v4043 = vsel %vm120, %v3934, 0.0
    %v4044 = vadd.f32 %v4042, %v4043
    %v4045 = vsel %vm120, %v3935, 0.0
    %v4046 = vadd.f32 %v4044, %v4045
    %v4047 = vsel %vm120, %v3936, 0.0
    %v4048 = vadd.f32 %v4046, %v4047
    %v4049 = vsel %vm120, %v3937, 0.0
    %v4050 = vadd.f32 %v4048, %v4049
    %v4051 = vsel %vm120, %v3938, 0.0
    %v4052 = vadd.f32 %v4050, %v4051
    %v4053 = vsel %vm120, %v3939, 0.0
    %v4054 = vadd.f32 %v4052, %v4053
    %v4055 = vrot.slane %v4054, 4
    %v4056 = vadd.f32 %v4054, %v4055
    %v4057 = vrot.slane %v4056, 2
    %v4058 = vadd.f32 %v4056, %v4057
    %v4059 = vrot.slane %v4058, 1
    %v4060 = vadd.f32 %v4058, %v4059
    %v4061 = vsel %vm120, %v3940, 0.0
    %v4062 = vsel %vm120, %v3941, 0.0
    %v4063 = vadd.f32 %v4061, %v4062
    %v4064 = vsel %vm120, %v3942, 0.0
    %v4065 = vadd.f32 %v4063, %v4064
    %v4066 = vsel %vm120, %v3943, 0.0
    %v4067 = vadd.f32 %v4065, %v4066
    %v4068 = vsel %vm120, %v3944, 0.0
    %v4069 = vadd.f32 %v4067, %v4068
    %v4070 = vsel %vm120, %v3945, 0.0
    %v4071 = vadd.f32 %v4069, %v4070
    %v4072 = vsel %vm120, %v3946, 0.0
    %v4073 = vadd.f32 %v4071, %v4072
    %v4074 = vsel %vm120, %v3947, 0.0
    %v4075 = vadd.f32 %v4073, %v4074
    %v4076 = vrot.slane %v4075, 4
    %v4077 = vadd.f32 %v4075, %v4076
    %v4078 = vrot.slane %v4077, 2
    %v4079 = vadd.f32 %v4077, %v4078
    %v4080 = vrot.slane %v4079, 1
    %v4081 = vadd.f32 %v4079, %v4080
    %v4082 = vsel %vm120, %v3948, 0.0
    %v4083 = vsel %vm120, %v3949, 0.0
    %v4084 = vadd.f32 %v4082, %v4083
    %v4085 = vsel %vm120, %v3950, 0.0
    %v4086 = vadd.f32 %v4084, %v4085
    %v4087 = vsel %vm120, %v3951, 0.0
    %v4088 = vadd.f32 %v4086, %v4087
    %v4089 = vsel %vm120, %v3952, 0.0
    %v4090 = vadd.f32 %v4088, %v4089
    %v4091 = vsel %vm120, %v3953, 0.0
    %v4092 = vadd.f32 %v4090, %v4091
    %v4093 = vsel %vm120, %v3954, 0.0
    %v4094 = vadd.f32 %v4092, %v4093
    %v4095 = vsel %vm120, %v3955, 0.0
    %v4096 = vadd.f32 %v4094, %v4095
    %v4097 = vrot.slane %v4096, 4
    %v4098 = vadd.f32 %v4096, %v4097
    %v4099 = vrot.slane %v4098, 2
    %v4100 = vadd.f32 %v4098, %v4099
    %v4101 = vrot.slane %v4100, 1
    %v4102 = vadd.f32 %v4100, %v4101
    %v4103 = vmul.f32 %v3976, %v274
    %v4104 = vmul.f32 %v3997, %v274
    %v4105 = vmul.f32 %v4018, %v274
    %v4106 = vmul.f32 %v4039, %v274
    %v4107 = vmul.f32 %v4060, %v274
    %v4108 = vmul.f32 %v4081, %v274
    %v4109 = vmul.f32 %v4102, %v274
    %v4110 = vadd.f32 %v4103, 1e-06
    %v4111 = vadd.f32 %v4104, 1e-06
    %v4112 = vadd.f32 %v4105, 1e-06
    %v4113 = vadd.f32 %v4106, 1e-06
    %v4114 = vadd.f32 %v4107, 1e-06
    %v4115 = vadd.f32 %v4108, 1e-06
    %v4116 = vadd.f32 %v4109, 1e-06
    %v4117 = vrsqrt.pop %v4110
    %v4118 = vmul.f32 %v4117, %v4110
    %v4119 = vmul.f32 %v4118, %v4117
    %v4120 = vmul.f32 0.5, %v4119
    %v4121 = vsub.f32 1.5, %v4120
    %v4122 = vmul.f32 %v4117, %v4121
    %vm4123 = vweird.f32 %v4110
    %vm4124 = vweird.f32 %v4117
    %vm4125 = vmor %vm4123, %vm4124
    %v4126 = vsel %vm4125, %v4117, %v4122
    %v4127 = vrsqrt.pop %v4111
    %v4128 = vmul.f32 %v4127, %v4111
    %v4129 = vmul.f32 %v4128, %v4127
    %v4130 = vmul.f32 0.5, %v4129
    %v4131 = vsub.f32 1.5, %v4130
    %v4132 = vmul.f32 %v4127, %v4131
    %vm4133 = vweird.f32 %v4111
    %vm4134 = vweird.f32 %v4127
    %vm4135 = vmor %vm4133, %vm4134
    %v4136 = vsel %vm4135, %v4127, %v4132
    %v4137 = vrsqrt.pop %v4112
    %v4138 = vmul.f32 %v4137, %v4112
    %v4139 = vmul.f32 %v4138, %v4137
    %v4140 = vmul.f32 0.5, %v4139
    %v4141 = vsub.f32 1.5, %v4140
    %v4142 = vmul.f32 %v4137, %v4141
    %vm4143 = vweird.f32 %v4112
    %vm4144 = vweird.f32 %v4137
    %vm4145 = vmor %vm4143, %vm4144
    %v4146 = vsel %vm4145, %v4137, %v4142
    %v4147 = vrsqrt.pop %v4113
    %v4148 = vmul.f32 %v4147, %v4113
    %v4149 = vmul.f32 %v4148, %v4147
    %v4150 = vmul.f32 0.5, %v4149
    %v4151 = vsub.f32 1.5, %v4150
    %v4152 = vmul.f32 %v4147, %v4151
    %vm4153 = vweird.f32 %v4113
    %vm4154 = vweird.f32 %v4147
    %vm4155 = vmor %vm4153, %vm4154
    %v4156 = vsel %vm4155, %v4147, %v4152
    %v4157 = vrsqrt.pop %v4114
    %v4158 = vmul.f32 %v4157, %v4114
    %v4159 = vmul.f32 %v4158, %v4157
    %v4160 = vmul.f32 0.5, %v4159
    %v4161 = vsub.f32 1.5, %v4160
    %v4162 = vmul.f32 %v4157, %v4161
    %vm4163 = vweird.f32 %v4114
    %vm4164 = vweird.f32 %v4157
    %vm4165 = vmor %vm4163, %vm4164
    %v4166 = vsel %vm4165, %v4157, %v4162
    %v4167 = vrsqrt.pop %v4115
    %v4168 = vmul.f32 %v4167, %v4115
    %v4169 = vmul.f32 %v4168, %v4167
    %v4170 = vmul.f32 0.5, %v4169
    %v4171 = vsub.f32 1.5, %v4170
    %v4172 = vmul.f32 %v4167, %v4171
    %vm4173 = vweird.f32 %v4115
    %vm4174 = vweird.f32 %v4167
    %vm4175 = vmor %vm4173, %vm4174
    %v4176 = vsel %vm4175, %v4167, %v4172
    %v4177 = vrsqrt.pop %v4116
    %v4178 = vmul.f32 %v4177, %v4116
    %v4179 = vmul.f32 %v4178, %v4177
    %v4180 = vmul.f32 0.5, %v4179
    %v4181 = vsub.f32 1.5, %v4180
    %v4182 = vmul.f32 %v4177, %v4181
    %vm4183 = vweird.f32 %v4116
    %vm4184 = vweird.f32 %v4177
    %vm4185 = vmor %vm4183, %vm4184
    %v4186 = vsel %vm4185, %v4177, %v4182
    %v4187 = vmul.f32 %v3687, %v4126
    %v4188 = vmul.f32 %v3687, %v4136
    %v4189 = vmul.f32 %v3687, %v4146
    %v4190 = vmul.f32 %v3687, %v4156
    %v4191 = vmul.f32 %v3687, %v4166
    %v4192 = vmul.f32 %v3687, %v4176
    %v4193 = vmul.f32 %v3687, %v4186
    %v4201 = vperm.slane %v4187, 0
    %v4202 = vperm.slane %v4188, 0
    %v4203 = vperm.slane %v4189, 0
    %v4204 = vperm.slane %v4190, 0
    %v4205 = vperm.slane %v4191, 0
    %v4206 = vperm.slane %v4192, 0
    %v4207 = vperm.slane %v4193, 0
    %v4215 = vmul.f32 %v3844, %v4201
    %v4216 = vmul.f32 %v3845, %v4201
    %v4217 = vmul.f32 %v3846, %v4201
    %v4218 = vmul.f32 %v3847, %v4201
    %v4219 = vmul.f32 %v3848, %v4201
    %v4220 = vmul.f32 %v3849, %v4201
    %v4221 = vmul.f32 %v3850, %v4201
    %v4222 = vmul.f32 %v3851, %v4201
    %v4223 = vmul.f32 %v3852, %v4202
    %v4224 = vmul.f32 %v3853, %v4202
    %v4225 = vmul.f32 %v3854, %v4202
    %v4226 = vmul.f32 %v3855, %v4202
    %v4227 = vmul.f32 %v3856, %v4202
    %v4228 = vmul.f32 %v3857, %v4202
    %v4229 = vmul.f32 %v3858, %v4202
    %v4230 = vmul.f32 %v3859, %v4202
    %v4231 = vmul.f32 %v3860, %v4203
    %v4232 = vmul.f32 %v3861, %v4203
    %v4233 = vmul.f32 %v3862, %v4203
    %v4234 = vmul.f32 %v3863, %v4203
    %v4235 = vmul.f32 %v3864, %v4203
    %v4236 = vmul.f32 %v3865, %v4203
    %v4237 = vmul.f32 %v3866, %v4203
    %v4238 = vmul.f32 %v3867, %v4203
    %v4239 = vmul.f32 %v3868, %v4204
    %v4240 = vmul.f32 %v3869, %v4204
    %v4241 = vmul.f32 %v3870, %v4204
    %v4242 = vmul.f32 %v3871, %v4204
    %v4243 = vmul.f32 %v3872, %v4204
    %v4244 = vmul.f32 %v3873, %v4204
    %v4245 = vmul.f32 %v3874, %v4204
    %v4246 = vmul.f32 %v3875, %v4204
    %v4247 = vmul.f32 %v3876, %v4205
    %v4248 = vmul.f32 %v3877, %v4205
    %v4249 = vmul.f32 %v3878, %v4205
    %v4250 = vmul.f32 %v3879, %v4205
    %v4251 = vmul.f32 %v3880, %v4205
    %v4252 = vmul.f32 %v3881, %v4205
    %v4253 = vmul.f32 %v3882, %v4205
    %v4254 = vmul.f32 %v3883, %v4205
    %v4255 = vmul.f32 %v3884, %v4206
    %v4256 = vmul.f32 %v3885, %v4206
    %v4257 = vmul.f32 %v3886, %v4206
    %v4258 = vmul.f32 %v3887, %v4206
    %v4259 = vmul.f32 %v3888, %v4206
    %v4260 = vmul.f32 %v3889, %v4206
    %v4261 = vmul.f32 %v3890, %v4206
    %v4262 = vmul.f32 %v3891, %v4206
    %v4263 = vmul.f32 %v3892, %v4207
    %v4264 = vmul.f32 %v3893, %v4207
    %v4265 = vmul.f32 %v3894, %v4207
    %v4266 = vmul.f32 %v3895, %v4207
    %v4267 = vmul.f32 %v3896, %v4207
    %v4268 = vmul.f32 %v3897, %v4207
    %v4269 = vmul.f32 %v3898, %v4207
    %v4270 = vmul.f32 %v3899, %v4207
    %v4272 = vperm.slane %v3689, 0
    %v4274 = vadd.f32 %v4215, %v4272
    %v4275 = vadd.f32 %v4216, %v4272
    %v4276 = vadd.f32 %v4217, %v4272
    %v4277 = vadd.f32 %v4218, %v4272
    %v4278 = vadd.f32 %v4219, %v4272
    %v4279 = vadd.f32 %v4220, %v4272
    %v4280 = vadd.f32 %v4221, %v4272
    %v4281 = vadd.f32 %v4222, %v4272
    %v4282 = vadd.f32 %v4223, %v4272
    %v4283 = vadd.f32 %v4224, %v4272
    %v4284 = vadd.f32 %v4225, %v4272
    %v4285 = vadd.f32 %v4226, %v4272
    %v4286 = vadd.f32 %v4227, %v4272
    %v4287 = vadd.f32 %v4228, %v4272
    %v4288 = vadd.f32 %v4229, %v4272
    %v4289 = vadd.f32 %v4230, %v4272
    %v4290 = vadd.f32 %v4231, %v4272
    %v4291 = vadd.f32 %v4232, %v4272
    %v4292 = vadd.f32 %v4233, %v4272
    %v4293 = vadd.f32 %v4234, %v4272
    %v4294 = vadd.f32 %v4235, %v4272
    %v4295 = vadd.f32 %v4236, %v4272
    %v4296 = vadd.f32 %v4237, %v4272
    %v4297 = vadd.f32 %v4238, %v4272
    %v4298 = vadd.f32 %v4239, %v4272
    %v4299 = vadd.f32 %v4240, %v4272
    %v4300 = vadd.f32 %v4241, %v4272
    %v4301 = vadd.f32 %v4242, %v4272
    %v4302 = vadd.f32 %v4243, %v4272
    %v4303 = vadd.f32 %v4244, %v4272
    %v4304 = vadd.f32 %v4245, %v4272
    %v4305 = vadd.f32 %v4246, %v4272
    %v4306 = vadd.f32 %v4247, %v4272
    %v4307 = vadd.f32 %v4248, %v4272
    %v4308 = vadd.f32 %v4249, %v4272
    %v4309 = vadd.f32 %v4250, %v4272
    %v4310 = vadd.f32 %v4251, %v4272
    %v4311 = vadd.f32 %v4252, %v4272
    %v4312 = vadd.f32 %v4253, %v4272
    %v4313 = vadd.f32 %v4254, %v4272
    %v4314 = vadd.f32 %v4255, %v4272
    %v4315 = vadd.f32 %v4256, %v4272
    %v4316 = vadd.f32 %v4257, %v4272
    %v4317 = vadd.f32 %v4258, %v4272
    %v4318 = vadd.f32 %v4259, %v4272
    %v4319 = vadd.f32 %v4260, %v4272
    %v4320 = vadd.f32 %v4261, %v4272
    %v4321 = vadd.f32 %v4262, %v4272
    %v4322 = vadd.f32 %v4263, %v4272
    %v4323 = vadd.f32 %v4264, %v4272
    %v4324 = vadd.f32 %v4265, %v4272
    %v4325 = vadd.f32 %v4266, %v4272
    %v4326 = vadd.f32 %v4267, %v4272
    %v4327 = vadd.f32 %v4268, %v4272
    %v4328 = vadd.f32 %v4269, %v4272
    %v4329 = vadd.f32 %v4270, %v4272
    %v4330 = vld [vmem:[%s4] sm:$0x1]
    %v4331 = vmul.f32 %v4330, %v4330
    %vm4332 = vcmask 122880
    %v4333 = vsel %vm4332, %v4331, 0.0
    %4334 = vadd.xlane.f32.xlu0 %v4333
    %v4335 = vpop.xlane.xlu0 %4334
    %v4336 = vmul.f32 %v4335, 0.1
    %v4337 = vmul.f32 %v4274, 0.1
    %v4338 = vmul.f32 %v4275, 0.1
    %v4339 = vmul.f32 %v4276, 0.1
    %v4340 = vmul.f32 %v4277, 0.1
    %v4341 = vmul.f32 %v4278, 0.1
    %v4342 = vmul.f32 %v4279, 0.1
    %v4343 = vmul.f32 %v4280, 0.1
    %v4344 = vmul.f32 %v4281, 0.1
    %v4345 = vmul.f32 %v4282, 0.1
    %v4346 = vmul.f32 %v4283, 0.1
    %v4347 = vmul.f32 %v4284, 0.1
    %v4348 = vmul.f32 %v4285, 0.1
    %v4349 = vmul.f32 %v4286, 0.1
    %v4350 = vmul.f32 %v4287, 0.1
    %v4351 = vmul.f32 %v4288, 0.1
    %v4352 = vmul.f32 %v4289, 0.1
    %v4353 = vmul.f32 %v4290, 0.1
    %v4354 = vmul.f32 %v4291, 0.1
    %v4355 = vmul.f32 %v4292, 0.1
    %v4356 = vmul.f32 %v4293, 0.1
    %v4357 = vmul.f32 %v4294, 0.1
    %v4358 = vmul.f32 %v4295, 0.1
    %v4359 = vmul.f32 %v4296, 0.1
    %v4360 = vmul.f32 %v4297, 0.1
    %v4361 = vmul.f32 %v4298, 0.1
    %v4362 = vmul.f32 %v4299, 0.1
    %v4363 = vmul.f32 %v4300, 0.1
    %v4364 = vmul.f32 %v4301, 0.1
    %v4365 = vmul.f32 %v4302, 0.1
    %v4366 = vmul.f32 %v4303, 0.1
    %v4367 = vmul.f32 %v4304, 0.1
    %v4368 = vmul.f32 %v4305, 0.1
    %v4369 = vmul.f32 %v4306, 0.1
    %v4370 = vmul.f32 %v4307, 0.1
    %v4371 = vmul.f32 %v4308, 0.1
    %v4372 = vmul.f32 %v4309, 0.1
    %v4373 = vmul.f32 %v4310, 0.1
    %v4374 = vmul.f32 %v4311, 0.1
    %v4375 = vmul.f32 %v4312, 0.1
    %v4376 = vmul.f32 %v4313, 0.1
    %v4377 = vmul.f32 %v4314, 0.1
    %v4378 = vmul.f32 %v4315, 0.1
    %v4379 = vmul.f32 %v4316, 0.1
    %v4380 = vmul.f32 %v4317, 0.1
    %v4381 = vmul.f32 %v4318, 0.1
    %v4382 = vmul.f32 %v4319, 0.1
    %v4383 = vmul.f32 %v4320, 0.1
    %v4384 = vmul.f32 %v4321, 0.1
    %v4385 = vmul.f32 %v4322, 0.1
    %v4386 = vmul.f32 %v4323, 0.1
    %v4387 = vmul.f32 %v4324, 0.1
    %v4388 = vmul.f32 %v4325, 0.1
    %v4389 = vmul.f32 %v4326, 0.1
    %v4390 = vmul.f32 %v4327, 0.1
    %v4391 = vmul.f32 %v4328, 0.1
    %v4392 = vmul.f32 %v4329, 0.1
    %v4393 = vld [vmem:[%s2] sm:$0xff]
    %v4394 = vld [vmem:[%s2 + $0x8] sm:$0xff]
    %v4395 = vld [vmem:[%s2 + $0x10] sm:$0xff]
    %v4396 = vld [vmem:[%s2 + $0x18] sm:$0xff]
    %v4397 = vld [vmem:[%s2 + $0x20] sm:$0xff]
    %v4398 = vld [vmem:[%s2 + $0x28] sm:$0xff]
    %v4399 = vld [vmem:[%s2 + $0x30] sm:$0xff]
    %v4400 = vld [vmem:[%s2 + $0x38] sm:$0xff]
    %v4401 = vld [vmem:[%s2 + $0x40] sm:$0xff]
    %v4402 = vld [vmem:[%s2 + $0x48] sm:$0xff]
    %v4403 = vld [vmem:[%s2 + $0x50] sm:$0xff]
    %v4404 = vld [vmem:[%s2 + $0x58] sm:$0xff]
    %v4405 = vld [vmem:[%s2 + $0x60] sm:$0xff]
    %v4406 = vld [vmem:[%s2 + $0x68] sm:$0xff]
    %v4407 = vld [vmem:[%s2 + $0x70] sm:$0xff]
    %v4408 = vld [vmem:[%s2 + $0x78] sm:$0xff]
    %v4409 = vld [vmem:[%s2 + $0x80] sm:$0xff]
    %v4410 = vld [vmem:[%s2 + $0x88] sm:$0xff]
    %v4411 = vld [vmem:[%s2 + $0x90] sm:$0xff]
    %v4412 = vld [vmem:[%s2 + $0x98] sm:$0xff]
    %v4413 = vld [vmem:[%s2 + $0xa0] sm:$0xff]
    %v4414 = vld [vmem:[%s2 + $0xa8] sm:$0xff]
    %v4415 = vld [vmem:[%s2 + $0xb0] sm:$0xff]
    %v4416 = vld [vmem:[%s2 + $0xb8] sm:$0xff]
    %v4417 = vld [vmem:[%s2 + $0xc0] sm:$0xff]
    %v4418 = vld [vmem:[%s2 + $0xc8] sm:$0xff]
    %v4419 = vld [vmem:[%s2 + $0xd0] sm:$0xff]
    %v4420 = vld [vmem:[%s2 + $0xd8] sm:$0xff]
    %v4421 = vld [vmem:[%s2 + $0xe0] sm:$0xff]
    %v4422 = vld [vmem:[%s2 + $0xe8] sm:$0xff]
    %v4423 = vld [vmem:[%s2 + $0xf0] sm:$0xff]
    %v4424 = vld [vmem:[%s2 + $0xf8] sm:$0xff]
    %v4425 = vld [vmem:[%s2 + $0x100] sm:$0xff]
    %v4426 = vld [vmem:[%s2 + $0x108] sm:$0xff]
    %v4427 = vld [vmem:[%s2 + $0x110] sm:$0xff]
    %v4428 = vld [vmem:[%s2 + $0x118] sm:$0xff]
    %v4429 = vld [vmem:[%s2 + $0x120] sm:$0xff]
    %v4430 = vld [vmem:[%s2 + $0x128] sm:$0xff]
    %v4431 = vld [vmem:[%s2 + $0x130] sm:$0xff]
    %v4432 = vld [vmem:[%s2 + $0x138] sm:$0xff]
    %v4433 = vld [vmem:[%s2 + $0x140] sm:$0xff]
    %v4434 = vld [vmem:[%s2 + $0x148] sm:$0xff]
    %v4435 = vld [vmem:[%s2 + $0x150] sm:$0xff]
    %v4436 = vld [vmem:[%s2 + $0x158] sm:$0xff]
    %v4437 = vld [vmem:[%s2 + $0x160] sm:$0xff]
    %v4438 = vld [vmem:[%s2 + $0x168] sm:$0xff]
    %v4439 = vld [vmem:[%s2 + $0x170] sm:$0xff]
    %v4440 = vld [vmem:[%s2 + $0x178] sm:$0xff]
    %v4441 = vld [vmem:[%s2 + $0x180] sm:$0xff]
    %v4442 = vld [vmem:[%s2 + $0x188] sm:$0xff]
    %v4443 = vld [vmem:[%s2 + $0x190] sm:$0xff]
    %v4444 = vld [vmem:[%s2 + $0x198] sm:$0xff]
    %v4445 = vld [vmem:[%s2 + $0x1a0] sm:$0xff]
    %v4446 = vld [vmem:[%s2 + $0x1a8] sm:$0xff]
    %v4447 = vld [vmem:[%s2 + $0x1b0] sm:$0xff]
    %v4448 = vld [vmem:[%s2 + $0x1b8] sm:$0xff]
    %v4449 = vadd.f32 %v4337, %v4393
    %v4450 = vadd.f32 %v4338, %v4394
    %v4451 = vadd.f32 %v4339, %v4395
    %v4452 = vadd.f32 %v4340, %v4396
    %v4453 = vadd.f32 %v4341, %v4397
    %v4454 = vadd.f32 %v4342, %v4398
    %v4455 = vadd.f32 %v4343, %v4399
    %v4456 = vadd.f32 %v4344, %v4400
    %v4457 = vadd.f32 %v4345, %v4401
    %v4458 = vadd.f32 %v4346, %v4402
    %v4459 = vadd.f32 %v4347, %v4403
    %v4460 = vadd.f32 %v4348, %v4404
    %v4461 = vadd.f32 %v4349, %v4405
    %v4462 = vadd.f32 %v4350, %v4406
    %v4463 = vadd.f32 %v4351, %v4407
    %v4464 = vadd.f32 %v4352, %v4408
    %v4465 = vadd.f32 %v4353, %v4409
    %v4466 = vadd.f32 %v4354, %v4410
    %v4467 = vadd.f32 %v4355, %v4411
    %v4468 = vadd.f32 %v4356, %v4412
    %v4469 = vadd.f32 %v4357, %v4413
    %v4470 = vadd.f32 %v4358, %v4414
    %v4471 = vadd.f32 %v4359, %v4415
    %v4472 = vadd.f32 %v4360, %v4416
    %v4473 = vadd.f32 %v4361, %v4417
    %v4474 = vadd.f32 %v4362, %v4418
    %v4475 = vadd.f32 %v4363, %v4419
    %v4476 = vadd.f32 %v4364, %v4420
    %v4477 = vadd.f32 %v4365, %v4421
    %v4478 = vadd.f32 %v4366, %v4422
    %v4479 = vadd.f32 %v4367, %v4423
    %v4480 = vadd.f32 %v4368, %v4424
    %v4481 = vadd.f32 %v4369, %v4425
    %v4482 = vadd.f32 %v4370, %v4426
    %v4483 = vadd.f32 %v4371, %v4427
    %v4484 = vadd.f32 %v4372, %v4428
    %v4485 = vadd.f32 %v4373, %v4429
    %v4486 = vadd.f32 %v4374, %v4430
    %v4487 = vadd.f32 %v4375, %v4431
    %v4488 = vadd.f32 %v4376, %v4432
    %v4489 = vadd.f32 %v4377, %v4433
    %v4490 = vadd.f32 %v4378, %v4434
    %v4491 = vadd.f32 %v4379, %v4435
    %v4492 = vadd.f32 %v4380, %v4436
    %v4493 = vadd.f32 %v4381, %v4437
    %v4494 = vadd.f32 %v4382, %v4438
    %v4495 = vadd.f32 %v4383, %v4439
    %v4496 = vadd.f32 %v4384, %v4440
    %v4497 = vadd.f32 %v4385, %v4441
    %v4498 = vadd.f32 %v4386, %v4442
    %v4499 = vadd.f32 %v4387, %v4443
    %v4500 = vadd.f32 %v4388, %v4444
    %v4501 = vadd.f32 %v4389, %v4445
    %v4502 = vadd.f32 %v4390, %v4446
    %v4503 = vadd.f32 %v4391, %v4447
    %v4504 = vadd.f32 %v4392, %v4448
    %v4505 = vmul.f32 %v4274, %v4449
    %v4506 = vmul.f32 %v4275, %v4450
    %v4507 = vmul.f32 %v4276, %v4451
    %v4508 = vmul.f32 %v4277, %v4452
    %v4509 = vmul.f32 %v4278, %v4453
    %v4510 = vmul.f32 %v4279, %v4454
    %v4511 = vmul.f32 %v4280, %v4455
    %v4512 = vmul.f32 %v4281, %v4456
    %v4513 = vmul.f32 %v4282, %v4457
    %v4514 = vmul.f32 %v4283, %v4458
    %v4515 = vmul.f32 %v4284, %v4459
    %v4516 = vmul.f32 %v4285, %v4460
    %v4517 = vmul.f32 %v4286, %v4461
    %v4518 = vmul.f32 %v4287, %v4462
    %v4519 = vmul.f32 %v4288, %v4463
    %v4520 = vmul.f32 %v4289, %v4464
    %v4521 = vmul.f32 %v4290, %v4465
    %v4522 = vmul.f32 %v4291, %v4466
    %v4523 = vmul.f32 %v4292, %v4467
    %v4524 = vmul.f32 %v4293, %v4468
    %v4525 = vmul.f32 %v4294, %v4469
    %v4526 = vmul.f32 %v4295, %v4470
    %v4527 = vmul.f32 %v4296, %v4471
    %v4528 = vmul.f32 %v4297, %v4472
    %v4529 = vmul.f32 %v4298, %v4473
    %v4530 = vmul.f32 %v4299, %v4474
    %v4531 = vmul.f32 %v4300, %v4475
    %v4532 = vmul.f32 %v4301, %v4476
    %v4533 = vmul.f32 %v4302, %v4477
    %v4534 = vmul.f32 %v4303, %v4478
    %v4535 = vmul.f32 %v4304, %v4479
    %v4536 = vmul.f32 %v4305, %v4480
    %v4537 = vmul.f32 %v4306, %v4481
    %v4538 = vmul.f32 %v4307, %v4482
    %v4539 = vmul.f32 %v4308, %v4483
    %v4540 = vmul.f32 %v4309, %v4484
    %v4541 = vmul.f32 %v4310, %v4485
    %v4542 = vmul.f32 %v4311, %v4486
    %v4543 = vmul.f32 %v4312, %v4487
    %v4544 = vmul.f32 %v4313, %v4488
    %v4545 = vmul.f32 %v4314, %v4489
    %v4546 = vmul.f32 %v4315, %v4490
    %v4547 = vmul.f32 %v4316, %v4491
    %v4548 = vmul.f32 %v4317, %v4492
    %v4549 = vmul.f32 %v4318, %v4493
    %v4550 = vmul.f32 %v4319, %v4494
    %v4551 = vmul.f32 %v4320, %v4495
    %v4552 = vmul.f32 %v4321, %v4496
    %v4553 = vmul.f32 %v4322, %v4497
    %v4554 = vmul.f32 %v4323, %v4498
    %v4555 = vmul.f32 %v4324, %v4499
    %v4556 = vmul.f32 %v4325, %v4500
    %v4557 = vmul.f32 %v4326, %v4501
    %v4558 = vmul.f32 %v4327, %v4502
    %v4559 = vmul.f32 %v4328, %v4503
    %v4560 = vmul.f32 %v4329, %v4504
    %v4561 = vld [vmem:[%s1] sm:$0xff]
    %v4562 = vld [vmem:[%s1 + $0x8] sm:$0xff]
    %v4563 = vld [vmem:[%s1 + $0x10] sm:$0xff]
    %v4564 = vld [vmem:[%s1 + $0x18] sm:$0xff]
    %v4565 = vld [vmem:[%s1 + $0x20] sm:$0xff]
    %v4566 = vld [vmem:[%s1 + $0x28] sm:$0xff]
    %v4567 = vld [vmem:[%s1 + $0x30] sm:$0xff]
    %v4568 = vld [vmem:[%s1 + $0x38] sm:$0xff]
    %v4570 = vperm.slane %v4330, 0
    %v4572 = vmul.f32 %v4570, %v4561
    %v4573 = vmul.f32 %v4570, %v4562
    %v4574 = vmul.f32 %v4570, %v4563
    %v4575 = vmul.f32 %v4570, %v4564
    %v4576 = vmul.f32 %v4570, %v4565
    %v4577 = vmul.f32 %v4570, %v4566
    %v4578 = vmul.f32 %v4570, %v4567
    %v4579 = vmul.f32 %v4570, %v4568
    %v4580 = vsel %vm120, %v4505, 0.0
    %v4581 = vsel %vm120, %v4513, 0.0
    %v4582 = vadd.f32 %v4580, %v4581
    %v4583 = vsel %vm120, %v4521, 0.0
    %v4584 = vadd.f32 %v4582, %v4583
    %v4585 = vsel %vm120, %v4529, 0.0
    %v4586 = vadd.f32 %v4584, %v4585
    %v4587 = vsel %vm120, %v4537, 0.0
    %v4588 = vadd.f32 %v4586, %v4587
    %v4589 = vsel %vm120, %v4545, 0.0
    %v4590 = vadd.f32 %v4588, %v4589
    %v4591 = vsel %vm120, %v4553, 0.0
    %v4592 = vadd.f32 %v4590, %v4591
    %v4593 = vsel %vm120, %v4506, 0.0
    %v4594 = vsel %vm120, %v4514, 0.0
    %v4595 = vadd.f32 %v4593, %v4594
    %v4596 = vsel %vm120, %v4522, 0.0
    %v4597 = vadd.f32 %v4595, %v4596
    %v4598 = vsel %vm120, %v4530, 0.0
    %v4599 = vadd.f32 %v4597, %v4598
    %v4600 = vsel %vm120, %v4538, 0.0
    %v4601 = vadd.f32 %v4599, %v4600
    %v4602 = vsel %vm120, %v4546, 0.0
    %v4603 = vadd.f32 %v4601, %v4602
    %v4604 = vsel %vm120, %v4554, 0.0
    %v4605 = vadd.f32 %v4603, %v4604
    %v4606 = vsel %vm120, %v4507, 0.0
    %v4607 = vsel %vm120, %v4515, 0.0
    %v4608 = vadd.f32 %v4606, %v4607
    %v4609 = vsel %vm120, %v4523, 0.0
    %v4610 = vadd.f32 %v4608, %v4609
    %v4611 = vsel %vm120, %v4531, 0.0
    %v4612 = vadd.f32 %v4610, %v4611
    %v4613 = vsel %vm120, %v4539, 0.0
    %v4614 = vadd.f32 %v4612, %v4613
    %v4615 = vsel %vm120, %v4547, 0.0
    %v4616 = vadd.f32 %v4614, %v4615
    %v4617 = vsel %vm120, %v4555, 0.0
    %v4618 = vadd.f32 %v4616, %v4617
    %v4619 = vsel %vm120, %v4508, 0.0
    %v4620 = vsel %vm120, %v4516, 0.0
    %v4621 = vadd.f32 %v4619, %v4620
    %v4622 = vsel %vm120, %v4524, 0.0
    %v4623 = vadd.f32 %v4621, %v4622
    %v4624 = vsel %vm120, %v4532, 0.0
    %v4625 = vadd.f32 %v4623, %v4624
    %v4626 = vsel %vm120, %v4540, 0.0
    %v4627 = vadd.f32 %v4625, %v4626
    %v4628 = vsel %vm120, %v4548, 0.0
    %v4629 = vadd.f32 %v4627, %v4628
    %v4630 = vsel %vm120, %v4556, 0.0
    %v4631 = vadd.f32 %v4629, %v4630
    %v4632 = vsel %vm120, %v4509, 0.0
    %v4633 = vsel %vm120, %v4517, 0.0
    %v4634 = vadd.f32 %v4632, %v4633
    %v4635 = vsel %vm120, %v4525, 0.0
    %v4636 = vadd.f32 %v4634, %v4635
    %v4637 = vsel %vm120, %v4533, 0.0
    %v4638 = vadd.f32 %v4636, %v4637
    %v4639 = vsel %vm120, %v4541, 0.0
    %v4640 = vadd.f32 %v4638, %v4639
    %v4641 = vsel %vm120, %v4549, 0.0
    %v4642 = vadd.f32 %v4640, %v4641
    %v4643 = vsel %vm120, %v4557, 0.0
    %v4644 = vadd.f32 %v4642, %v4643
    %v4645 = vsel %vm120, %v4510, 0.0
    %v4646 = vsel %vm120, %v4518, 0.0
    %v4647 = vadd.f32 %v4645, %v4646
    %v4648 = vsel %vm120, %v4526, 0.0
    %v4649 = vadd.f32 %v4647, %v4648
    %v4650 = vsel %vm120, %v4534, 0.0
    %v4651 = vadd.f32 %v4649, %v4650
    %v4652 = vsel %vm120, %v4542, 0.0
    %v4653 = vadd.f32 %v4651, %v4652
    %v4654 = vsel %vm120, %v4550, 0.0
    %v4655 = vadd.f32 %v4653, %v4654
    %v4656 = vsel %vm120, %v4558, 0.0
    %v4657 = vadd.f32 %v4655, %v4656
    %v4658 = vsel %vm120, %v4511, 0.0
    %v4659 = vsel %vm120, %v4519, 0.0
    %v4660 = vadd.f32 %v4658, %v4659
    %v4661 = vsel %vm120, %v4527, 0.0
    %v4662 = vadd.f32 %v4660, %v4661
    %v4663 = vsel %vm120, %v4535, 0.0
    %v4664 = vadd.f32 %v4662, %v4663
    %v4665 = vsel %vm120, %v4543, 0.0
    %v4666 = vadd.f32 %v4664, %v4665
    %v4667 = vsel %vm120, %v4551, 0.0
    %v4668 = vadd.f32 %v4666, %v4667
    %v4669 = vsel %vm120, %v4559, 0.0
    %v4670 = vadd.f32 %v4668, %v4669
    %v4671 = vsel %vm120, %v4512, 0.0
    %v4672 = vsel %vm120, %v4520, 0.0
    %v4673 = vadd.f32 %v4671, %v4672
    %v4674 = vsel %vm120, %v4528, 0.0
    %v4675 = vadd.f32 %v4673, %v4674
    %v4676 = vsel %vm120, %v4536, 0.0
    %v4677 = vadd.f32 %v4675, %v4676
    %v4678 = vsel %vm120, %v4544, 0.0
    %v4679 = vadd.f32 %v4677, %v4678
    %v4680 = vsel %vm120, %v4552, 0.0
    %v4681 = vadd.f32 %v4679, %v4680
    %v4682 = vsel %vm120, %v4560, 0.0
    %v4683 = vadd.f32 %v4681, %v4682
    %v4684 = vadd.f32 %v4572, %v4592
    %v4685 = vadd.f32 %v4573, %v4605
    %v4686 = vadd.f32 %v4574, %v4618
    %v4687 = vadd.f32 %v4575, %v4631
    %v4688 = vadd.f32 %v4576, %v4644
    %v4689 = vadd.f32 %v4577, %v4657
    %v4690 = vadd.f32 %v4578, %v4670
    %v4691 = vadd.f32 %v4579, %v4683
    %v4692 = vsel %vm120, %v4684, 0.0
    %4693 = vadd.xlane.f32.xlu0 %v4692
    %v4694 = vpop.xlane.xlu0 %4693
    %v4695 = vsel %vm120, %v4685, 0.0
    %4696 = vadd.xlane.f32.xlu0 %v4695
    %v4697 = vpop.xlane.xlu0 %4696
    %v4698 = vsel %vm120, %v4686, 0.0
    %4699 = vadd.xlane.f32.xlu0 %v4698
    %v4700 = vpop.xlane.xlu0 %4699
    %v4701 = vsel %vm120, %v4687, 0.0
    %4702 = vadd.xlane.f32.xlu0 %v4701
    %v4703 = vpop.xlane.xlu0 %4702
    %v4704 = vsel %vm120, %v4688, 0.0
    %4705 = vadd.xlane.f32.xlu0 %v4704
    %v4706 = vpop.xlane.xlu0 %4705
    %v4707 = vsel %vm120, %v4689, 0.0
    %4708 = vadd.xlane.f32.xlu0 %v4707
    %v4709 = vpop.xlane.xlu0 %4708
    %v4710 = vsel %vm120, %v4690, 0.0
    %4711 = vadd.xlane.f32.xlu0 %v4710
    %v4712 = vpop.xlane.xlu0 %4711
    %v4713 = vsel %vm120, %v4691, 0.0
    %4714 = vadd.xlane.f32.xlu0 %v4713
    %v4715 = vpop.xlane.xlu0 %4714
    %s4716 = sld [smem:[#allocation2]]
    %v4717 = vstv %s4716
    %v4718 = vadd.f32 %v4717, %v4336
    %v4727 = vlaneseq
    %v4728 = vand.u32 %v4727, 127
    %v4729 = vperm.slane %v4694, %v4728
    %v4730 = vadd.s32 %v4728, 4294967288
    %v4731 = vperm.slane %v4697, %v4730
    %vm4732 = vcmask 130112
    %v4733 = vsel %vm4732, %v4731, %v4729
    %v4734 = vadd.s32 %v4728, 4294967280
    %v4735 = vperm.slane %v4700, %v4734
    %vm4736 = vcmask 195712
    %v4737 = vsel %vm4736, %v4735, %v4733
    %v4738 = vadd.s32 %v4728, 4294967272
    %v4739 = vperm.slane %v4703, %v4738
    %vm4740 = vcmask 261312
    %v4741 = vsel %vm4740, %v4739, %v4737
    %v4742 = vadd.s32 %v4728, 4294967264
    %v4743 = vperm.slane %v4706, %v4742
    %vm4744 = vcmask 326912
    %v4745 = vsel %vm4744, %v4743, %v4741
    %v4746 = vadd.s32 %v4728, 4294967256
    %v4747 = vperm.slane %v4709, %v4746
    %vm4748 = vcmask 392512
    %v4749 = vsel %vm4748, %v4747, %v4745
    %v4750 = vadd.s32 %v4728, 4294967248
    %v4751 = vperm.slane %v4712, %v4750
    %vm4752 = vcmask 458112
    %v4753 = vsel %vm4752, %v4751, %v4749
    %v4754 = vadd.s32 %v4728, 4294967240
    %v4755 = vperm.slane %v4715, %v4754
    %vm4756 = vcmask 523712
    %v4757 = vsel %vm4756, %v4755, %v4753
    %v4759 = vadd.f32 %v4718, %v4757
    %vm4760 = vcmask 516096
    %4761 = vst.msk [vmem:[#allocation3] sm:$0x1] %vm4760, %v4759
    // Predicated region
    $region74: #{tpu_custom_call.1} parent=1 // pred_check
      _
    $region75: #{tpu_custom_call.1} parent=1 // pred_check_branch
      %4763 = sbr.rel (0) target = $region77
    $region76: #{tpu_custom_call.1} parent=1 // pred_region
      %4765 = vsyncadd [#allocation4], 0
      %s4767 = sshll.u32 [#allocation3], 4
      %s4768 = int_to_ptr.vmem [resolvable:$true] %s4767
      %s4769 = sshll.u32 %s18, 4
      %s4770 = int_to_ptr.hbm [resolvable:$true] %s4769
      %4772 = dma.vmem_to_hbm [thread:$0]  %s4768, 16, %s4770, [#allocation4]
    $region77: #{tpu_custom_call.1} parent=1 // pred_fallthru
      _
    // Predicated region
    $region78: #{tpu_custom_call.1} parent=1 // pred_check
      _
    $region79: #{tpu_custom_call.1} parent=1 // pred_check_branch
      %4774 = sbr.rel (0) target = $region81
    $region80: #{tpu_custom_call.1} parent=1 // pred_region
      %4776 = dma.done [#allocation4], 16
    $region81: #{tpu_custom_call.1} parent=1 // pred_fallthru
      _
    %4777 = vsyncpa [#allocation4], 1

</llo_original>
